<compile_context>
chip_gen: v6e
topology: v6e:2x2x1
jax: 0.10.0
libtpu: 0.0.40
codegen_flags: <defaults>
</compile_context>

<pallas_src>
import functools

import jax
import jax.numpy as jnp
from jax import lax
from jax.experimental import pallas as pl
from jax.experimental.pallas import tpu as pltpu

EPS = 1e-5
LANE = 128


def _round_up(x, m):
    return (x + m - 1) // m * m


def _vmem_caps():
    """(per-step working-set budget, vmem_limit_bytes) for the current chip."""
    try:
        cap = int(pltpu.get_tpu_info().vmem_capacity_bytes)
    except Exception:
        cap = 64 * 1024 * 1024  # conservative fallback (v7x per-TensorCore VMEM)
    budget = int(cap * 0.55)
    limit = int(min(cap * 0.9, 120 * 1024 * 1024))
    return budget, limit


def _pick_tile_h(H, W, cin_p, cout_p, budget_bytes):
    """Largest divisor of H whose conv-kernel working set fits the budget."""
    best = 1
    for th in range(1, H + 1):
        if H % th:
            continue
        slab = (th + 2) * (W + 2) * cin_p * 2          # bf16 halo slab
        norm_tmp = (th + 2) * (W + 2) * cin_p * 6      # f32 + bf16 fused-norm temps
        taps = 2 * th * W * cin_p * 2                  # live dx-slice copies
        acc = th * W * cout_p * 4                      # f32 accumulator
        yout = th * W * cout_p * 2                     # bf16 conv output tile
        stats = 2 * cout_p * 4
        wbytes = 9 * cin_p * cout_p * 2
        fixed = 2 * wbytes + 4 * cin_p * 4             # weights (x2 bufs) + scale/shift
        need = 2 * (slab + yout + stats) + norm_tmp + taps + acc + fixed
        if need <= budget_bytes:
            best = th
    return best


def _pick_rows_block(rows, chans, budget_bytes):
    """Largest multiple-of-8 divisor of `rows` fitting the elementwise budget."""
    best = None
    d = 8
    while d <= rows:
        if rows % d == 0 and d * chans * 12 <= budget_bytes:  # bf16 in + f32 out, x2 bufs
            best = d
        d += 8
    return best if best is not None else rows


# ---------------------------------------------------------------------------
# Kernel: (optional fused input norm+ReLU) -> 3x3 conv (9 accumulated MXU
# matmuls) + per-tile per-channel BN partial stats.
# ---------------------------------------------------------------------------
def _conv_stats_kernel(xs_ref, scale_ref, shift_ref, w_ref, y_ref, stats_ref, *,
                       tile_h, width, img_h, cin_p, cout_p, fuse_input_norm):
    a = xs_ref[...]                                        # (tile_h+2, W+2, cin_p) bf16
    if fuse_input_norm:
        # xs holds the *pre-normalization* previous-stage conv output.
        z = a.astype(jnp.float32) * scale_ref[...].reshape(1, 1, cin_p)
        z = jnp.maximum(z + shift_ref[...].reshape(1, 1, cin_p), 0.0)
        # Reproduce the zero spatial padding of the normalized activation.
        h0 = pl.program_id(1) * tile_h
        r_id = lax.broadcasted_iota(jnp.int32, (tile_h + 2, width + 2, 1), 0) + h0
        c_id = lax.broadcasted_iota(jnp.int32, (tile_h + 2, width + 2, 1), 1)
        valid = (r_id >= 1) & (r_id <= img_h) & (c_id >= 1) & (c_id <= width)
        a = (z * valid.astype(jnp.float32)).astype(jnp.bfloat16)

    n_rows = tile_h * width
    acc = jnp.zeros((n_rows, cout_p), jnp.float32)
    for dx in range(3):
        col = a[:, dx:dx + width, :]                       # one sublane slice per dx
        for dy in range(3):
            tap = col[dy:dy + tile_h].reshape(n_rows, cin_p)  # free leading-dim view
            acc = acc + jnp.dot(tap, w_ref[dy, dx],
                                preferred_element_type=jnp.float32)

    y_ref[...] = acc.reshape(tile_h, width, cout_p).astype(y_ref.dtype)  # bf16 store
    # Per-channel partial (sum, sum_sq) from the f32 accumulator, one block store.
    stats_ref[...] = jnp.concatenate(
        [jnp.sum(acc, axis=0, keepdims=True),
         jnp.sum(acc * acc, axis=0, keepdims=True)], axis=0)


# ---------------------------------------------------------------------------
# Kernel: final normalize + ReLU (pure elementwise, big lane-dense blocks).
# ---------------------------------------------------------------------------
def _norm_relu_kernel(y_ref, scale_ref, shift_ref, o_ref):
    z = y_ref[...].astype(jnp.float32) * scale_ref[...] + shift_ref[...]
    o_ref[...] = jnp.maximum(z, 0.0).astype(o_ref.dtype)


def _prep_w(w_oihw, cin_p, cout_p):
    cout, cin = w_oihw.shape[0], w_oihw.shape[1]
    w = jnp.pad(w_oihw, ((0, cout_p - cout), (0, cin_p - cin), (0, 0), (0, 0)))
    return jnp.transpose(w, (2, 3, 1, 0)).astype(jnp.bfloat16)   # (3,3,cin_p,cout_p)


def _make_slabs(x_padded, tile_h):
    """(N, H+2, W+2, C) -> (N, hb, tile_h+2, W+2, C) overlapping halo slabs."""
    H = x_padded.shape[1] - 2
    hb = H // tile_h
    if hb == 1:
        return x_padded[:, None]
    return jnp.stack(
        [lax.slice_in_dim(x_padded, i * tile_h, i * tile_h + tile_h + 2, axis=1)
         for i in range(hb)], axis=1)


def _fold_stats(stats, gamma_p, beta_p, count):
    """Partial (sum, sum_sq) per tile -> per-channel (scale, shift)."""
    totals = jnp.sum(stats, axis=(0, 1))                       # (2, C)
    mean = totals[0] / count
    var = jnp.maximum(totals[1] / count - mean * mean, 0.0)    # biased var (torch BN)
    # TODO(synk): for very large N*H*W use mean-shifted / Welford combination to
    # avoid cancellation in E[y^2] - E[y]^2.
    inv = lax.rsqrt(var + EPS)
    scale = gamma_p * inv
    shift = beta_p - mean * scale
    return scale.reshape(1, -1), shift.reshape(1, -1)


def _conv_stage(slabs, w_k, scale_in, shift_in, *, H, W, tile_h, cin_p, cout_p,
                fuse_input_norm, vmem_limit):
    N, hb = slabs.shape[0], slabs.shape[1]
    kern = functools.partial(
        _conv_stats_kernel, tile_h=tile_h, width=W, img_h=H,
        cin_p=cin_p, cout_p=cout_p, fuse_input_norm=fuse_input_norm)
    y, stats = pl.pallas_call(
        kern,
        grid=(N, hb),
        in_specs=[
            pl.BlockSpec((None, None, tile_h + 2, W + 2, cin_p),
                         lambda n, h: (n, h, 0, 0, 0)),
            pl.BlockSpec((1, cin_p), lambda n, h: (0, 0)),
            pl.BlockSpec((1, cin_p), lambda n, h: (0, 0)),
            pl.BlockSpec((3, 3, cin_p, cout_p), lambda n, h: (0, 0, 0, 0)),
        ],
        out_specs=(
            pl.BlockSpec((None, tile_h, W, cout_p), lambda n, h: (n, h, 0, 0)),
            pl.BlockSpec((None, None, 2, cout_p), lambda n, h: (n, h, 0, 0)),
        ),
        out_shape=(
            jax.ShapeDtypeStruct((N, H, W, cout_p), jnp.bfloat16),
            jax.ShapeDtypeStruct((N, hb, 2, cout_p), jnp.float32),
        ),
        compiler_params=pltpu.CompilerParams(
            dimension_semantics=("parallel", "parallel"),
            vmem_limit_bytes=vmem_limit),
    )(slabs, scale_in, shift_in, w_k)
    return y, stats


def double_conv_forward(x_nchw, params, tile_h=None):
    """Equivalent of double_conv(in_ch, out_ch).forward(x) (train-mode BN)."""
    N, in_ch, H, W = x_nchw.shape
    out_ch = params["w2"].shape[0]
    cin_p = _round_up(in_ch, LANE)
    cmid_p = _round_up(out_ch, LANE)      # stage-1 output == stage-2 input channels

    budget, vmem_limit = _vmem_caps()
    th1 = tile_h if tile_h is not None else _pick_tile_h(H, W, cin_p, cmid_p, budget)
    th2 = tile_h if tile_h is not None else _pick_tile_h(H, W, cmid_p, cmid_p, budget)
    assert H % th1 == 0 and H % th2 == 0, (H, th1, th2)

    # NHWC, bf16, spatial halo pad + lane-pad channels with zeros.
    x = jnp.transpose(x_nchw, (0, 2, 3, 1)).astype(jnp.bfloat16)
    x = jnp.pad(x, ((0, 0), (1, 1), (1, 1), (0, cin_p - in_ch)))

    w1 = _prep_w(params["w1"], cin_p, cmid_p)
    w2 = _prep_w(params["w2"], cmid_p, cmid_p)
    g1 = jnp.pad(params["g1"].astype(jnp.float32), (0, cmid_p - out_ch))
    be1 = jnp.pad(params["beta1"].astype(jnp.float32), (0, cmid_p - out_ch))
    g2 = jnp.pad(params["g2"].astype(jnp.float32), (0, cmid_p - out_ch))
    be2 = jnp.pad(params["beta2"].astype(jnp.float32), (0, cmid_p - out_ch))

    count = jnp.float32(N * H * W)
    dummy = jnp.zeros((1, cin_p), jnp.float32)

    # Stage 1: conv1 + partial stats (conv bias cancels under train-mode BN).
    y1, stats1 = _conv_stage(_make_slabs(x, th1), w1, dummy, dummy,
                             H=H, W=W, tile_h=th1, cin_p=cin_p, cout_p=cmid_p,
                             fuse_input_norm=False, vmem_limit=vmem_limit)
    scale1, shift1 = _fold_stats(stats1, g1, be1, count)

    # Stage 2: fused (normalize+ReLU of y1) -> conv2 + partial stats.
    y1p = jnp.pad(y1, ((0, 0), (1, 1), (1, 1), (0, 0)))
    y2, stats2 = _conv_stage(_make_slabs(y1p, th2), w2, scale1, shift1,
                             H=H, W=W, tile_h=th2, cin_p=cmid_p, cout_p=cmid_p,
                             fuse_input_norm=True, vmem_limit=vmem_limit)
    scale2, shift2 = _fold_stats(stats2, g2, be2, count)

    # Final normalize + ReLU over large lane-dense blocks.
    rows = N * H * W
    block_r = _pick_rows_block(rows, cmid_p, budget)
    out = pl.pallas_call(
        _norm_relu_kernel,
        grid=(rows // block_r,),
        in_specs=[pl.BlockSpec((block_r, cmid_p), lambda i: (i, 0)),
                  pl.BlockSpec((1, cmid_p), lambda i: (0, 0)),
                  pl.BlockSpec((1, cmid_p), lambda i: (0, 0))],
        out_specs=pl.BlockSpec((block_r, cmid_p), lambda i: (i, 0)),
        out_shape=jax.ShapeDtypeStruct((rows, cmid_p), jnp.float32),
        compiler_params=pltpu.CompilerParams(
            dimension_semantics=("parallel",), vmem_limit_bytes=vmem_limit),
    )(y2.reshape(rows, cmid_p), scale2, shift2)

    out = out.reshape(N, H, W, cmid_p)[..., :out_ch]
    return jnp.transpose(out, (0, 3, 1, 2))                    # NHWC -> NCHW


def init_params(key, in_ch, out_ch):
    k1, k2, k3, k4 = jax.random.split(key, 4)
    s1 = (2.0 / (in_ch * 9)) ** 0.5
    s2 = (2.0 / (out_ch * 9)) ** 0.5
    return {
        # b1/b2 kept for parameter-set fidelity; they cancel exactly under
        # train-mode BatchNorm (batch-mean subtraction) and are not used.
        "w1": jax.random.normal(k1, (out_ch, in_ch, 3, 3), jnp.float32) * s1,
        "b1": jax.random.normal(k2, (out_ch,), jnp.float32) * 0.01,
        "g1": jnp.ones((out_ch,), jnp.float32),
        "beta1": jnp.zeros((out_ch,), jnp.float32),
        "w2": jax.random.normal(k3, (out_ch, out_ch, 3, 3), jnp.float32) * s2,
        "b2": jax.random.normal(k4, (out_ch,), jnp.float32) * 0.01,
        "g2": jnp.ones((out_ch,), jnp.float32),
        "beta2": jnp.zeros((out_ch,), jnp.float32),
    }


def _reference(x_nchw, params):
    """Pure-JAX reference mirroring the kernel numerics (bf16 conv operands,
    f32 accumulation/statistics, bf16 intermediate activations). The conv
    biases are omitted: under train-mode BatchNorm the per-channel bias is
    exactly cancelled by the batch-mean subtraction, so the module's forward
    output is unchanged."""
    def conv(x, w):
        return lax.conv_general_dilated(
            x.astype(jnp.bfloat16).astype(jnp.float32),
            w.astype(jnp.bfloat16).astype(jnp.float32),
            window_strides=(1, 1), padding=((1, 1), (1, 1)),
            dimension_numbers=("NCHW", "OIHW", "NCHW"))

    def bn_fold(y, g, beta):
        mean = jnp.mean(y, axis=(0, 2, 3), keepdims=True)
        var = jnp.maximum(
            jnp.mean(y * y, axis=(0, 2, 3), keepdims=True) - mean * mean, 0.0)
        inv = lax.rsqrt(var + EPS)
        scale = g[None, :, None, None] * inv
        return scale, beta[None, :, None, None] - mean * scale

    y1 = conv(x_nchw, params["w1"])
    s1, t1 = bn_fold(y1, params["g1"], params["beta1"])
    a1 = jnp.maximum(y1.astype(jnp.bfloat16).astype(jnp.float32) * s1 + t1, 0.0)
    y2 = conv(a1, params["w2"])
    s2, t2 = bn_fold(y2, params["g2"], params["beta2"])
    return jnp.maximum(y2.astype(jnp.bfloat16).astype(jnp.float32) * s2 + t2, 0.0)


if __name__ == "__main__":
    key = jax.random.PRNGKey(0)
    kx, kp = jax.random.split(key)

    N, IN_CH, OUT_CH, H, W = 2, 4, 8, 16, 16
    x = jax.random.normal(kx, (N, IN_CH, H, W), jnp.float32)
    params = init_params(kp, IN_CH, OUT_CH)

    ref = jax.block_until_ready(_reference(x, params))

    # Multi-tile path: exercises halo slabs + boundary masking in the fused stage.
    fwd_tiled = jax.jit(functools.partial(double_conv_forward, tile_h=8))
    out_tiled = jax.block_until_ready(fwd_tiled(x, params))
    assert out_tiled.shape == (N, OUT_CH, H, W), out_tiled.shape
    err = float(jnp.max(jnp.abs(out_tiled - ref)))
    assert jnp.allclose(out_tiled, ref, atol=5e-3, rtol=5e-3), err

    # Auto tile size (single-slab path at this size).
    out_auto = jax.block_until_ready(jax.jit(double_conv_forward)(x, params))
    err2 = float(jnp.max(jnp.abs(out_auto - ref)))
    assert jnp.allclose(out_auto, ref, atol=5e-3, rtol=5e-3), err2

    print("KERNEL_OK")
</pallas_src>

<mosaic_0001>
module attributes {stable_mosaic.version = 11 : i64} {
  func.func @_conv_stats_kernel(%arg0: i32, %arg1: i32, %arg2: memref<1x1x10x18x128xbf16, #tpu.memory_space<vmem>>, %arg3: memref<1x128xf32, #tpu.memory_space<vmem>>, %arg4: memref<1x128xf32, #tpu.memory_space<vmem>>, %arg5: memref<3x3x128x128xbf16, #tpu.memory_space<vmem>>, %arg6: memref<1x8x16x128xbf16, #tpu.memory_space<vmem>>, %arg7: memref<1x1x2x128xf32, #tpu.memory_space<vmem>>) attributes {dimension_semantics = [#tpu.dimension_semantics<parallel>, #tpu.dimension_semantics<parallel>], iteration_bounds = array<i64: 2, 2>, scalar_prefetch = 0 : i64, scratch_operands = 0 : i64, tpu.core_type = #tpu.core_type<tc>, window_params = [{transform_indices = @transform_0, window_bounds = array<i64: 1, 1, 10, 18, 128>}, {pipeline_mode = #tpu.pipeline_mode<synchronous>, transform_indices = @transform_1, window_bounds = array<i64: 1, 128>}, {pipeline_mode = #tpu.pipeline_mode<synchronous>, transform_indices = @transform_2, window_bounds = array<i64: 1, 128>}, {pipeline_mode = #tpu.pipeline_mode<synchronous>, transform_indices = @transform_3, window_bounds = array<i64: 3, 3, 128, 128>}, {transform_indices = @transform_4, window_bounds = array<i64: 1, 8, 16, 128>}, {transform_indices = @transform_5, window_bounds = array<i64: 1, 1, 2, 128>}]} {
    %c0 = arith.constant 0 : index
    %c0_0 = arith.constant 0 : index
    %c0_1 = arith.constant 0 : index
    %c0_2 = arith.constant 0 : index
    %c0_3 = arith.constant 0 : index
    %0 = vector.load %arg2[%c0, %c0_0, %c0_1, %c0_2, %c0_3] : memref<1x1x10x18x128xbf16, #tpu.memory_space<vmem>>, vector<1x1x10x18x128xbf16>
    %1 = vector.shape_cast %0 : vector<1x1x10x18x128xbf16> to vector<10x18x128xbf16>
    %cst = arith.constant 0.000000e+00 : f32
    %2 = vector.broadcast %cst : f32 to vector<128x128xf32>
    %3 = vector.extract_strided_slice %1 {offsets = [0, 0, 0], sizes = [10, 16, 128], strides = [1, 1, 1]} : vector<10x18x128xbf16> to vector<10x16x128xbf16>
    %4 = vector.extract_strided_slice %3 {offsets = [0, 0, 0], sizes = [8, 16, 128], strides = [1, 1, 1]} : vector<10x16x128xbf16> to vector<8x16x128xbf16>
    %5 = vector.shape_cast %4 : vector<8x16x128xbf16> to vector<128x128xbf16>
    %c0_4 = arith.constant 0 : index
    %c0_5 = arith.constant 0 : index
    %c0_6 = arith.constant 0 : index
    %c0_7 = arith.constant 0 : index
    %6 = vector.load %arg5[%c0_4, %c0_5, %c0_6, %c0_7] : memref<3x3x128x128xbf16, #tpu.memory_space<vmem>>, vector<1x1x128x128xbf16>
    %7 = vector.shape_cast %6 : vector<1x1x128x128xbf16> to vector<128x128xbf16>
    %cst_8 = arith.constant dense<0.000000e+00> : vector<128x128xf32>
    %8 = tpu.matmul %5, %7, %cst_8 {dimension_numbers = #tpu.dot_dimension_numbers<[1], [0], [0], [1], [0, 0, 1, 1], [], []>} : vector<128x128xbf16>, vector<128x128xbf16>, vector<128x128xf32> -> vector<128x128xf32>
    %9 = arith.addf %2, %8 : vector<128x128xf32>
    %10 = vector.extract_strided_slice %3 {offsets = [1, 0, 0], sizes = [8, 16, 128], strides = [1, 1, 1]} : vector<10x16x128xbf16> to vector<8x16x128xbf16>
    %11 = vector.shape_cast %10 : vector<8x16x128xbf16> to vector<128x128xbf16>
    %c1 = arith.constant 1 : index
    %c0_9 = arith.constant 0 : index
    %c0_10 = arith.constant 0 : index
    %c0_11 = arith.constant 0 : index
    %12 = vector.load %arg5[%c1, %c0_9, %c0_10, %c0_11] : memref<3x3x128x128xbf16, #tpu.memory_space<vmem>>, vector<1x1x128x128xbf16>
    %13 = vector.shape_cast %12 : vector<1x1x128x128xbf16> to vector<128x128xbf16>
    %cst_12 = arith.constant dense<0.000000e+00> : vector<128x128xf32>
    %14 = tpu.matmul %11, %13, %cst_12 {dimension_numbers = #tpu.dot_dimension_numbers<[1], [0], [0], [1], [0, 0, 1, 1], [], []>} : vector<128x128xbf16>, vector<128x128xbf16>, vector<128x128xf32> -> vector<128x128xf32>
    %15 = arith.addf %9, %14 : vector<128x128xf32>
    %16 = vector.extract_strided_slice %3 {offsets = [2, 0, 0], sizes = [8, 16, 128], strides = [1, 1, 1]} : vector<10x16x128xbf16> to vector<8x16x128xbf16>
    %17 = vector.shape_cast %16 : vector<8x16x128xbf16> to vector<128x128xbf16>
    %c2 = arith.constant 2 : index
    %c0_13 = arith.constant 0 : index
    %c0_14 = arith.constant 0 : index
    %c0_15 = arith.constant 0 : index
    %18 = vector.load %arg5[%c2, %c0_13, %c0_14, %c0_15] : memref<3x3x128x128xbf16, #tpu.memory_space<vmem>>, vector<1x1x128x128xbf16>
    %19 = vector.shape_cast %18 : vector<1x1x128x128xbf16> to vector<128x128xbf16>
    %cst_16 = arith.constant dense<0.000000e+00> : vector<128x128xf32>
    %20 = tpu.matmul %17, %19, %cst_16 {dimension_numbers = #tpu.dot_dimension_numbers<[1], [0], [0], [1], [0, 0, 1, 1], [], []>} : vector<128x128xbf16>, vector<128x128xbf16>, vector<128x128xf32> -> vector<128x128xf32>
    %21 = arith.addf %15, %20 : vector<128x128xf32>
    %22 = vector.extract_strided_slice %1 {offsets = [0, 1, 0], sizes = [10, 16, 128], strides = [1, 1, 1]} : vector<10x18x128xbf16> to vector<10x16x128xbf16>
    %23 = vector.extract_strided_slice %22 {offsets = [0, 0, 0], sizes = [8, 16, 128], strides = [1, 1, 1]} : vector<10x16x128xbf16> to vector<8x16x128xbf16>
    %24 = vector.shape_cast %23 : vector<8x16x128xbf16> to vector<128x128xbf16>
    %c0_17 = arith.constant 0 : index
    %c1_18 = arith.constant 1 : index
    %c0_19 = arith.constant 0 : index
    %c0_20 = arith.constant 0 : index
    %25 = vector.load %arg5[%c0_17, %c1_18, %c0_19, %c0_20] : memref<3x3x128x128xbf16, #tpu.memory_space<vmem>>, vector<1x1x128x128xbf16>
    %26 = vector.shape_cast %25 : vector<1x1x128x128xbf16> to vector<128x128xbf16>
    %cst_21 = arith.constant dense<0.000000e+00> : vector<128x128xf32>
    %27 = tpu.matmul %24, %26, %cst_21 {dimension_numbers = #tpu.dot_dimension_numbers<[1], [0], [0], [1], [0, 0, 1, 1], [], []>} : vector<128x128xbf16>, vector<128x128xbf16>, vector<128x128xf32> -> vector<128x128xf32>
    %28 = arith.addf %21, %27 : vector<128x128xf32>
    %29 = vector.extract_strided_slice %22 {offsets = [1, 0, 0], sizes = [8, 16, 128], strides = [1, 1, 1]} : vector<10x16x128xbf16> to vector<8x16x128xbf16>
    %30 = vector.shape_cast %29 : vector<8x16x128xbf16> to vector<128x128xbf16>
    %c1_22 = arith.constant 1 : index
    %c1_23 = arith.constant 1 : index
    %c0_24 = arith.constant 0 : index
    %c0_25 = arith.constant 0 : index
    %31 = vector.load %arg5[%c1_22, %c1_23, %c0_24, %c0_25] : memref<3x3x128x128xbf16, #tpu.memory_space<vmem>>, vector<1x1x128x128xbf16>
    %32 = vector.shape_cast %31 : vector<1x1x128x128xbf16> to vector<128x128xbf16>
    %cst_26 = arith.constant dense<0.000000e+00> : vector<128x128xf32>
    %33 = tpu.matmul %30, %32, %cst_26 {dimension_numbers = #tpu.dot_dimension_numbers<[1], [0], [0], [1], [0, 0, 1, 1], [], []>} : vector<128x128xbf16>, vector<128x128xbf16>, vector<128x128xf32> -> vector<128x128xf32>
    %34 = arith.addf %28, %33 : vector<128x128xf32>
    %35 = vector.extract_strided_slice %22 {offsets = [2, 0, 0], sizes = [8, 16, 128], strides = [1, 1, 1]} : vector<10x16x128xbf16> to vector<8x16x128xbf16>
    %36 = vector.shape_cast %35 : vector<8x16x128xbf16> to vector<128x128xbf16>
    %c2_27 = arith.constant 2 : index
    %c1_28 = arith.constant 1 : index
    %c0_29 = arith.constant 0 : index
    %c0_30 = arith.constant 0 : index
    %37 = vector.load %arg5[%c2_27, %c1_28, %c0_29, %c0_30] : memref<3x3x128x128xbf16, #tpu.memory_space<vmem>>, vector<1x1x128x128xbf16>
    %38 = vector.shape_cast %37 : vector<1x1x128x128xbf16> to vector<128x128xbf16>
    %cst_31 = arith.constant dense<0.000000e+00> : vector<128x128xf32>
    %39 = tpu.matmul %36, %38, %cst_31 {dimension_numbers = #tpu.dot_dimension_numbers<[1], [0], [0], [1], [0, 0, 1, 1], [], []>} : vector<128x128xbf16>, vector<128x128xbf16>, vector<128x128xf32> -> vector<128x128xf32>
    %40 = arith.addf %34, %39 : vector<128x128xf32>
    %41 = vector.extract_strided_slice %1 {offsets = [0, 2, 0], sizes = [10, 16, 128], strides = [1, 1, 1]} : vector<10x18x128xbf16> to vector<10x16x128xbf16>
    %42 = vector.extract_strided_slice %41 {offsets = [0, 0, 0], sizes = [8, 16, 128], strides = [1, 1, 1]} : vector<10x16x128xbf16> to vector<8x16x128xbf16>
    %43 = vector.shape_cast %42 : vector<8x16x128xbf16> to vector<128x128xbf16>
    %c0_32 = arith.constant 0 : index
    %c2_33 = arith.constant 2 : index
    %c0_34 = arith.constant 0 : index
    %c0_35 = arith.constant 0 : index
    %44 = vector.load %arg5[%c0_32, %c2_33, %c0_34, %c0_35] : memref<3x3x128x128xbf16, #tpu.memory_space<vmem>>, vector<1x1x128x128xbf16>
    %45 = vector.shape_cast %44 : vector<1x1x128x128xbf16> to vector<128x128xbf16>
    %cst_36 = arith.constant dense<0.000000e+00> : vector<128x128xf32>
    %46 = tpu.matmul %43, %45, %cst_36 {dimension_numbers = #tpu.dot_dimension_numbers<[1], [0], [0], [1], [0, 0, 1, 1], [], []>} : vector<128x128xbf16>, vector<128x128xbf16>, vector<128x128xf32> -> vector<128x128xf32>
    %47 = arith.addf %40, %46 : vector<128x128xf32>
    %48 = vector.extract_strided_slice %41 {offsets = [1, 0, 0], sizes = [8, 16, 128], strides = [1, 1, 1]} : vector<10x16x128xbf16> to vector<8x16x128xbf16>
    %49 = vector.shape_cast %48 : vector<8x16x128xbf16> to vector<128x128xbf16>
    %c1_37 = arith.constant 1 : index
    %c2_38 = arith.constant 2 : index
    %c0_39 = arith.constant 0 : index
    %c0_40 = arith.constant 0 : index
    %50 = vector.load %arg5[%c1_37, %c2_38, %c0_39, %c0_40] : memref<3x3x128x128xbf16, #tpu.memory_space<vmem>>, vector<1x1x128x128xbf16>
    %51 = vector.shape_cast %50 : vector<1x1x128x128xbf16> to vector<128x128xbf16>
    %cst_41 = arith.constant dense<0.000000e+00> : vector<128x128xf32>
    %52 = tpu.matmul %49, %51, %cst_41 {dimension_numbers = #tpu.dot_dimension_numbers<[1], [0], [0], [1], [0, 0, 1, 1], [], []>} : vector<128x128xbf16>, vector<128x128xbf16>, vector<128x128xf32> -> vector<128x128xf32>
    %53 = arith.addf %47, %52 : vector<128x128xf32>
    %54 = vector.extract_strided_slice %41 {offsets = [2, 0, 0], sizes = [8, 16, 128], strides = [1, 1, 1]} : vector<10x16x128xbf16> to vector<8x16x128xbf16>
    %55 = vector.shape_cast %54 : vector<8x16x128xbf16> to vector<128x128xbf16>
    %c2_42 = arith.constant 2 : index
    %c2_43 = arith.constant 2 : index
    %c0_44 = arith.constant 0 : index
    %c0_45 = arith.constant 0 : index
    %56 = vector.load %arg5[%c2_42, %c2_43, %c0_44, %c0_45] : memref<3x3x128x128xbf16, #tpu.memory_space<vmem>>, vector<1x1x128x128xbf16>
    %57 = vector.shape_cast %56 : vector<1x1x128x128xbf16> to vector<128x128xbf16>
    %cst_46 = arith.constant dense<0.000000e+00> : vector<128x128xf32>
    %58 = tpu.matmul %55, %57, %cst_46 {dimension_numbers = #tpu.dot_dimension_numbers<[1], [0], [0], [1], [0, 0, 1, 1], [], []>} : vector<128x128xbf16>, vector<128x128xbf16>, vector<128x128xf32> -> vector<128x128xf32>
    %59 = arith.addf %53, %58 : vector<128x128xf32>
    %60 = vector.shape_cast %59 : vector<128x128xf32> to vector<8x16x128xf32>
    %61 = arith.truncf %60 : vector<8x16x128xf32> to vector<8x16x128xbf16>
    %c0_47 = arith.constant 0 : index
    %c0_48 = arith.constant 0 : index
    %c0_49 = arith.constant 0 : index
    %c0_50 = arith.constant 0 : index
    %62 = vector.load %arg6[%c0_47, %c0_48, %c0_49, %c0_50] : memref<1x8x16x128xbf16, #tpu.memory_space<vmem>>, vector<1x8x16x128xbf16>
    %63 = vector.shape_cast %62 : vector<1x8x16x128xbf16> to vector<8x16x128xbf16>
    %64 = vector.shape_cast %61 : vector<8x16x128xbf16> to vector<1x8x16x128xbf16>
    tpu.vector_store %arg6[%c0_47, %c0_48, %c0_49, %c0_50], %64 {strides = array<i32>} : memref<1x8x16x128xbf16, #tpu.memory_space<vmem>>, vector<1x8x16x128xbf16>,
    %cst_51 = arith.constant dense<0.000000e+00> : vector<128xf32>
    %65 = vector.multi_reduction <add>, %59, %cst_51 [0] : vector<128x128xf32> to vector<128xf32>
    %66 = vector.shape_cast %65 : vector<128xf32> to vector<1x128xf32>
    %67 = arith.mulf %59, %59 : vector<128x128xf32>
    %cst_52 = arith.constant dense<0.000000e+00> : vector<128xf32>
    %68 = vector.multi_reduction <add>, %67, %cst_52 [0] : vector<128x128xf32> to vector<128xf32>
    %69 = vector.shape_cast %68 : vector<128xf32> to vector<1x128xf32>
    %70 = tpu.concatenate %66, %69 in 0 : vector<1x128xf32>, vector<1x128xf32> -> vector<2x128xf32>
    %c0_53 = arith.constant 0 : index
    %c0_54 = arith.constant 0 : index
    %c0_55 = arith.constant 0 : index
    %c0_56 = arith.constant 0 : index
    %71 = vector.load %arg7[%c0_53, %c0_54, %c0_55, %c0_56] : memref<1x1x2x128xf32, #tpu.memory_space<vmem>>, vector<1x1x2x128xf32>
    %72 = vector.shape_cast %71 : vector<1x1x2x128xf32> to vector<2x128xf32>
    %73 = vector.shape_cast %70 : vector<2x128xf32> to vector<1x1x2x128xf32>
    tpu.vector_store %arg7[%c0_53, %c0_54, %c0_55, %c0_56], %73 {strides = array<i32>} : memref<1x1x2x128xf32, #tpu.memory_space<vmem>>, vector<1x1x2x128xf32>,
    return
  }
  func.func @transform_0(%arg0: i32, %arg1: i32) -> (i32, i32, i32, i32, i32) {
    %c0_i32 = arith.constant 0 : i32
    %c0_i32_0 = arith.constant 0 : i32
    %c0_i32_1 = arith.constant 0 : i32
    %c0_i32_2 = arith.constant 0 : i32
    return %arg0, %arg1, %c0_i32, %c0_i32_0, %c0_i32_1 : i32, i32, i32, i32, i32
  }
  func.func @transform_1(%arg0: i32, %arg1: i32) -> (i32, i32) {
    %c0_i32 = arith.constant 0 : i32
    %c0_i32_0 = arith.constant 0 : i32
    %c0_i32_1 = arith.constant 0 : i32
    return %c0_i32, %c0_i32_0 : i32, i32
  }
  func.func @transform_2(%arg0: i32, %arg1: i32) -> (i32, i32) {
    %c0_i32 = arith.constant 0 : i32
    %c0_i32_0 = arith.constant 0 : i32
    %c0_i32_1 = arith.constant 0 : i32
    return %c0_i32, %c0_i32_0 : i32, i32
  }
  func.func @transform_3(%arg0: i32, %arg1: i32) -> (i32, i32, i32, i32) {
    %c0_i32 = arith.constant 0 : i32
    %c0_i32_0 = arith.constant 0 : i32
    %c0_i32_1 = arith.constant 0 : i32
    %c0_i32_2 = arith.constant 0 : i32
    %c0_i32_3 = arith.constant 0 : i32
    return %c0_i32, %c0_i32_0, %c0_i32_1, %c0_i32_2 : i32, i32, i32, i32
  }
  func.func @transform_4(%arg0: i32, %arg1: i32) -> (i32, i32, i32, i32) {
    %c0_i32 = arith.constant 0 : i32
    %c0_i32_0 = arith.constant 0 : i32
    %c0_i32_1 = arith.constant 0 : i32
    return %arg0, %arg1, %c0_i32, %c0_i32_0 : i32, i32, i32, i32
  }
  func.func @transform_5(%arg0: i32, %arg1: i32) -> (i32, i32, i32, i32) {
    %c0_i32 = arith.constant 0 : i32
    %c0_i32_0 = arith.constant 0 : i32
    %c0_i32_1 = arith.constant 0 : i32
    return %arg0, %arg1, %c0_i32, %c0_i32_0 : i32, i32, i32, i32
  }
}

module attributes {stable_mosaic.version = 11 : i64} {
  func.func @_conv_stats_kernel(%arg0: i32, %arg1: i32, %arg2: memref<1x1x10x18x128xbf16, #tpu.memory_space<vmem>>, %arg3: memref<1x128xf32, #tpu.memory_space<vmem>>, %arg4: memref<1x128xf32, #tpu.memory_space<vmem>>, %arg5: memref<3x3x128x128xbf16, #tpu.memory_space<vmem>>, %arg6: memref<1x8x16x128xbf16, #tpu.memory_space<vmem>>, %arg7: memref<1x1x2x128xf32, #tpu.memory_space<vmem>>) attributes {dimension_semantics = [#tpu.dimension_semantics<parallel>, #tpu.dimension_semantics<parallel>], iteration_bounds = array<i64: 2, 2>, scalar_prefetch = 0 : i64, scratch_operands = 0 : i64, tpu.core_type = #tpu.core_type<tc>, window_params = [{transform_indices = @transform_0, window_bounds = array<i64: 1, 1, 10, 18, 128>}, {pipeline_mode = #tpu.pipeline_mode<synchronous>, transform_indices = @transform_1, window_bounds = array<i64: 1, 128>}, {pipeline_mode = #tpu.pipeline_mode<synchronous>, transform_indices = @transform_2, window_bounds = array<i64: 1, 128>}, {pipeline_mode = #tpu.pipeline_mode<synchronous>, transform_indices = @transform_3, window_bounds = array<i64: 3, 3, 128, 128>}, {transform_indices = @transform_4, window_bounds = array<i64: 1, 8, 16, 128>}, {transform_indices = @transform_5, window_bounds = array<i64: 1, 1, 2, 128>}]} {
    %c0 = arith.constant 0 : index
    %c0_0 = arith.constant 0 : index
    %c0_1 = arith.constant 0 : index
    %c0_2 = arith.constant 0 : index
    %c0_3 = arith.constant 0 : index
    %0 = vector.load %arg2[%c0, %c0_0, %c0_1, %c0_2, %c0_3] : memref<1x1x10x18x128xbf16, #tpu.memory_space<vmem>>, vector<1x1x10x18x128xbf16>
    %1 = vector.shape_cast %0 : vector<1x1x10x18x128xbf16> to vector<10x18x128xbf16>
    %2 = arith.extf %1 : vector<10x18x128xbf16> to vector<10x18x128xf32>
    %c0_4 = arith.constant 0 : index
    %c0_5 = arith.constant 0 : index
    %3 = vector.load %arg3[%c0_4, %c0_5] : memref<1x128xf32, #tpu.memory_space<vmem>>, vector<1x128xf32>
    %4 = vector.shape_cast %3 : vector<1x128xf32> to vector<1x1x128xf32>
    %5 = vector.broadcast %4 : vector<1x1x128xf32> to vector<10x18x128xf32>
    %6 = arith.mulf %2, %5 : vector<10x18x128xf32>
    %c0_6 = arith.constant 0 : index
    %c0_7 = arith.constant 0 : index
    %7 = vector.load %arg4[%c0_6, %c0_7] : memref<1x128xf32, #tpu.memory_space<vmem>>, vector<1x128xf32>
    %8 = vector.shape_cast %7 : vector<1x128xf32> to vector<1x1x128xf32>
    %9 = vector.broadcast %8 : vector<1x1x128xf32> to vector<10x18x128xf32>
    %10 = arith.addf %6, %9 : vector<10x18x128xf32>
    %cst = arith.constant 0.000000e+00 : f32
    %11 = vector.broadcast %cst : f32 to vector<10x18x128xf32>
    %12 = arith.maximumf %10, %11 : vector<10x18x128xf32>
    %c8_i32 = arith.constant 8 : i32
    %13 = arith.muli %arg1, %c8_i32 : i32
    %14 = tpu.iota {dimensions = array<i32: 0>} : vector<10x18x1xi32>
    %15 = vector.broadcast %13 : i32 to vector<10x18x1xi32>
    %16 = arith.addi %14, %15 : vector<10x18x1xi32>
    %17 = tpu.iota {dimensions = array<i32: 1>} : vector<10x18x1xi32>
    %c1_i32 = arith.constant 1 : i32
    %18 = vector.broadcast %c1_i32 : i32 to vector<10x18x1xi32>
    %19 = arith.cmpi sge, %16, %18 : vector<10x18x1xi32>
    %c16_i32 = arith.constant 16 : i32
    %20 = vector.broadcast %c16_i32 : i32 to vector<10x18x1xi32>
    %21 = arith.cmpi sle, %16, %20 : vector<10x18x1xi32>
    %22 = arith.andi %19, %21 : vector<10x18x1xi1>
    %c1_i32_8 = arith.constant 1 : i32
    %23 = vector.broadcast %c1_i32_8 : i32 to vector<10x18x1xi32>
    %24 = arith.cmpi sge, %17, %23 : vector<10x18x1xi32>
    %25 = arith.andi %22, %24 : vector<10x18x1xi1>
    %c16_i32_9 = arith.constant 16 : i32
    %26 = vector.broadcast %c16_i32_9 : i32 to vector<10x18x1xi32>
    %27 = arith.cmpi sle, %17, %26 : vector<10x18x1xi32>
    %28 = arith.andi %25, %27 : vector<10x18x1xi1>
    %29 = arith.extui %28 : vector<10x18x1xi1> to vector<10x18x1xi32>
    %30 = arith.sitofp %29 : vector<10x18x1xi32> to vector<10x18x1xf32>
    %31 = vector.broadcast %30 : vector<10x18x1xf32> to vector<10x18x128xf32>
    %32 = arith.mulf %12, %31 : vector<10x18x128xf32>
    %33 = arith.truncf %32 : vector<10x18x128xf32> to vector<10x18x128xbf16>
    %cst_10 = arith.constant 0.000000e+00 : f32
    %34 = vector.broadcast %cst_10 : f32 to vector<128x128xf32>
    %35 = vector.extract_strided_slice %33 {offsets = [0, 0, 0], sizes = [10, 16, 128], strides = [1, 1, 1]} : vector<10x18x128xbf16> to vector<10x16x128xbf16>
    %36 = vector.extract_strided_slice %35 {offsets = [0, 0, 0], sizes = [8, 16, 128], strides = [1, 1, 1]} : vector<10x16x128xbf16> to vector<8x16x128xbf16>
    %37 = vector.shape_cast %36 : vector<8x16x128xbf16> to vector<128x128xbf16>
    %c0_11 = arith.constant 0 : index
    %c0_12 = arith.constant 0 : index
    %c0_13 = arith.constant 0 : index
    %c0_14 = arith.constant 0 : index
    %38 = vector.load %arg5[%c0_11, %c0_12, %c0_13, %c0_14] : memref<3x3x128x128xbf16, #tpu.memory_space<vmem>>, vector<1x1x128x128xbf16>
    %39 = vector.shape_cast %38 : vector<1x1x128x128xbf16> to vector<128x128xbf16>
    %cst_15 = arith.constant dense<0.000000e+00> : vector<128x128xf32>
    %40 = tpu.matmul %37, %39, %cst_15 {dimension_numbers = #tpu.dot_dimension_numbers<[1], [0], [0], [1], [0, 0, 1, 1], [], []>} : vector<128x128xbf16>, vector<128x128xbf16>, vector<128x128xf32> -> vector<128x128xf32>
    %41 = arith.addf %34, %40 : vector<128x128xf32>
    %42 = vector.extract_strided_slice %35 {offsets = [1, 0, 0], sizes = [8, 16, 128], strides = [1, 1, 1]} : vector<10x16x128xbf16> to vector<8x16x128xbf16>
    %43 = vector.shape_cast %42 : vector<8x16x128xbf16> to vector<128x128xbf16>
    %c1 = arith.constant 1 : index
    %c0_16 = arith.constant 0 : index
    %c0_17 = arith.constant 0 : index
    %c0_18 = arith.constant 0 : index
    %44 = vector.load %arg5[%c1, %c0_16, %c0_17, %c0_18] : memref<3x3x128x128xbf16, #tpu.memory_space<vmem>>, vector<1x1x128x128xbf16>
    %45 = vector.shape_cast %44 : vector<1x1x128x128xbf16> to vector<128x128xbf16>
    %cst_19 = arith.constant dense<0.000000e+00> : vector<128x128xf32>
    %46 = tpu.matmul %43, %45, %cst_19 {dimension_numbers = #tpu.dot_dimension_numbers<[1], [0], [0], [1], [0, 0, 1, 1], [], []>} : vector<128x128xbf16>, vector<128x128xbf16>, vector<128x128xf32> -> vector<128x128xf32>
    %47 = arith.addf %41, %46 : vector<128x128xf32>
    %48 = vector.extract_strided_slice %35 {offsets = [2, 0, 0], sizes = [8, 16, 128], strides = [1, 1, 1]} : vector<10x16x128xbf16> to vector<8x16x128xbf16>
    %49 = vector.shape_cast %48 : vector<8x16x128xbf16> to vector<128x128xbf16>
    %c2 = arith.constant 2 : index
    %c0_20 = arith.constant 0 : index
    %c0_21 = arith.constant 0 : index
    %c0_22 = arith.constant 0 : index
    %50 = vector.load %arg5[%c2, %c0_20, %c0_21, %c0_22] : memref<3x3x128x128xbf16, #tpu.memory_space<vmem>>, vector<1x1x128x128xbf16>
    %51 = vector.shape_cast %50 : vector<1x1x128x128xbf16> to vector<128x128xbf16>
    %cst_23 = arith.constant dense<0.000000e+00> : vector<128x128xf32>
    %52 = tpu.matmul %49, %51, %cst_23 {dimension_numbers = #tpu.dot_dimension_numbers<[1], [0], [0], [1], [0, 0, 1, 1], [], []>} : vector<128x128xbf16>, vector<128x128xbf16>, vector<128x128xf32> -> vector<128x128xf32>
    %53 = arith.addf %47, %52 : vector<128x128xf32>
    %54 = vector.extract_strided_slice %33 {offsets = [0, 1, 0], sizes = [10, 16, 128], strides = [1, 1, 1]} : vector<10x18x128xbf16> to vector<10x16x128xbf16>
    %55 = vector.extract_strided_slice %54 {offsets = [0, 0, 0], sizes = [8, 16, 128], strides = [1, 1, 1]} : vector<10x16x128xbf16> to vector<8x16x128xbf16>
    %56 = vector.shape_cast %55 : vector<8x16x128xbf16> to vector<128x128xbf16>
    %c0_24 = arith.constant 0 : index
    %c1_25 = arith.constant 1 : index
    %c0_26 = arith.constant 0 : index
    %c0_27 = arith.constant 0 : index
    %57 = vector.load %arg5[%c0_24, %c1_25, %c0_26, %c0_27] : memref<3x3x128x128xbf16, #tpu.memory_space<vmem>>, vector<1x1x128x128xbf16>
    %58 = vector.shape_cast %57 : vector<1x1x128x128xbf16> to vector<128x128xbf16>
    %cst_28 = arith.constant dense<0.000000e+00> : vector<128x128xf32>
    %59 = tpu.matmul %56, %58, %cst_28 {dimension_numbers = #tpu.dot_dimension_numbers<[1], [0], [0], [1], [0, 0, 1, 1], [], []>} : vector<128x128xbf16>, vector<128x128xbf16>, vector<128x128xf32> -> vector<128x128xf32>
    %60 = arith.addf %53, %59 : vector<128x128xf32>
    %61 = vector.extract_strided_slice %54 {offsets = [1, 0, 0], sizes = [8, 16, 128], strides = [1, 1, 1]} : vector<10x16x128xbf16> to vector<8x16x128xbf16>
    %62 = vector.shape_cast %61 : vector<8x16x128xbf16> to vector<128x128xbf16>
    %c1_29 = arith.constant 1 : index
    %c1_30 = arith.constant 1 : index
    %c0_31 = arith.constant 0 : index
    %c0_32 = arith.constant 0 : index
    %63 = vector.load %arg5[%c1_29, %c1_30, %c0_31, %c0_32] : memref<3x3x128x128xbf16, #tpu.memory_space<vmem>>, vector<1x1x128x128xbf16>
    %64 = vector.shape_cast %63 : vector<1x1x128x128xbf16> to vector<128x128xbf16>
    %cst_33 = arith.constant dense<0.000000e+00> : vector<128x128xf32>
    %65 = tpu.matmul %62, %64, %cst_33 {dimension_numbers = #tpu.dot_dimension_numbers<[1], [0], [0], [1], [0, 0, 1, 1], [], []>} : vector<128x128xbf16>, vector<128x128xbf16>, vector<128x128xf32> -> vector<128x128xf32>
    %66 = arith.addf %60, %65 : vector<128x128xf32>
    %67 = vector.extract_strided_slice %54 {offsets = [2, 0, 0], sizes = [8, 16, 128], strides = [1, 1, 1]} : vector<10x16x128xbf16> to vector<8x16x128xbf16>
    %68 = vector.shape_cast %67 : vector<8x16x128xbf16> to vector<128x128xbf16>
    %c2_34 = arith.constant 2 : index
    %c1_35 = arith.constant 1 : index
    %c0_36 = arith.constant 0 : index
    %c0_37 = arith.constant 0 : index
    %69 = vector.load %arg5[%c2_34, %c1_35, %c0_36, %c0_37] : memref<3x3x128x128xbf16, #tpu.memory_space<vmem>>, vector<1x1x128x128xbf16>
    %70 = vector.shape_cast %69 : vector<1x1x128x128xbf16> to vector<128x128xbf16>
    %cst_38 = arith.constant dense<0.000000e+00> : vector<128x128xf32>
    %71 = tpu.matmul %68, %70, %cst_38 {dimension_numbers = #tpu.dot_dimension_numbers<[1], [0], [0], [1], [0, 0, 1, 1], [], []>} : vector<128x128xbf16>, vector<128x128xbf16>, vector<128x128xf32> -> vector<128x128xf32>
    %72 = arith.addf %66, %71 : vector<128x128xf32>
    %73 = vector.extract_strided_slice %33 {offsets = [0, 2, 0], sizes = [10, 16, 128], strides = [1, 1, 1]} : vector<10x18x128xbf16> to vector<10x16x128xbf16>
    %74 = vector.extract_strided_slice %73 {offsets = [0, 0, 0], sizes = [8, 16, 128], strides = [1, 1, 1]} : vector<10x16x128xbf16> to vector<8x16x128xbf16>
    %75 = vector.shape_cast %74 : vector<8x16x128xbf16> to vector<128x128xbf16>
    %c0_39 = arith.constant 0 : index
    %c2_40 = arith.constant 2 : index
    %c0_41 = arith.constant 0 : index
    %c0_42 = arith.constant 0 : index
    %76 = vector.load %arg5[%c0_39, %c2_40, %c0_41, %c0_42] : memref<3x3x128x128xbf16, #tpu.memory_space<vmem>>, vector<1x1x128x128xbf16>
    %77 = vector.shape_cast %76 : vector<1x1x128x128xbf16> to vector<128x128xbf16>
    %cst_43 = arith.constant dense<0.000000e+00> : vector<128x128xf32>
    %78 = tpu.matmul %75, %77, %cst_43 {dimension_numbers = #tpu.dot_dimension_numbers<[1], [0], [0], [1], [0, 0, 1, 1], [], []>} : vector<128x128xbf16>, vector<128x128xbf16>, vector<128x128xf32> -> vector<128x128xf32>
    %79 = arith.addf %72, %78 : vector<128x128xf32>
    %80 = vector.extract_strided_slice %73 {offsets = [1, 0, 0], sizes = [8, 16, 128], strides = [1, 1, 1]} : vector<10x16x128xbf16> to vector<8x16x128xbf16>
    %81 = vector.shape_cast %80 : vector<8x16x128xbf16> to vector<128x128xbf16>
    %c1_44 = arith.constant 1 : index
    %c2_45 = arith.constant 2 : index
    %c0_46 = arith.constant 0 : index
    %c0_47 = arith.constant 0 : index
    %82 = vector.load %arg5[%c1_44, %c2_45, %c0_46, %c0_47] : memref<3x3x128x128xbf16, #tpu.memory_space<vmem>>, vector<1x1x128x128xbf16>
    %83 = vector.shape_cast %82 : vector<1x1x128x128xbf16> to vector<128x128xbf16>
    %cst_48 = arith.constant dense<0.000000e+00> : vector<128x128xf32>
    %84 = tpu.matmul %81, %83, %cst_48 {dimension_numbers = #tpu.dot_dimension_numbers<[1], [0], [0], [1], [0, 0, 1, 1], [], []>} : vector<128x128xbf16>, vector<128x128xbf16>, vector<128x128xf32> -> vector<128x128xf32>
    %85 = arith.addf %79, %84 : vector<128x128xf32>
    %86 = vector.extract_strided_slice %73 {offsets = [2, 0, 0], sizes = [8, 16, 128], strides = [1, 1, 1]} : vector<10x16x128xbf16> to vector<8x16x128xbf16>
    %87 = vector.shape_cast %86 : vector<8x16x128xbf16> to vector<128x128xbf16>
    %c2_49 = arith.constant 2 : index
    %c2_50 = arith.constant 2 : index
    %c0_51 = arith.constant 0 : index
    %c0_52 = arith.constant 0 : index
    %88 = vector.load %arg5[%c2_49, %c2_50, %c0_51, %c0_52] : memref<3x3x128x128xbf16, #tpu.memory_space<vmem>>, vector<1x1x128x128xbf16>
    %89 = vector.shape_cast %88 : vector<1x1x128x128xbf16> to vector<128x128xbf16>
    %cst_53 = arith.constant dense<0.000000e+00> : vector<128x128xf32>
    %90 = tpu.matmul %87, %89, %cst_53 {dimension_numbers = #tpu.dot_dimension_numbers<[1], [0], [0], [1], [0, 0, 1, 1], [], []>} : vector<128x128xbf16>, vector<128x128xbf16>, vector<128x128xf32> -> vector<128x128xf32>
    %91 = arith.addf %85, %90 : vector<128x128xf32>
    %92 = vector.shape_cast %91 : vector<128x128xf32> to vector<8x16x128xf32>
    %93 = arith.truncf %92 : vector<8x16x128xf32> to vector<8x16x128xbf16>
    %c0_54 = arith.constant 0 : index
    %c0_55 = arith.constant 0 : index
    %c0_56 = arith.constant 0 : index
    %c0_57 = arith.constant 0 : index
    %94 = vector.load %arg6[%c0_54, %c0_55, %c0_56, %c0_57] : memref<1x8x16x128xbf16, #tpu.memory_space<vmem>>, vector<1x8x16x128xbf16>
    %95 = vector.shape_cast %94 : vector<1x8x16x128xbf16> to vector<8x16x128xbf16>
    %96 = vector.shape_cast %93 : vector<8x16x128xbf16> to vector<1x8x16x128xbf16>
    tpu.vector_store %arg6[%c0_54, %c0_55, %c0_56, %c0_57], %96 {strides = array<i32>} : memref<1x8x16x128xbf16, #tpu.memory_space<vmem>>, vector<1x8x16x128xbf16>,
    %cst_58 = arith.constant dense<0.000000e+00> : vector<128xf32>
    %97 = vector.multi_reduction <add>, %91, %cst_58 [0] : vector<128x128xf32> to vector<128xf32>
    %98 = vector.shape_cast %97 : vector<128xf32> to vector<1x128xf32>
    %99 = arith.mulf %91, %91 : vector<128x128xf32>
    %cst_59 = arith.constant dense<0.000000e+00> : vector<128xf32>
    %100 = vector.multi_reduction <add>, %99, %cst_59 [0] : vector<128x128xf32> to vector<128xf32>
    %101 = vector.shape_cast %100 : vector<128xf32> to vector<1x128xf32>
    %102 = tpu.concatenate %98, %101 in 0 : vector<1x128xf32>, vector<1x128xf32> -> vector<2x128xf32>
    %c0_60 = arith.constant 0 : index
    %c0_61 = arith.constant 0 : index
    %c0_62 = arith.constant 0 : index
    %c0_63 = arith.constant 0 : index
    %103 = vector.load %arg7[%c0_60, %c0_61, %c0_62, %c0_63] : memref<1x1x2x128xf32, #tpu.memory_space<vmem>>, vector<1x1x2x128xf32>
    %104 = vector.shape_cast %103 : vector<1x1x2x128xf32> to vector<2x128xf32>
    %105 = vector.shape_cast %102 : vector<2x128xf32> to vector<1x1x2x128xf32>
    tpu.vector_store %arg7[%c0_60, %c0_61, %c0_62, %c0_63], %105 {strides = array<i32>} : memref<1x1x2x128xf32, #tpu.memory_space<vmem>>, vector<1x1x2x128xf32>,
    return
  }
  func.func @transform_0(%arg0: i32, %arg1: i32) -> (i32, i32, i32, i32, i32) {
    %c0_i32 = arith.constant 0 : i32
    %c0_i32_0 = arith.constant 0 : i32
    %c0_i32_1 = arith.constant 0 : i32
    %c0_i32_2 = arith.constant 0 : i32
    return %arg0, %arg1, %c0_i32, %c0_i32_0, %c0_i32_1 : i32, i32, i32, i32, i32
  }
  func.func @transform_1(%arg0: i32, %arg1: i32) -> (i32, i32) {
    %c0_i32 = arith.constant 0 : i32
    %c0_i32_0 = arith.constant 0 : i32
    %c0_i32_1 = arith.constant 0 : i32
    return %c0_i32, %c0_i32_0 : i32, i32
  }
  func.func @transform_2(%arg0: i32, %arg1: i32) -> (i32, i32) {
    %c0_i32 = arith.constant 0 : i32
    %c0_i32_0 = arith.constant 0 : i32
    %c0_i32_1 = arith.constant 0 : i32
    return %c0_i32, %c0_i32_0 : i32, i32
  }
  func.func @transform_3(%arg0: i32, %arg1: i32) -> (i32, i32, i32, i32) {
    %c0_i32 = arith.constant 0 : i32
    %c0_i32_0 = arith.constant 0 : i32
    %c0_i32_1 = arith.constant 0 : i32
    %c0_i32_2 = arith.constant 0 : i32
    %c0_i32_3 = arith.constant 0 : i32
    return %c0_i32, %c0_i32_0, %c0_i32_1, %c0_i32_2 : i32, i32, i32, i32
  }
  func.func @transform_4(%arg0: i32, %arg1: i32) -> (i32, i32, i32, i32) {
    %c0_i32 = arith.constant 0 : i32
    %c0_i32_0 = arith.constant 0 : i32
    %c0_i32_1 = arith.constant 0 : i32
    return %arg0, %arg1, %c0_i32, %c0_i32_0 : i32, i32, i32, i32
  }
  func.func @transform_5(%arg0: i32, %arg1: i32) -> (i32, i32, i32, i32) {
    %c0_i32 = arith.constant 0 : i32
    %c0_i32_0 = arith.constant 0 : i32
    %c0_i32_1 = arith.constant 0 : i32
    return %arg0, %arg1, %c0_i32, %c0_i32_0 : i32, i32, i32, i32
  }
}

module attributes {stable_mosaic.version = 11 : i64} {
  func.func @_norm_relu_kernel(%arg0: i32, %arg1: memref<512x128xbf16, #tpu.memory_space<vmem>>, %arg2: memref<1x128xf32, #tpu.memory_space<vmem>>, %arg3: memref<1x128xf32, #tpu.memory_space<vmem>>, %arg4: memref<512x128xf32, #tpu.memory_space<vmem>>) attributes {dimension_semantics = [#tpu.dimension_semantics<parallel>], iteration_bounds = array<i64: 1>, scalar_prefetch = 0 : i64, scratch_operands = 0 : i64, tpu.core_type = #tpu.core_type<tc>, window_params = [{transform_indices = @transform_0, window_bounds = array<i64: 512, 128>}, {pipeline_mode = #tpu.pipeline_mode<synchronous>, transform_indices = @transform_1, window_bounds = array<i64: 1, 128>}, {pipeline_mode = #tpu.pipeline_mode<synchronous>, transform_indices = @transform_2, window_bounds = array<i64: 1, 128>}, {transform_indices = @transform_3, window_bounds = array<i64: 512, 128>}]} {
    %c0 = arith.constant 0 : index
    %c0_0 = arith.constant 0 : index
    %0 = vector.load %arg1[%c0, %c0_0] : memref<512x128xbf16, #tpu.memory_space<vmem>>, vector<512x128xbf16>
    %1 = arith.extf %0 : vector<512x128xbf16> to vector<512x128xf32>
    %c0_1 = arith.constant 0 : index
    %c0_2 = arith.constant 0 : index
    %2 = vector.load %arg2[%c0_1, %c0_2] : memref<1x128xf32, #tpu.memory_space<vmem>>, vector<1x128xf32>
    %3 = vector.broadcast %2 : vector<1x128xf32> to vector<512x128xf32>
    %4 = arith.mulf %1, %3 : vector<512x128xf32>
    %c0_3 = arith.constant 0 : index
    %c0_4 = arith.constant 0 : index
    %5 = vector.load %arg3[%c0_3, %c0_4] : memref<1x128xf32, #tpu.memory_space<vmem>>, vector<1x128xf32>
    %6 = vector.broadcast %5 : vector<1x128xf32> to vector<512x128xf32>
    %7 = arith.addf %4, %6 : vector<512x128xf32>
    %cst = arith.constant 0.000000e+00 : f32
    %8 = vector.broadcast %cst : f32 to vector<512x128xf32>
    %9 = arith.maximumf %7, %8 : vector<512x128xf32>
    %c0_5 = arith.constant 0 : index
    %c0_6 = arith.constant 0 : index
    %10 = vector.load %arg4[%c0_5, %c0_6] : memref<512x128xf32, #tpu.memory_space<vmem>>, vector<512x128xf32>
    tpu.vector_store %arg4[%c0_5, %c0_6], %9 {strides = array<i32>} : memref<512x128xf32, #tpu.memory_space<vmem>>, vector<512x128xf32>,
    return
  }
  func.func @transform_0(%arg0: i32) -> (i32, i32) {
    %c0_i32 = arith.constant 0 : i32
    %c0_i32_0 = arith.constant 0 : i32
    return %arg0, %c0_i32 : i32, i32
  }
  func.func @transform_1(%arg0: i32) -> (i32, i32) {
    %c0_i32 = arith.constant 0 : i32
    %c0_i32_0 = arith.constant 0 : i32
    %c0_i32_1 = arith.constant 0 : i32
    return %c0_i32, %c0_i32_0 : i32, i32
  }
  func.func @transform_2(%arg0: i32) -> (i32, i32) {
    %c0_i32 = arith.constant 0 : i32
    %c0_i32_0 = arith.constant 0 : i32
    %c0_i32_1 = arith.constant 0 : i32
    return %c0_i32, %c0_i32_0 : i32, i32
  }
  func.func @transform_3(%arg0: i32) -> (i32, i32) {
    %c0_i32 = arith.constant 0 : i32
    %c0_i32_0 = arith.constant 0 : i32
    return %arg0, %c0_i32 : i32, i32
  }
}

</mosaic_0001>

<llo_original>
// kernel: double_conv_forward.5
$region0: #{double_conv_forward.5}
  #allocation0 [shape = 'u32[]', space=smem, size = 0x4, offset = 0x4, fixed_abs, tag = 'smem constant byte address 0x4 - core index']
  #allocation1 [shape = 'u32[144,128]{1,0:T(1,128)}', space=vmem, size = 0x12000, scoped, tag = 'internal scratch']
  %s0 = inlined_call_operand.vmem [shape: bf16[512,128], index: 0, kind: input, shape index: {}]
  %s1 = inlined_call_operand.vmem [shape: f32[1,128], index: 1, kind: input, shape index: {}]
  %s2 = inlined_call_operand.vmem [shape: f32[1,128], index: 2, kind: input, shape index: {}]
  %s3 = inlined_call_operand.vmem [shape: f32[512,128], index: 3, kind: output, shape index: {}]
  %s4 = sld [smem:[#allocation0]]
  $region22: #{double_conv_forward.5} parent=0
    _
  %s6 = ssub.s32 1, %s4
  %s7 = scalar_select 0, %s6, %s4
  // Predicated region
  $region2: #{double_conv_forward.5} parent=0 // pred_check
    _
  $region3: #{double_conv_forward.5} parent=0 // pred_check_branch
    %9 = sbr.rel (0) target = $region5
  $region4: #{double_conv_forward.5} parent=0 // pred_region
    _
  $region5: #{double_conv_forward.5} parent=0 // pred_fallthru
    _
  // Predicated region
  $region6: #{double_conv_forward.5} parent=0 // pred_check
    _
  $region7: #{double_conv_forward.5} parent=0 // pred_check_branch
    %11 = sbr.rel (0) target = $region9
  $region8: #{double_conv_forward.5} parent=0 // pred_region
    _
  $region9: #{double_conv_forward.5} parent=0 // pred_fallthru
    _
  // Predicated region
  $region10: #{double_conv_forward.5} parent=0 // pred_check
    _
  $region11: #{double_conv_forward.5} parent=0 // pred_check_branch
    %13 = sbr.rel (0) target = $region13
  $region12: #{double_conv_forward.5} parent=0 // pred_region
    _
  $region13: #{double_conv_forward.5} parent=0 // pred_fallthru
    _
  %v14 = vld [vmem:[%s0] sm:$0xf]
  %v15 = vld [vmem:[%s0 + $0x4] sm:$0xf]
  %v16 = vld [vmem:[%s0 + $0x8] sm:$0xf]
  %v17 = vld [vmem:[%s0 + $0xc] sm:$0xf]
  %v18 = vld [vmem:[%s0 + $0x10] sm:$0xf]
  %v19 = vld [vmem:[%s0 + $0x14] sm:$0xf]
  %v20 = vld [vmem:[%s0 + $0x18] sm:$0xf]
  %v21 = vld [vmem:[%s0 + $0x1c] sm:$0xf]
  %v22 = vld [vmem:[%s0 + $0x20] sm:$0xf]
  %v23 = vld [vmem:[%s0 + $0x24] sm:$0xf]
  %v24 = vld [vmem:[%s0 + $0x28] sm:$0xf]
  %v25 = vld [vmem:[%s0 + $0x2c] sm:$0xf]
  %v26 = vld [vmem:[%s0 + $0x30] sm:$0xf]
  %v27 = vld [vmem:[%s0 + $0x34] sm:$0xf]
  %v28 = vld [vmem:[%s0 + $0x38] sm:$0xf]
  %v29 = vld [vmem:[%s0 + $0x3c] sm:$0xf]
  %v30 = vld [vmem:[%s0 + $0x40] sm:$0xf]
  %v31 = vld [vmem:[%s0 + $0x44] sm:$0xf]
  %v32 = vld [vmem:[%s0 + $0x48] sm:$0xf]
  %v33 = vld [vmem:[%s0 + $0x4c] sm:$0xf]
  %v34 = vld [vmem:[%s0 + $0x50] sm:$0xf]
  %v35 = vld [vmem:[%s0 + $0x54] sm:$0xf]
  %v36 = vld [vmem:[%s0 + $0x58] sm:$0xf]
  %v37 = vld [vmem:[%s0 + $0x5c] sm:$0xf]
  %v38 = vld [vmem:[%s0 + $0x60] sm:$0xf]
  %v39 = vld [vmem:[%s0 + $0x64] sm:$0xf]
  %v40 = vld [vmem:[%s0 + $0x68] sm:$0xf]
  %v41 = vld [vmem:[%s0 + $0x6c] sm:$0xf]
  %v42 = vld [vmem:[%s0 + $0x70] sm:$0xf]
  %v43 = vld [vmem:[%s0 + $0x74] sm:$0xf]
  %v44 = vld [vmem:[%s0 + $0x78] sm:$0xf]
  %v45 = vld [vmem:[%s0 + $0x7c] sm:$0xf]
  %v46 = vld [vmem:[%s0 + $0x80] sm:$0xf]
  %v47 = vld [vmem:[%s0 + $0x84] sm:$0xf]
  %v48 = vld [vmem:[%s0 + $0x88] sm:$0xf]
  %v49 = vld [vmem:[%s0 + $0x8c] sm:$0xf]
  %v50 = vld [vmem:[%s0 + $0x90] sm:$0xf]
  %v51 = vld [vmem:[%s0 + $0x94] sm:$0xf]
  %v52 = vld [vmem:[%s0 + $0x98] sm:$0xf]
  %v53 = vld [vmem:[%s0 + $0x9c] sm:$0xf]
  %v54 = vld [vmem:[%s0 + $0xa0] sm:$0xf]
  %v55 = vld [vmem:[%s0 + $0xa4] sm:$0xf]
  %v56 = vld [vmem:[%s0 + $0xa8] sm:$0xf]
  %v57 = vld [vmem:[%s0 + $0xac] sm:$0xf]
  %v58 = vld [vmem:[%s0 + $0xb0] sm:$0xf]
  %v59 = vld [vmem:[%s0 + $0xb4] sm:$0xf]
  %v60 = vld [vmem:[%s0 + $0xb8] sm:$0xf]
  %v61 = vld [vmem:[%s0 + $0xbc] sm:$0xf]
  %v62 = vld [vmem:[%s0 + $0xc0] sm:$0xf]
  %v63 = vld [vmem:[%s0 + $0xc4] sm:$0xf]
  %v64 = vld [vmem:[%s0 + $0xc8] sm:$0xf]
  %v65 = vld [vmem:[%s0 + $0xcc] sm:$0xf]
  %v66 = vld [vmem:[%s0 + $0xd0] sm:$0xf]
  %v67 = vld [vmem:[%s0 + $0xd4] sm:$0xf]
  %v68 = vld [vmem:[%s0 + $0xd8] sm:$0xf]
  %v69 = vld [vmem:[%s0 + $0xdc] sm:$0xf]
  %v70 = vld [vmem:[%s0 + $0xe0] sm:$0xf]
  %v71 = vld [vmem:[%s0 + $0xe4] sm:$0xf]
  %v72 = vld [vmem:[%s0 + $0xe8] sm:$0xf]
  %v73 = vld [vmem:[%s0 + $0xec] sm:$0xf]
  %v74 = vld [vmem:[%s0 + $0xf0] sm:$0xf]
  %v75 = vld [vmem:[%s0 + $0xf4] sm:$0xf]
  %v76 = vld [vmem:[%s0 + $0xf8] sm:$0xf]
  %v77 = vld [vmem:[%s0 + $0xfc] sm:$0xf]
  %v78 = vunpack.c.l.bf16 %v14
  %v79 = vunpack.c.l.bf16 %v15
  %v80 = vunpack.c.l.bf16 %v16
  %v81 = vunpack.c.l.bf16 %v17
  %v82 = vunpack.c.l.bf16 %v18
  %v83 = vunpack.c.l.bf16 %v19
  %v84 = vunpack.c.l.bf16 %v20
  %v85 = vunpack.c.l.bf16 %v21
  %v86 = vunpack.c.l.bf16 %v22
  %v87 = vunpack.c.l.bf16 %v23
  %v88 = vunpack.c.l.bf16 %v24
  %v89 = vunpack.c.l.bf16 %v25
  %v90 = vunpack.c.l.bf16 %v26
  %v91 = vunpack.c.l.bf16 %v27
  %v92 = vunpack.c.l.bf16 %v28
  %v93 = vunpack.c.l.bf16 %v29
  %v94 = vunpack.c.l.bf16 %v30
  %v95 = vunpack.c.l.bf16 %v31
  %v96 = vunpack.c.l.bf16 %v32
  %v97 = vunpack.c.l.bf16 %v33
  %v98 = vunpack.c.l.bf16 %v34
  %v99 = vunpack.c.l.bf16 %v35
  %v100 = vunpack.c.l.bf16 %v36
  %v101 = vunpack.c.l.bf16 %v37
  %v102 = vunpack.c.l.bf16 %v38
  %v103 = vunpack.c.l.bf16 %v39
  %v104 = vunpack.c.l.bf16 %v40
  %v105 = vunpack.c.l.bf16 %v41
  %v106 = vunpack.c.l.bf16 %v42
  %v107 = vunpack.c.l.bf16 %v43
  %v108 = vunpack.c.l.bf16 %v44
  %v109 = vunpack.c.l.bf16 %v45
  %v110 = vunpack.c.l.bf16 %v46
  %v111 = vunpack.c.l.bf16 %v47
  %v112 = vunpack.c.l.bf16 %v48
  %v113 = vunpack.c.l.bf16 %v49
  %v114 = vunpack.c.l.bf16 %v50
  %v115 = vunpack.c.l.bf16 %v51
  %v116 = vunpack.c.l.bf16 %v52
  %v117 = vunpack.c.l.bf16 %v53
  %v118 = vunpack.c.l.bf16 %v54
  %v119 = vunpack.c.l.bf16 %v55
  %v120 = vunpack.c.l.bf16 %v56
  %v121 = vunpack.c.l.bf16 %v57
  %v122 = vunpack.c.l.bf16 %v58
  %v123 = vunpack.c.l.bf16 %v59
  %v124 = vunpack.c.l.bf16 %v60
  %v125 = vunpack.c.l.bf16 %v61
  %v126 = vunpack.c.l.bf16 %v62
  %v127 = vunpack.c.l.bf16 %v63
  %v128 = vunpack.c.l.bf16 %v64
  %v129 = vunpack.c.l.bf16 %v65
  %v130 = vunpack.c.l.bf16 %v66
  %v131 = vunpack.c.l.bf16 %v67
  %v132 = vunpack.c.l.bf16 %v68
  %v133 = vunpack.c.l.bf16 %v69
  %v134 = vunpack.c.l.bf16 %v70
  %v135 = vunpack.c.l.bf16 %v71
  %v136 = vunpack.c.l.bf16 %v72
  %v137 = vunpack.c.l.bf16 %v73
  %v138 = vunpack.c.l.bf16 %v74
  %v139 = vunpack.c.l.bf16 %v75
  %v140 = vunpack.c.l.bf16 %v76
  %v141 = vunpack.c.l.bf16 %v77
  %v142 = vld [vmem:[%s1] sm:$0x1]
  %v144 = vlaneseq
  %v145 = vshrl.u32 %v144, 7
  %v146 = vsub.s32 0, %v145
  %v147 = vrot.slane %v142, %v146
  %v149 = vmul.f32 %v78, %v147
  %v150 = vmul.f32 %v79, %v147
  %v151 = vmul.f32 %v80, %v147
  %v152 = vmul.f32 %v81, %v147
  %v153 = vmul.f32 %v82, %v147
  %v154 = vmul.f32 %v83, %v147
  %v155 = vmul.f32 %v84, %v147
  %v156 = vmul.f32 %v85, %v147
  %v157 = vmul.f32 %v86, %v147
  %v158 = vmul.f32 %v87, %v147
  %v159 = vmul.f32 %v88, %v147
  %v160 = vmul.f32 %v89, %v147
  %v161 = vmul.f32 %v90, %v147
  %v162 = vmul.f32 %v91, %v147
  %v163 = vmul.f32 %v92, %v147
  %v164 = vmul.f32 %v93, %v147
  %v165 = vmul.f32 %v94, %v147
  %v166 = vmul.f32 %v95, %v147
  %v167 = vmul.f32 %v96, %v147
  %v168 = vmul.f32 %v97, %v147
  %v169 = vmul.f32 %v98, %v147
  %v170 = vmul.f32 %v99, %v147
  %v171 = vmul.f32 %v100, %v147
  %v172 = vmul.f32 %v101, %v147
  %v173 = vmul.f32 %v102, %v147
  %v174 = vmul.f32 %v103, %v147
  %v175 = vmul.f32 %v104, %v147
  %v176 = vmul.f32 %v105, %v147
  %v177 = vmul.f32 %v106, %v147
  %v178 = vmul.f32 %v107, %v147
  %v179 = vmul.f32 %v108, %v147
  %v180 = vmul.f32 %v109, %v147
  %v181 = vmul.f32 %v110, %v147
  %v182 = vmul.f32 %v111, %v147
  %v183 = vmul.f32 %v112, %v147
  %v184 = vmul.f32 %v113, %v147
  %v185 = vmul.f32 %v114, %v147
  %v186 = vmul.f32 %v115, %v147
  %v187 = vmul.f32 %v116, %v147
  %v188 = vmul.f32 %v117, %v147
  %v189 = vmul.f32 %v118, %v147
  %v190 = vmul.f32 %v119, %v147
  %v191 = vmul.f32 %v120, %v147
  %v192 = vmul.f32 %v121, %v147
  %v193 = vmul.f32 %v122, %v147
  %v194 = vmul.f32 %v123, %v147
  %v195 = vmul.f32 %v124, %v147
  %v196 = vmul.f32 %v125, %v147
  %v197 = vmul.f32 %v126, %v147
  %v198 = vmul.f32 %v127, %v147
  %v199 = vmul.f32 %v128, %v147
  %v200 = vmul.f32 %v129, %v147
  %v201 = vmul.f32 %v130, %v147
  %v202 = vmul.f32 %v131, %v147
  %v203 = vmul.f32 %v132, %v147
  %v204 = vmul.f32 %v133, %v147
  %v205 = vmul.f32 %v134, %v147
  %v206 = vmul.f32 %v135, %v147
  %v207 = vmul.f32 %v136, %v147
  %v208 = vmul.f32 %v137, %v147
  %v209 = vmul.f32 %v138, %v147
  %v210 = vmul.f32 %v139, %v147
  %v211 = vmul.f32 %v140, %v147
  %v212 = vmul.f32 %v141, %v147
  %v213 = vld [vmem:[%s2] sm:$0x1]
  %v215 = vlaneseq
  %v216 = vshrl.u32 %v215, 7
  %v217 = vsub.s32 0, %v216
  %v218 = vrot.slane %v213, %v217
  %v220 = vadd.f32 %v149, %v218
  %v221 = vadd.f32 %v150, %v218
  %v222 = vadd.f32 %v151, %v218
  %v223 = vadd.f32 %v152, %v218
  %v224 = vadd.f32 %v153, %v218
  %v225 = vadd.f32 %v154, %v218
  %v226 = vadd.f32 %v155, %v218
  %v227 = vadd.f32 %v156, %v218
  %v228 = vadd.f32 %v157, %v218
  %v229 = vadd.f32 %v158, %v218
  %v230 = vadd.f32 %v159, %v218
  %v231 = vadd.f32 %v160, %v218
  %v232 = vadd.f32 %v161, %v218
  %v233 = vadd.f32 %v162, %v218
  %v234 = vadd.f32 %v163, %v218
  %v235 = vadd.f32 %v164, %v218
  %v236 = vadd.f32 %v165, %v218
  %v237 = vadd.f32 %v166, %v218
  %v238 = vadd.f32 %v167, %v218
  %v239 = vadd.f32 %v168, %v218
  %v240 = vadd.f32 %v169, %v218
  %v241 = vadd.f32 %v170, %v218
  %v242 = vadd.f32 %v171, %v218
  %v243 = vadd.f32 %v172, %v218
  %v244 = vadd.f32 %v173, %v218
  %v245 = vadd.f32 %v174, %v218
  %v246 = vadd.f32 %v175, %v218
  %v247 = vadd.f32 %v176, %v218
  %v248 = vadd.f32 %v177, %v218
  %v249 = vadd.f32 %v178, %v218
  %v250 = vadd.f32 %v179, %v218
  %v251 = vadd.f32 %v180, %v218
  %v252 = vadd.f32 %v181, %v218
  %v253 = vadd.f32 %v182, %v218
  %v254 = vadd.f32 %v183, %v218
  %v255 = vadd.f32 %v184, %v218
  %v256 = vadd.f32 %v185, %v218
  %v257 = vadd.f32 %v186, %v218
  %v258 = vadd.f32 %v187, %v218
  %v259 = vadd.f32 %v188, %v218
  %v260 = vadd.f32 %v189, %v218
  %v261 = vadd.f32 %v190, %v218
  %v262 = vadd.f32 %v191, %v218
  %v263 = vadd.f32 %v192, %v218
  %v264 = vadd.f32 %v193, %v218
  %v265 = vadd.f32 %v194, %v218
  %v266 = vadd.f32 %v195, %v218
  %v267 = vadd.f32 %v196, %v218
  %v268 = vadd.f32 %v197, %v218
  %v269 = vadd.f32 %v198, %v218
  %v270 = vadd.f32 %v199, %v218
  %v271 = vadd.f32 %v200, %v218
  %v272 = vadd.f32 %v201, %v218
  %v273 = vadd.f32 %v202, %v218
  %v274 = vadd.f32 %v203, %v218
  %v275 = vadd.f32 %v204, %v218
  %v276 = vadd.f32 %v205, %v218
  %v277 = vadd.f32 %v206, %v218
  %v278 = vadd.f32 %v207, %v218
  %v279 = vadd.f32 %v208, %v218
  %v280 = vadd.f32 %v209, %v218
  %v281 = vadd.f32 %v210, %v218
  %v282 = vadd.f32 %v211, %v218
  %v283 = vadd.f32 %v212, %v218
  %v284 = vmax.f32 %v220, 0.0
  %v285 = vmax.f32 %v221, 0.0
  %v286 = vmax.f32 %v222, 0.0
  %v287 = vmax.f32 %v223, 0.0
  %v288 = vmax.f32 %v224, 0.0
  %v289 = vmax.f32 %v225, 0.0
  %v290 = vmax.f32 %v226, 0.0
  %v291 = vmax.f32 %v227, 0.0
  %v292 = vmax.f32 %v228, 0.0
  %v293 = vmax.f32 %v229, 0.0
  %v294 = vmax.f32 %v230, 0.0
  %v295 = vmax.f32 %v231, 0.0
  %v296 = vmax.f32 %v232, 0.0
  %v297 = vmax.f32 %v233, 0.0
  %v298 = vmax.f32 %v234, 0.0
  %v299 = vmax.f32 %v235, 0.0
  %v300 = vmax.f32 %v236, 0.0
  %v301 = vmax.f32 %v237, 0.0
  %v302 = vmax.f32 %v238, 0.0
  %v303 = vmax.f32 %v239, 0.0
  %v304 = vmax.f32 %v240, 0.0
  %v305 = vmax.f32 %v241, 0.0
  %v306 = vmax.f32 %v242, 0.0
  %v307 = vmax.f32 %v243, 0.0
  %v308 = vmax.f32 %v244, 0.0
  %v309 = vmax.f32 %v245, 0.0
  %v310 = vmax.f32 %v246, 0.0
  %v311 = vmax.f32 %v247, 0.0
  %v312 = vmax.f32 %v248, 0.0
  %v313 = vmax.f32 %v249, 0.0
  %v314 = vmax.f32 %v250, 0.0
  %v315 = vmax.f32 %v251, 0.0
  %v316 = vmax.f32 %v252, 0.0
  %v317 = vmax.f32 %v253, 0.0
  %v318 = vmax.f32 %v254, 0.0
  %v319 = vmax.f32 %v255, 0.0
  %v320 = vmax.f32 %v256, 0.0
  %v321 = vmax.f32 %v257, 0.0
  %v322 = vmax.f32 %v258, 0.0
  %v323 = vmax.f32 %v259, 0.0
  %v324 = vmax.f32 %v260, 0.0
  %v325 = vmax.f32 %v261, 0.0
  %v326 = vmax.f32 %v262, 0.0
  %v327 = vmax.f32 %v263, 0.0
  %v328 = vmax.f32 %v264, 0.0
  %v329 = vmax.f32 %v265, 0.0
  %v330 = vmax.f32 %v266, 0.0
  %v331 = vmax.f32 %v267, 0.0
  %v332 = vmax.f32 %v268, 0.0
  %v333 = vmax.f32 %v269, 0.0
  %v334 = vmax.f32 %v270, 0.0
  %v335 = vmax.f32 %v271, 0.0
  %v336 = vmax.f32 %v272, 0.0
  %v337 = vmax.f32 %v273, 0.0
  %v338 = vmax.f32 %v274, 0.0
  %v339 = vmax.f32 %v275, 0.0
  %v340 = vmax.f32 %v276, 0.0
  %v341 = vmax.f32 %v277, 0.0
  %v342 = vmax.f32 %v278, 0.0
  %v343 = vmax.f32 %v279, 0.0
  %v344 = vmax.f32 %v280, 0.0
  %v345 = vmax.f32 %v281, 0.0
  %v346 = vmax.f32 %v282, 0.0
  %v347 = vmax.f32 %v283, 0.0
  %348 = vst [vmem:[%s3] sm:$0xff] %v284
  %349 = vst [vmem:[%s3 + $0x8] sm:$0xff] %v285
  %350 = vst [vmem:[%s3 + $0x10] sm:$0xff] %v286
  %351 = vst [vmem:[%s3 + $0x18] sm:$0xff] %v287
  %352 = vst [vmem:[%s3 + $0x20] sm:$0xff] %v288
  %353 = vst [vmem:[%s3 + $0x28] sm:$0xff] %v289
  %354 = vst [vmem:[%s3 + $0x30] sm:$0xff] %v290
  %355 = vst [vmem:[%s3 + $0x38] sm:$0xff] %v291
  %356 = vst [vmem:[%s3 + $0x40] sm:$0xff] %v292
  %357 = vst [vmem:[%s3 + $0x48] sm:$0xff] %v293
  %358 = vst [vmem:[%s3 + $0x50] sm:$0xff] %v294
  %359 = vst [vmem:[%s3 + $0x58] sm:$0xff] %v295
  %360 = vst [vmem:[%s3 + $0x60] sm:$0xff] %v296
  %361 = vst [vmem:[%s3 + $0x68] sm:$0xff] %v297
  %362 = vst [vmem:[%s3 + $0x70] sm:$0xff] %v298
  %363 = vst [vmem:[%s3 + $0x78] sm:$0xff] %v299
  %364 = vst [vmem:[%s3 + $0x80] sm:$0xff] %v300
  %365 = vst [vmem:[%s3 + $0x88] sm:$0xff] %v301
  %366 = vst [vmem:[%s3 + $0x90] sm:$0xff] %v302
  %367 = vst [vmem:[%s3 + $0x98] sm:$0xff] %v303
  %368 = vst [vmem:[%s3 + $0xa0] sm:$0xff] %v304
  %369 = vst [vmem:[%s3 + $0xa8] sm:$0xff] %v305
  %370 = vst [vmem:[%s3 + $0xb0] sm:$0xff] %v306
  %371 = vst [vmem:[%s3 + $0xb8] sm:$0xff] %v307
  %372 = vst [vmem:[%s3 + $0xc0] sm:$0xff] %v308
  %373 = vst [vmem:[%s3 + $0xc8] sm:$0xff] %v309
  %374 = vst [vmem:[%s3 + $0xd0] sm:$0xff] %v310
  %375 = vst [vmem:[%s3 + $0xd8] sm:$0xff] %v311
  %376 = vst [vmem:[%s3 + $0xe0] sm:$0xff] %v312
  %377 = vst [vmem:[%s3 + $0xe8] sm:$0xff] %v313
  %378 = vst [vmem:[%s3 + $0xf0] sm:$0xff] %v314
  %379 = vst [vmem:[%s3 + $0xf8] sm:$0xff] %v315
  %380 = vst [vmem:[%s3 + $0x100] sm:$0xff] %v316
  %381 = vst [vmem:[%s3 + $0x108] sm:$0xff] %v317
  %382 = vst [vmem:[%s3 + $0x110] sm:$0xff] %v318
  %383 = vst [vmem:[%s3 + $0x118] sm:$0xff] %v319
  %384 = vst [vmem:[%s3 + $0x120] sm:$0xff] %v320
  %385 = vst [vmem:[%s3 + $0x128] sm:$0xff] %v321
  %386 = vst [vmem:[%s3 + $0x130] sm:$0xff] %v322
  %387 = vst [vmem:[%s3 + $0x138] sm:$0xff] %v323
  %388 = vst [vmem:[%s3 + $0x140] sm:$0xff] %v324
  %389 = vst [vmem:[%s3 + $0x148] sm:$0xff] %v325
  %390 = vst [vmem:[%s3 + $0x150] sm:$0xff] %v326
  %391 = vst [vmem:[%s3 + $0x158] sm:$0xff] %v327
  %392 = vst [vmem:[%s3 + $0x160] sm:$0xff] %v328
  %393 = vst [vmem:[%s3 + $0x168] sm:$0xff] %v329
  %394 = vst [vmem:[%s3 + $0x170] sm:$0xff] %v330
  %395 = vst [vmem:[%s3 + $0x178] sm:$0xff] %v331
  %396 = vst [vmem:[%s3 + $0x180] sm:$0xff] %v332
  %397 = vst [vmem:[%s3 + $0x188] sm:$0xff] %v333
  %398 = vst [vmem:[%s3 + $0x190] sm:$0xff] %v334
  %399 = vst [vmem:[%s3 + $0x198] sm:$0xff] %v335
  %400 = vst [vmem:[%s3 + $0x1a0] sm:$0xff] %v336
  %401 = vst [vmem:[%s3 + $0x1a8] sm:$0xff] %v337
  %402 = vst [vmem:[%s3 + $0x1b0] sm:$0xff] %v338
  %403 = vst [vmem:[%s3 + $0x1b8] sm:$0xff] %v339
  %404 = vst [vmem:[%s3 + $0x1c0] sm:$0xff] %v340
  %405 = vst [vmem:[%s3 + $0x1c8] sm:$0xff] %v341
  %406 = vst [vmem:[%s3 + $0x1d0] sm:$0xff] %v342
  %407 = vst [vmem:[%s3 + $0x1d8] sm:$0xff] %v343
  %408 = vst [vmem:[%s3 + $0x1e0] sm:$0xff] %v344
  %409 = vst [vmem:[%s3 + $0x1e8] sm:$0xff] %v345
  %410 = vst [vmem:[%s3 + $0x1f0] sm:$0xff] %v346
  %411 = vst [vmem:[%s3 + $0x1f8] sm:$0xff] %v347
  // Predicated region
  $region14: #{double_conv_forward.5} parent=0 // pred_check
    _
  $region15: #{double_conv_forward.5} parent=0 // pred_check_branch
    %413 = sbr.rel (0) target = $region17
  $region16: #{double_conv_forward.5} parent=0 // pred_region
    _
  $region17: #{double_conv_forward.5} parent=0 // pred_fallthru
    _
  // Predicated region
  $region18: #{double_conv_forward.5} parent=0 // pred_check
    _
  $region19: #{double_conv_forward.5} parent=0 // pred_check_branch
    %415 = sbr.rel (0) target = $region21
  $region20: #{double_conv_forward.5} parent=0 // pred_region
    _
  $region21: #{double_conv_forward.5} parent=0 // pred_fallthru
    _

// kernel: double_conv_forward.3
$region0: #{double_conv_forward.3}
  #allocation0 [shape = 'u32[]', space=smem, size = 0x4, offset = 0x4, fixed_abs, tag = 'smem constant byte address 0x4 - core index']
  #allocation1 [shape = 'u32[144,128]{1,0:T(1,128)}', space=vmem, size = 0x12000, scoped, tag = 'internal scratch']
  %s0 = inlined_call_operand.vmem [shape: bf16[2,2,10,18,128], index: 0, kind: input, shape index: {}]
  %s1 = inlined_call_operand.vmem [shape: f32[1,128], index: 1, kind: input, shape index: {}, may-alias: {1,2}]
  %s2 = inlined_call_operand.vmem [shape: f32[1,128], index: 2, kind: input, shape index: {}, may-alias: {1,2}]
  %s3 = inlined_call_operand.vmem [shape: bf16[3,3,128,128], index: 3, kind: input, shape index: {}]
  %s4 = inlined_call_operand.vmem [shape: bf16[2,16,16,128], index: 4, kind: output, shape index: {0}]
  %s5 = inlined_call_operand.vmem [shape: f32[2,2,2,128], index: 5, kind: output, shape index: {1}]
  %6 = xla_tuple %s4, %s5
  %s7 = sld [smem:[#allocation0]]
  $region57: #{double_conv_forward.3} parent=0
    _
  %s9 = ssub.s32 1, %s7
  %s10 = scalar_select 0, %s9, %s7
  loop: start=0, step=1, limit=6
  $region2: #{double_conv_forward.3} parent=0 // loop_pre_header
    _
  $region3: #{double_conv_forward.3} parent=0 // loop_header
    %s12 = sphi 0, %s16
    %p13 = scmp.ge.s32.totalorder %s12, 6
    %s19 = sphi 0, %s31
    %s20 = sphi 0, %s27
    %s21 = sphi 0, %s19
    %s22 = sphi 0, %s20
    %s23 = sphi 0, %s21
    %s24 = sphi 0, %s22
    %s36 = sphi 0, %s38
    %s39 = sphi 0, %s36
    %s40 = sphi 0, %s39
    %s56 = sphi 0, %s40
    %s60 = sphi 0, %s60
    %s62 = sphi 0, %s60
    %s63 = sphi 0, %s62
    %s77 = sphi 0, %s63
    %s81 = sphi 0, %s81
    %s83 = sphi 0, %s81
    %s84 = sphi 0, %s83
    %s98 = sphi 0, %s84
    %s102 = sphi 0, %s102
    %s104 = sphi 0, %s102
    %s105 = sphi 0, %s104
    %s119 = sphi 0, %s105
    %s127 = sphi 0, %s129
    %s130 = sphi 0, %s127
    %s131 = sphi 0, %s130
    %s147 = sphi 0, %s131
    %s155 = sphi 0, %s157
    %s158 = sphi 0, %s155
    %s159 = sphi 0, %s158
    %s175 = sphi 0, %s159
  $region4: #{double_conv_forward.3} parent=0 // loop_header_branch
    %15 = sbr.rel (%p13) target = $region8
  $region5: #{double_conv_forward.3} parent=0 // loop_body
    %s17 = ssub.s32 %s12, 1
    %s18 = ssub.s32 %s12, 2
    %s25 = sadd.s32 1, %s20
    %p26 = scmp.ge.s32.totalorder %s25, 2
    %s27 = scalar_select %p26, 0, %s25
    %s28 = sadd.s32 1, %s19
    %s29 = scalar_select %p26, %s28, %s19
    %p30 = scmp.ge.s32.totalorder %s29, 2
    %s31 = scalar_select %p30, 0, %s29
    %s32 = ssub.s32 %s19, %s31
    %s33 = ssub.s32 %s20, %s27
    %s34 = sor.u32 %s32, %s33
    %p35 = scmp.eq.s32.totalorder %s34, 0
    %s37 = sadd.s32 %s36, 1
    %s38 = scalar_select %p35, %s36, %s37
    %p41 = pneg %p35
    %p42 = scmp.eq.s32.totalorder %s12, 3
    %p43 = por %p41, %p42
    %p44 = scmp.ne.s32.totalorder %s36, %s39
    %p45 = scmp.eq.s32.totalorder %s12, 0
    %p46 = por %p44, %p45
    %p47 = scmp.ne.s32.totalorder %s36, %s39
    %p48 = scmp.eq.s32.totalorder %s17, 3
    %p49 = por %p47, %p48
    %p50 = scmp.ne.s32.totalorder %s39, %s40
    %p51 = scmp.eq.s32.totalorder %s17, 0
    %p52 = por %p50, %p51
    %p53 = scmp.ne.s32.totalorder %s39, %s40
    %p54 = scmp.eq.s32.totalorder %s18, 3
    %p55 = por %p53, %p54
    %p57 = scmp.ne.s32.totalorder %s40, %s56
    %p58 = scmp.eq.s32.totalorder %s18, 0
    %p59 = por %p57, %p58
    %s61 = sadd.s32 %s60, 1
    %p64 = scmp.eq.s32.totalorder %s12, 3
    %p65 = scmp.ne.s32.totalorder %s60, %s62
    %p66 = scmp.eq.s32.totalorder %s12, 0
    %p67 = por %p65, %p66
    %p68 = scmp.ne.s32.totalorder %s60, %s62
    %p69 = scmp.eq.s32.totalorder %s17, 3
    %p70 = por %p68, %p69
    %p71 = scmp.ne.s32.totalorder %s62, %s63
    %p72 = scmp.eq.s32.totalorder %s17, 0
    %p73 = por %p71, %p72
    %p74 = scmp.ne.s32.totalorder %s62, %s63
    %p75 = scmp.eq.s32.totalorder %s18, 3
    %p76 = por %p74, %p75
    %p78 = scmp.ne.s32.totalorder %s63, %s77
    %p79 = scmp.eq.s32.totalorder %s18, 0
    %p80 = por %p78, %p79
    %s82 = sadd.s32 %s81, 1
    %p85 = scmp.eq.s32.totalorder %s12, 3
    %p86 = scmp.ne.s32.totalorder %s81, %s83
    %p87 = scmp.eq.s32.totalorder %s12, 0
    %p88 = por %p86, %p87
    %p89 = scmp.ne.s32.totalorder %s81, %s83
    %p90 = scmp.eq.s32.totalorder %s17, 3
    %p91 = por %p89, %p90
    %p92 = scmp.ne.s32.totalorder %s83, %s84
    %p93 = scmp.eq.s32.totalorder %s17, 0
    %p94 = por %p92, %p93
    %p95 = scmp.ne.s32.totalorder %s83, %s84
    %p96 = scmp.eq.s32.totalorder %s18, 3
    %p97 = por %p95, %p96
    %p99 = scmp.ne.s32.totalorder %s84, %s98
    %p100 = scmp.eq.s32.totalorder %s18, 0
    %p101 = por %p99, %p100
    %s103 = sadd.s32 %s102, 1
    %p106 = scmp.eq.s32.totalorder %s12, 3
    %p107 = scmp.ne.s32.totalorder %s102, %s104
    %p108 = scmp.eq.s32.totalorder %s12, 0
    %p109 = por %p107, %p108
    %p110 = scmp.ne.s32.totalorder %s102, %s104
    %p111 = scmp.eq.s32.totalorder %s17, 3
    %p112 = por %p110, %p111
    %p113 = scmp.ne.s32.totalorder %s104, %s105
    %p114 = scmp.eq.s32.totalorder %s17, 0
    %p115 = por %p113, %p114
    %p116 = scmp.ne.s32.totalorder %s104, %s105
    %p117 = scmp.eq.s32.totalorder %s18, 3
    %p118 = por %p116, %p117
    %p120 = scmp.ne.s32.totalorder %s105, %s119
    %p121 = scmp.eq.s32.totalorder %s18, 0
    %p122 = por %p120, %p121
    %s123 = ssub.s32 %s19, %s31
    %s124 = ssub.s32 %s20, %s27
    %s125 = sor.u32 %s123, %s124
    %p126 = scmp.eq.s32.totalorder %s125, 0
    %s128 = sadd.s32 %s127, 1
    %s129 = scalar_select %p126, %s127, %s128
    %p132 = pneg %p126
    %p133 = scmp.eq.s32.totalorder %s12, 3
    %p134 = por %p132, %p133
    %p135 = scmp.ne.s32.totalorder %s127, %s130
    %p136 = scmp.eq.s32.totalorder %s12, 0
    %p137 = por %p135, %p136
    %p138 = scmp.ne.s32.totalorder %s127, %s130
    %p139 = scmp.eq.s32.totalorder %s17, 3
    %p140 = por %p138, %p139
    %p141 = scmp.ne.s32.totalorder %s130, %s131
    %p142 = scmp.eq.s32.totalorder %s17, 0
    %p143 = por %p141, %p142
    %p144 = scmp.ne.s32.totalorder %s130, %s131
    %p145 = scmp.eq.s32.totalorder %s18, 3
    %p146 = por %p144, %p145
    %p148 = scmp.ne.s32.totalorder %s131, %s147
    %p149 = scmp.eq.s32.totalorder %s18, 0
    %p150 = por %p148, %p149
    %s151 = ssub.s32 %s19, %s31
    %s152 = ssub.s32 %s20, %s27
    %s153 = sor.u32 %s151, %s152
    %p154 = scmp.eq.s32.totalorder %s153, 0
    %s156 = sadd.s32 %s155, 1
    %s157 = scalar_select %p154, %s155, %s156
    %p160 = pneg %p154
    %p161 = scmp.eq.s32.totalorder %s12, 3
    %p162 = por %p160, %p161
    %p163 = scmp.ne.s32.totalorder %s155, %s158
    %p164 = scmp.eq.s32.totalorder %s12, 0
    %p165 = por %p163, %p164
    %p166 = scmp.ne.s32.totalorder %s155, %s158
    %p167 = scmp.eq.s32.totalorder %s17, 3
    %p168 = por %p166, %p167
    %p169 = scmp.ne.s32.totalorder %s158, %s159
    %p170 = scmp.eq.s32.totalorder %s17, 0
    %p171 = por %p169, %p170
    %p172 = scmp.ne.s32.totalorder %s158, %s159
    %p173 = scmp.eq.s32.totalorder %s18, 3
    %p174 = por %p172, %p173
    %p176 = scmp.ne.s32.totalorder %s159, %s175
    %p177 = scmp.eq.s32.totalorder %s18, 0
    %p178 = por %p176, %p177
    %p179 = scmp.le.s32.totalorder 1, %s12
    %p180 = scmp.lt.s32.totalorder %s12, 5
    %p181 = pnand %p179, %p180
    %p182 = pneg %p181
    // Predicated region
    $region9: #{double_conv_forward.3} parent=5 // pred_check
      _
    $region10: #{double_conv_forward.3} parent=5 // pred_check_branch
      %184 = sbr.rel (%p181) target = $region12
    $region11: #{double_conv_forward.3} parent=5 // pred_region
      %s185 = ssub.s32 %s12, 1
      // Predicated region
      $region13: #{double_conv_forward.3} parent=11 // pred_check
        %p186 = pneg %p73
      $region14: #{double_conv_forward.3} parent=11 // pred_check_branch
        %188 = sbr.rel (%p186) target = $region16
      $region15: #{double_conv_forward.3} parent=11 // pred_region
        _
      $region16: #{double_conv_forward.3} parent=11 // pred_fallthru
        _
      // Predicated region
      $region17: #{double_conv_forward.3} parent=11 // pred_check
        %p189 = pneg %p94
      $region18: #{double_conv_forward.3} parent=11 // pred_check_branch
        %191 = sbr.rel (%p189) target = $region20
      $region19: #{double_conv_forward.3} parent=11 // pred_region
        _
      $region20: #{double_conv_forward.3} parent=11 // pred_fallthru
        _
      // Predicated region
      $region21: #{double_conv_forward.3} parent=11 // pred_check
        %p192 = pneg %p115
      $region22: #{double_conv_forward.3} parent=11 // pred_check_branch
        %194 = sbr.rel (%p192) target = $region24
      $region23: #{double_conv_forward.3} parent=11 // pred_region
        _
      $region24: #{double_conv_forward.3} parent=11 // pred_fallthru
        _
    $region12: #{double_conv_forward.3} parent=5 // pred_fallthru
      _
    %p195 = scmp.lt.s32.totalorder %s12, 4
    // Predicated region
    $region25: #{double_conv_forward.3} parent=5 // pred_check
      %p196 = pneg %p195
    $region26: #{double_conv_forward.3} parent=5 // pred_check_branch
      %198 = sbr.rel (%p196) target = $region28
    $region27: #{double_conv_forward.3} parent=5 // pred_region
      // Predicated region
      $region29: #{double_conv_forward.3} parent=27 // pred_check
        %p199 = pneg %p46
      $region30: #{double_conv_forward.3} parent=27 // pred_check_branch
        %201 = sbr.rel (%p199) target = $region32
      $region31: #{double_conv_forward.3} parent=27 // pred_region
        %p202 = scmp.lt.s32.totalorder %s19, 1
        %s203 = scalar_select %p202, %s19, 1
        %p204 = scmp.lt.s32.totalorder %s20, 1
        %s205 = scalar_select %p204, %s20, 1
        %s206 = smul.addr %s205, 30
        %s207 = smul.addr %s203, 60
        %s208 = sadd.s32 %s206, %s207
        %s209 = smul.addr %s208, 4
        %s210 = scalar_lea.vmem %s0, %s209
      $region32: #{double_conv_forward.3} parent=27 // pred_fallthru
        _
    $region28: #{double_conv_forward.3} parent=5 // pred_fallthru
      _
    %p211 = scmp.le.s32.totalorder 1, %s12
    %p212 = scmp.lt.s32.totalorder %s12, 5
    %p213 = pnand %p211, %p212
    %p214 = pneg %p213
    // Predicated region
    $region33: #{double_conv_forward.3} parent=5 // pred_check
      _
    $region34: #{double_conv_forward.3} parent=5 // pred_check_branch
      %216 = sbr.rel (%p213) target = $region36
    $region35: #{double_conv_forward.3} parent=5 // pred_region
      %s217 = ssub.s32 %s12, 1
      %p218 = scmp.lt.s32.totalorder %s21, 1
      %s219 = scalar_select %p218, %s21, 1
      %p220 = scmp.lt.s32.totalorder %s22, 1
      %s221 = scalar_select %p220, %s22, 1
      %s222 = smul.addr %s221, 30
      %s223 = smul.addr %s219, 60
      %s224 = sadd.s32 %s222, %s223
      %s225 = smul.addr %s224, 4
      %s226 = scalar_lea.vmem %s0, %s225
      %p227 = pneg %p52
      %p228 = pneg %p49
      %p229 = pneg %p73
      %p230 = pneg %p70
      %p231 = pneg %p94
      %p232 = pneg %p91
      %p233 = pneg %p115
      %p234 = pneg %p112
      %p235 = pneg %p143
      %p236 = pneg %p140
      %s237 = smul.u32 8, %s22
      %p238 = scmp.lt.s32.totalorder %s21, 1
      %s239 = scalar_select %p238, %s21, 1
      %p240 = scmp.lt.s32.totalorder %s237, 15
      %s241 = scalar_select %p240, %s237, 15
      %s242 = smul.addr %s241, 2
      %s243 = smul.addr %s239, 32
      %s244 = sadd.s32 %s242, %s243
      %s245 = smul.addr %s244, 4
      %s246 = scalar_lea.vmem %s4, %s245
      %p247 = pneg %p171
      %p248 = pneg %p168
      %p249 = scmp.lt.s32.totalorder %s21, 1
      %s250 = scalar_select %p249, %s21, 1
      %p251 = scmp.lt.s32.totalorder %s22, 1
      %s252 = scalar_select %p251, %s22, 1
      %s253 = smul.addr %s250, 2
      %s254 = sadd.s32 %s252, %s253
      %s255 = smul.addr %s254, 2
      %s256 = scalar_lea.vmem %s5, %s255
      %p257 = scmp.lt.s32.totalorder %s21, 1
      %s258 = scalar_select %p257, %s21, 1
      %p259 = scmp.lt.s32.totalorder %s22, 1
      %s260 = scalar_select %p259, %s22, 1
      %s261 = smul.addr %s260, 30
      %s262 = smul.addr %s258, 60
      %s263 = sadd.s32 %s261, %s262
      %s264 = smul.addr %s263, 4
      %s265 = scalar_lea.vmem %s0, %s264
      %s266 = smul.u32 8, %s22
      %p267 = scmp.lt.s32.totalorder %s21, 1
      %s268 = scalar_select %p267, %s21, 1
      %p269 = scmp.lt.s32.totalorder %s266, 15
      %s270 = scalar_select %p269, %s266, 15
      %s271 = smul.addr %s270, 2
      %s272 = smul.addr %s268, 32
      %s273 = sadd.s32 %s271, %s272
      %s274 = smul.addr %s273, 4
      %s275 = scalar_lea.vmem %s4, %s274
      %s276 = smul.u32 8, %s22
      %p277 = scmp.lt.s32.totalorder %s21, 1
      %s278 = scalar_select %p277, %s21, 1
      %p279 = scmp.lt.s32.totalorder %s22, 1
      %s280 = scalar_select %p279, %s22, 1
      %s281 = smul.addr %s278, 2
      %s282 = sadd.s32 %s280, %s281
      %s283 = smul.addr %s282, 2
      %s284 = scalar_lea.vmem %s5, %s283
      %v286 = vld [vmem:[%s265] sm:$0xf]
      %v287 = vld [vmem:[%s265 + $0x4] sm:$0xf]
      %v288 = vld [vmem:[%s265 + $0x8] sm:$0x1]
      %v289 = vld [vmem:[%s265 + $0xc] sm:$0xf]
      %v290 = vld [vmem:[%s265 + $0x10] sm:$0xf]
      %v291 = vld [vmem:[%s265 + $0x14] sm:$0x1]
      %v292 = vld [vmem:[%s265 + $0x18] sm:$0xf]
      %v293 = vld [vmem:[%s265 + $0x1c] sm:$0xf]
      %v294 = vld [vmem:[%s265 + $0x20] sm:$0x1]
      %v295 = vld [vmem:[%s265 + $0x24] sm:$0xf]
      %v296 = vld [vmem:[%s265 + $0x28] sm:$0xf]
      %v297 = vld [vmem:[%s265 + $0x2c] sm:$0x1]
      %v298 = vld [vmem:[%s265 + $0x30] sm:$0xf]
      %v299 = vld [vmem:[%s265 + $0x34] sm:$0xf]
      %v300 = vld [vmem:[%s265 + $0x38] sm:$0x1]
      %v301 = vld [vmem:[%s265 + $0x3c] sm:$0xf]
      %v302 = vld [vmem:[%s265 + $0x40] sm:$0xf]
      %v303 = vld [vmem:[%s265 + $0x44] sm:$0x1]
      %v304 = vld [vmem:[%s265 + $0x48] sm:$0xf]
      %v305 = vld [vmem:[%s265 + $0x4c] sm:$0xf]
      %v306 = vld [vmem:[%s265 + $0x50] sm:$0x1]
      %v307 = vld [vmem:[%s265 + $0x54] sm:$0xf]
      %v308 = vld [vmem:[%s265 + $0x58] sm:$0xf]
      %v309 = vld [vmem:[%s265 + $0x5c] sm:$0x1]
      %v310 = vld [vmem:[%s265 + $0x60] sm:$0xf]
      %v311 = vld [vmem:[%s265 + $0x64] sm:$0xf]
      %v312 = vld [vmem:[%s265 + $0x68] sm:$0x1]
      %v313 = vld [vmem:[%s265 + $0x6c] sm:$0xf]
      %v314 = vld [vmem:[%s265 + $0x70] sm:$0xf]
      %v315 = vld [vmem:[%s265 + $0x74] sm:$0x1]
      %v316 = vld [vmem:[%s3] sm:$0xf]
      %v317 = vld [vmem:[%s3 + $0x4] sm:$0xf]
      %v318 = vld [vmem:[%s3 + $0x8] sm:$0xf]
      %v319 = vld [vmem:[%s3 + $0xc] sm:$0xf]
      %v320 = vld [vmem:[%s3 + $0x10] sm:$0xf]
      %v321 = vld [vmem:[%s3 + $0x14] sm:$0xf]
      %v322 = vld [vmem:[%s3 + $0x18] sm:$0xf]
      %v323 = vld [vmem:[%s3 + $0x1c] sm:$0xf]
      %v324 = vld [vmem:[%s3 + $0x20] sm:$0xf]
      %v325 = vld [vmem:[%s3 + $0x24] sm:$0xf]
      %v326 = vld [vmem:[%s3 + $0x28] sm:$0xf]
      %v327 = vld [vmem:[%s3 + $0x2c] sm:$0xf]
      %v328 = vld [vmem:[%s3 + $0x30] sm:$0xf]
      %v329 = vld [vmem:[%s3 + $0x34] sm:$0xf]
      %v330 = vld [vmem:[%s3 + $0x38] sm:$0xf]
      %v331 = vld [vmem:[%s3 + $0x3c] sm:$0xf]
      %s332 = scalar_lea.vmem %s3, 192
      %v333 = vld [vmem:[%s332] sm:$0xf]
      %v334 = vld [vmem:[%s332 + $0x4] sm:$0xf]
      %v335 = vld [vmem:[%s332 + $0x8] sm:$0xf]
      %v336 = vld [vmem:[%s332 + $0xc] sm:$0xf]
      %v337 = vld [vmem:[%s332 + $0x10] sm:$0xf]
      %v338 = vld [vmem:[%s332 + $0x14] sm:$0xf]
      %v339 = vld [vmem:[%s332 + $0x18] sm:$0xf]
      %v340 = vld [vmem:[%s332 + $0x1c] sm:$0xf]
      %v341 = vld [vmem:[%s332 + $0x20] sm:$0xf]
      %v342 = vld [vmem:[%s332 + $0x24] sm:$0xf]
      %v343 = vld [vmem:[%s332 + $0x28] sm:$0xf]
      %v344 = vld [vmem:[%s332 + $0x2c] sm:$0xf]
      %v345 = vld [vmem:[%s332 + $0x30] sm:$0xf]
      %v346 = vld [vmem:[%s332 + $0x34] sm:$0xf]
      %v347 = vld [vmem:[%s332 + $0x38] sm:$0xf]
      %v348 = vld [vmem:[%s332 + $0x3c] sm:$0xf]
      %v365 = vunpack.c.l.b16 %v289
      %v366 = vunpack.c.l.b16 %v290
      %v367 = vunpack.c.l.b16 %v292
      %v368 = vunpack.c.l.b16 %v293
      %v369 = vunpack.c.l.b16 %v295
      %v370 = vunpack.c.l.b16 %v296
      %v371 = vunpack.c.l.b16 %v298
      %v372 = vunpack.c.l.b16 %v299
      %v373 = vunpack.c.l.b16 %v301
      %v374 = vunpack.c.l.b16 %v302
      %v375 = vunpack.c.l.b16 %v304
      %v376 = vunpack.c.l.b16 %v305
      %v377 = vunpack.c.l.b16 %v307
      %v378 = vunpack.c.l.b16 %v308
      %v379 = vunpack.c.l.b16 %v310
      %v380 = vunpack.c.l.b16 %v311
      %v381 = vpack.c.b16 %v366, %v365
      %v382 = vpack.c.b16 %v368, %v367
      %v383 = vpack.c.b16 %v370, %v369
      %v384 = vpack.c.b16 %v372, %v371
      %v385 = vpack.c.b16 %v374, %v373
      %v386 = vpack.c.b16 %v376, %v375
      %v387 = vpack.c.b16 %v378, %v377
      %v388 = vpack.c.b16 %v380, %v379
      %v413 = vunpack.c.l.b16 %v333
      %v414 = vunpack.c.l.b16 %v334
      %v415 = vunpack.c.l.b16 %v335
      %v416 = vunpack.c.l.b16 %v336
      %v417 = vunpack.c.l.b16 %v337
      %v418 = vunpack.c.l.b16 %v338
      %v419 = vunpack.c.l.b16 %v339
      %v420 = vunpack.c.l.b16 %v340
      %v421 = vunpack.c.l.b16 %v341
      %v422 = vunpack.c.l.b16 %v342
      %v423 = vunpack.c.l.b16 %v343
      %v424 = vunpack.c.l.b16 %v344
      %v425 = vunpack.c.l.b16 %v345
      %v426 = vunpack.c.l.b16 %v346
      %v427 = vunpack.c.l.b16 %v347
      %v428 = vunpack.c.l.b16 %v348
      %v429 = vpack.c.b16 %v414, %v413
      %v430 = vpack.c.b16 %v416, %v415
      %v431 = vpack.c.b16 %v418, %v417
      %v432 = vpack.c.b16 %v420, %v419
      %v433 = vpack.c.b16 %v422, %v421
      %v434 = vpack.c.b16 %v424, %v423
      %v435 = vpack.c.b16 %v426, %v425
      %v436 = vpack.c.b16 %v428, %v427
      %445 = vmatprep.subr.bf16.mxu0 0
      %446 = vmatpush1.bf16.msra.mxu0 %v436
      %447 = vmatprep.subr.bf16.mxu0 0
      %448 = vmatpush1.bf16.msra.mxu0 %v435
      %449 = vmatprep.subr.bf16.mxu0 0
      %450 = vmatpush1.bf16.msra.mxu0 %v434
      %451 = vmatprep.subr.bf16.mxu0 0
      %452 = vmatpush1.bf16.msra.mxu0 %v433
      %453 = vmatprep.subr.bf16.mxu0 0
      %454 = vmatpush1.bf16.msra.mxu0 %v432
      %455 = vmatprep.subr.bf16.mxu0 0
      %456 = vmatpush1.bf16.msra.mxu0 %v431
      %457 = vmatprep.subr.bf16.mxu0 0
      %458 = vmatpush1.bf16.msra.mxu0 %v430
      %459 = vmatprep.subr.bf16.mxu0 0
      %460 = vmatpush1.bf16.msra.mxu0 %v429
      %461 = vmatprep.subr.bf16.mxu0 0
      %462 = vmatpush2.bf16.msra.mxu0 0
      %463 = vmatprep.subr.bf16.mxu0 0
      %464 = vmatpush2.bf16.msra.mxu0 0
      %465 = vmatprep.subr.bf16.mxu0 0
      %466 = vmatpush2.bf16.msra.mxu0 0
      %467 = vmatprep.subr.bf16.mxu0 0
      %468 = vmatpush2.bf16.msra.mxu0 0
      %469 = vmatprep.subr.bf16.mxu0 0
      %470 = vmatpush2.bf16.msra.mxu0 0
      %471 = vmatprep.subr.bf16.mxu0 0
      %472 = vmatpush2.bf16.msra.mxu0 0
      %473 = vmatprep.subr.bf16.mxu0 0
      %474 = vmatpush2.bf16.msra.mxu0 0
      %475 = vmatprep.subr.bf16.mxu0 0
      %476 = vmatpush2.bf16.msra.mxu0 0
      %477 = vmatprep.mubr.bf16.mxu0 0
      %478 = vmatmul.mubr.bf16.gmra.mxu0 %v381
      %v479 = vpop.f32.mrf.mxu0
      %v480 = vadd.f32 0.0, %v479
      %v481 = vpop.f32.mrf.mxu0
      %v482 = vpop.f32.mrf.mxu0
      %v483 = vadd.f32 0.0, %v482
      %v484 = vpop.f32.mrf.mxu0
      %485 = vmatprep.mubr.bf16.mxu0 0
      %486 = vmatmul.mubr.bf16.gmra.mxu0 %v382
      %v487 = vpop.f32.mrf.mxu0
      %v488 = vadd.f32 0.0, %v487
      %v489 = vpop.f32.mrf.mxu0
      %v490 = vpop.f32.mrf.mxu0
      %v491 = vadd.f32 0.0, %v490
      %v492 = vpop.f32.mrf.mxu0
      %493 = vmatprep.mubr.bf16.mxu0 0
      %494 = vmatmul.mubr.bf16.gmra.mxu0 %v383
      %v495 = vpop.f32.mrf.mxu0
      %v496 = vadd.f32 0.0, %v495
      %v497 = vpop.f32.mrf.mxu0
      %v498 = vpop.f32.mrf.mxu0
      %v499 = vadd.f32 0.0, %v498
      %v500 = vpop.f32.mrf.mxu0
      %501 = vmatprep.mubr.bf16.mxu0 0
      %502 = vmatmul.mubr.bf16.gmra.mxu0 %v384
      %v503 = vpop.f32.mrf.mxu0
      %v504 = vadd.f32 0.0, %v503
      %v505 = vpop.f32.mrf.mxu0
      %v506 = vpop.f32.mrf.mxu0
      %v507 = vadd.f32 0.0, %v506
      %v508 = vpop.f32.mrf.mxu0
      %509 = vmatprep.mubr.bf16.mxu0 0
      %510 = vmatmul.mubr.bf16.gmra.mxu0 %v385
      %v511 = vpop.f32.mrf.mxu0
      %v512 = vadd.f32 0.0, %v511
      %v513 = vpop.f32.mrf.mxu0
      %v514 = vpop.f32.mrf.mxu0
      %v515 = vadd.f32 0.0, %v514
      %v516 = vpop.f32.mrf.mxu0
      %517 = vmatprep.mubr.bf16.mxu0 0
      %518 = vmatmul.mubr.bf16.gmra.mxu0 %v386
      %v519 = vpop.f32.mrf.mxu0
      %v520 = vadd.f32 0.0, %v519
      %v521 = vpop.f32.mrf.mxu0
      %v522 = vpop.f32.mrf.mxu0
      %v523 = vadd.f32 0.0, %v522
      %v524 = vpop.f32.mrf.mxu0
      %525 = vmatprep.mubr.bf16.mxu0 0
      %526 = vmatmul.mubr.bf16.gmra.mxu0 %v387
      %v527 = vpop.f32.mrf.mxu0
      %v528 = vadd.f32 0.0, %v527
      %v529 = vpop.f32.mrf.mxu0
      %v530 = vpop.f32.mrf.mxu0
      %v531 = vadd.f32 0.0, %v530
      %v532 = vpop.f32.mrf.mxu0
      %533 = vmatprep.mubr.bf16.mxu0 0
      %534 = vmatmul.mubr.bf16.gmra.mxu0 %v388
      %v535 = vpop.f32.mrf.mxu0
      %v536 = vadd.f32 0.0, %v535
      %v537 = vpop.f32.mrf.mxu0
      %v538 = vpop.f32.mrf.mxu0
      %v539 = vadd.f32 0.0, %v538
      %v540 = vpop.f32.mrf.mxu0
      %541 = vdwg.mxu0
      %v544 = vunpack.c.l.b16 %v286
      %v545 = vunpack.c.l.b16 %v287
      %v546 = vpack.c.b16 %v545, %v544
      %v564 = vunpack.c.l.b16 %v316
      %v565 = vunpack.c.l.b16 %v317
      %v566 = vunpack.c.l.b16 %v318
      %v567 = vunpack.c.l.b16 %v319
      %v568 = vunpack.c.l.b16 %v320
      %v569 = vunpack.c.l.b16 %v321
      %v570 = vunpack.c.l.b16 %v322
      %v571 = vunpack.c.l.b16 %v323
      %v572 = vunpack.c.l.b16 %v324
      %v573 = vunpack.c.l.b16 %v325
      %v574 = vunpack.c.l.b16 %v326
      %v575 = vunpack.c.l.b16 %v327
      %v576 = vunpack.c.l.b16 %v328
      %v577 = vunpack.c.l.b16 %v329
      %v578 = vunpack.c.l.b16 %v330
      %v579 = vunpack.c.l.b16 %v331
      %v580 = vpack.c.b16 %v565, %v564
      %v581 = vpack.c.b16 %v567, %v566
      %v582 = vpack.c.b16 %v569, %v568
      %v583 = vpack.c.b16 %v571, %v570
      %v584 = vpack.c.b16 %v573, %v572
      %v585 = vpack.c.b16 %v575, %v574
      %v586 = vpack.c.b16 %v577, %v576
      %v587 = vpack.c.b16 %v579, %v578
      %596 = vmatprep.subr.bf16.mxu0 0
      %597 = vmatpush1.bf16.msra.mxu0 %v587
      %598 = vmatprep.subr.bf16.mxu0 0
      %599 = vmatpush1.bf16.msra.mxu0 %v586
      %600 = vmatprep.subr.bf16.mxu0 0
      %601 = vmatpush1.bf16.msra.mxu0 %v585
      %602 = vmatprep.subr.bf16.mxu0 0
      %603 = vmatpush1.bf16.msra.mxu0 %v584
      %604 = vmatprep.subr.bf16.mxu0 0
      %605 = vmatpush1.bf16.msra.mxu0 %v583
      %606 = vmatprep.subr.bf16.mxu0 0
      %607 = vmatpush1.bf16.msra.mxu0 %v582
      %608 = vmatprep.subr.bf16.mxu0 0
      %609 = vmatpush1.bf16.msra.mxu0 %v581
      %610 = vmatprep.subr.bf16.mxu0 0
      %611 = vmatpush1.bf16.msra.mxu0 %v580
      %612 = vmatprep.subr.bf16.mxu0 0
      %613 = vmatpush2.bf16.msra.mxu0 0
      %614 = vmatprep.subr.bf16.mxu0 0
      %615 = vmatpush2.bf16.msra.mxu0 0
      %616 = vmatprep.subr.bf16.mxu0 0
      %617 = vmatpush2.bf16.msra.mxu0 0
      %618 = vmatprep.subr.bf16.mxu0 0
      %619 = vmatpush2.bf16.msra.mxu0 0
      %620 = vmatprep.subr.bf16.mxu0 0
      %621 = vmatpush2.bf16.msra.mxu0 0
      %622 = vmatprep.subr.bf16.mxu0 0
      %623 = vmatpush2.bf16.msra.mxu0 0
      %624 = vmatprep.subr.bf16.mxu0 0
      %625 = vmatpush2.bf16.msra.mxu0 0
      %626 = vmatprep.subr.bf16.mxu0 0
      %627 = vmatpush2.bf16.msra.mxu0 0
      %628 = vmatprep.mubr.bf16.mxu0 0
      %629 = vmatmul.mubr.bf16.gmra.mxu0 %v546
      %v630 = vpop.f32.mrf.mxu0
      %v631 = vadd.f32 %v480, %v630
      %v632 = vpop.f32.mrf.mxu0
      %v633 = vpop.f32.mrf.mxu0
      %v634 = vadd.f32 %v483, %v633
      %v635 = vpop.f32.mrf.mxu0
      %636 = vmatprep.mubr.bf16.mxu0 0
      %637 = vmatmul.mubr.bf16.gmra.mxu0 %v381
      %v638 = vpop.f32.mrf.mxu0
      %v639 = vadd.f32 %v488, %v638
      %v640 = vpop.f32.mrf.mxu0
      %v641 = vpop.f32.mrf.mxu0
      %v642 = vadd.f32 %v491, %v641
      %v643 = vpop.f32.mrf.mxu0
      %644 = vmatprep.mubr.bf16.mxu0 0
      %645 = vmatmul.mubr.bf16.gmra.mxu0 %v382
      %v646 = vpop.f32.mrf.mxu0
      %v647 = vadd.f32 %v496, %v646
      %v648 = vpop.f32.mrf.mxu0
      %v649 = vpop.f32.mrf.mxu0
      %v650 = vadd.f32 %v499, %v649
      %v651 = vpop.f32.mrf.mxu0
      %652 = vmatprep.mubr.bf16.mxu0 0
      %653 = vmatmul.mubr.bf16.gmra.mxu0 %v383
      %v654 = vpop.f32.mrf.mxu0
      %v655 = vadd.f32 %v504, %v654
      %v656 = vpop.f32.mrf.mxu0
      %v657 = vpop.f32.mrf.mxu0
      %v658 = vadd.f32 %v507, %v657
      %v659 = vpop.f32.mrf.mxu0
      %660 = vmatprep.mubr.bf16.mxu0 0
      %661 = vmatmul.mubr.bf16.gmra.mxu0 %v384
      %v662 = vpop.f32.mrf.mxu0
      %v663 = vadd.f32 %v512, %v662
      %v664 = vpop.f32.mrf.mxu0
      %v665 = vpop.f32.mrf.mxu0
      %v666 = vadd.f32 %v515, %v665
      %v667 = vpop.f32.mrf.mxu0
      %668 = vmatprep.mubr.bf16.mxu0 0
      %669 = vmatmul.mubr.bf16.gmra.mxu0 %v385
      %v670 = vpop.f32.mrf.mxu0
      %v671 = vadd.f32 %v520, %v670
      %v672 = vpop.f32.mrf.mxu0
      %v673 = vpop.f32.mrf.mxu0
      %v674 = vadd.f32 %v523, %v673
      %v675 = vpop.f32.mrf.mxu0
      %676 = vmatprep.mubr.bf16.mxu0 0
      %677 = vmatmul.mubr.bf16.gmra.mxu0 %v386
      %v678 = vpop.f32.mrf.mxu0
      %v679 = vadd.f32 %v528, %v678
      %v680 = vpop.f32.mrf.mxu0
      %v681 = vpop.f32.mrf.mxu0
      %v682 = vadd.f32 %v531, %v681
      %v683 = vpop.f32.mrf.mxu0
      %684 = vmatprep.mubr.bf16.mxu0 0
      %685 = vmatmul.mubr.bf16.gmra.mxu0 %v387
      %v686 = vpop.f32.mrf.mxu0
      %v687 = vadd.f32 %v536, %v686
      %v688 = vpop.f32.mrf.mxu0
      %v689 = vpop.f32.mrf.mxu0
      %v690 = vadd.f32 %v539, %v689
      %v691 = vpop.f32.mrf.mxu0
      %692 = vdwg.mxu0
      %s693 = scalar_lea.vmem %s3, 384
      %v694 = vld [vmem:[%s693] sm:$0xf]
      %v695 = vld [vmem:[%s693 + $0x4] sm:$0xf]
      %v696 = vld [vmem:[%s693 + $0x8] sm:$0xf]
      %v697 = vld [vmem:[%s693 + $0xc] sm:$0xf]
      %v698 = vld [vmem:[%s693 + $0x10] sm:$0xf]
      %v699 = vld [vmem:[%s693 + $0x14] sm:$0xf]
      %v700 = vld [vmem:[%s693 + $0x18] sm:$0xf]
      %v701 = vld [vmem:[%s693 + $0x1c] sm:$0xf]
      %v702 = vld [vmem:[%s693 + $0x20] sm:$0xf]
      %v703 = vld [vmem:[%s693 + $0x24] sm:$0xf]
      %v704 = vld [vmem:[%s693 + $0x28] sm:$0xf]
      %v705 = vld [vmem:[%s693 + $0x2c] sm:$0xf]
      %v706 = vld [vmem:[%s693 + $0x30] sm:$0xf]
      %v707 = vld [vmem:[%s693 + $0x34] sm:$0xf]
      %v708 = vld [vmem:[%s693 + $0x38] sm:$0xf]
      %v709 = vld [vmem:[%s693 + $0x3c] sm:$0xf]
      %v712 = vunpack.c.l.b16 %v313
      %v713 = vunpack.c.l.b16 %v314
      %v714 = vpack.c.b16 %v713, %v712
      %v732 = vunpack.c.l.b16 %v694
      %v733 = vunpack.c.l.b16 %v695
      %v734 = vunpack.c.l.b16 %v696
      %v735 = vunpack.c.l.b16 %v697
      %v736 = vunpack.c.l.b16 %v698
      %v737 = vunpack.c.l.b16 %v699
      %v738 = vunpack.c.l.b16 %v700
      %v739 = vunpack.c.l.b16 %v701
      %v740 = vunpack.c.l.b16 %v702
      %v741 = vunpack.c.l.b16 %v703
      %v742 = vunpack.c.l.b16 %v704
      %v743 = vunpack.c.l.b16 %v705
      %v744 = vunpack.c.l.b16 %v706
      %v745 = vunpack.c.l.b16 %v707
      %v746 = vunpack.c.l.b16 %v708
      %v747 = vunpack.c.l.b16 %v709
      %v748 = vpack.c.b16 %v733, %v732
      %v749 = vpack.c.b16 %v735, %v734
      %v750 = vpack.c.b16 %v737, %v736
      %v751 = vpack.c.b16 %v739, %v738
      %v752 = vpack.c.b16 %v741, %v740
      %v753 = vpack.c.b16 %v743, %v742
      %v754 = vpack.c.b16 %v745, %v744
      %v755 = vpack.c.b16 %v747, %v746
      %764 = vmatprep.subr.bf16.mxu0 0
      %765 = vmatpush1.bf16.msra.mxu0 %v755
      %766 = vmatprep.subr.bf16.mxu0 0
      %767 = vmatpush1.bf16.msra.mxu0 %v754
      %768 = vmatprep.subr.bf16.mxu0 0
      %769 = vmatpush1.bf16.msra.mxu0 %v753
      %770 = vmatprep.subr.bf16.mxu0 0
      %771 = vmatpush1.bf16.msra.mxu0 %v752
      %772 = vmatprep.subr.bf16.mxu0 0
      %773 = vmatpush1.bf16.msra.mxu0 %v751
      %774 = vmatprep.subr.bf16.mxu0 0
      %775 = vmatpush1.bf16.msra.mxu0 %v750
      %776 = vmatprep.subr.bf16.mxu0 0
      %777 = vmatpush1.bf16.msra.mxu0 %v749
      %778 = vmatprep.subr.bf16.mxu0 0
      %779 = vmatpush1.bf16.msra.mxu0 %v748
      %780 = vmatprep.subr.bf16.mxu0 0
      %781 = vmatpush2.bf16.msra.mxu0 0
      %782 = vmatprep.subr.bf16.mxu0 0
      %783 = vmatpush2.bf16.msra.mxu0 0
      %784 = vmatprep.subr.bf16.mxu0 0
      %785 = vmatpush2.bf16.msra.mxu0 0
      %786 = vmatprep.subr.bf16.mxu0 0
      %787 = vmatpush2.bf16.msra.mxu0 0
      %788 = vmatprep.subr.bf16.mxu0 0
      %789 = vmatpush2.bf16.msra.mxu0 0
      %790 = vmatprep.subr.bf16.mxu0 0
      %791 = vmatpush2.bf16.msra.mxu0 0
      %792 = vmatprep.subr.bf16.mxu0 0
      %793 = vmatpush2.bf16.msra.mxu0 0
      %794 = vmatprep.subr.bf16.mxu0 0
      %795 = vmatpush2.bf16.msra.mxu0 0
      %796 = vmatprep.mubr.bf16.mxu0 0
      %797 = vmatmul.mubr.bf16.gmra.mxu0 %v382
      %v798 = vpop.f32.mrf.mxu0
      %v799 = vadd.f32 0.0, %v798
      %v800 = vpop.f32.mrf.mxu0
      %v801 = vpop.f32.mrf.mxu0
      %v802 = vadd.f32 0.0, %v801
      %v803 = vpop.f32.mrf.mxu0
      %804 = vmatprep.mubr.bf16.mxu0 0
      %805 = vmatmul.mubr.bf16.gmra.mxu0 %v383
      %v806 = vpop.f32.mrf.mxu0
      %v807 = vadd.f32 0.0, %v806
      %v808 = vpop.f32.mrf.mxu0
      %v809 = vpop.f32.mrf.mxu0
      %v810 = vadd.f32 0.0, %v809
      %v811 = vpop.f32.mrf.mxu0
      %812 = vmatprep.mubr.bf16.mxu0 0
      %813 = vmatmul.mubr.bf16.gmra.mxu0 %v384
      %v814 = vpop.f32.mrf.mxu0
      %v815 = vadd.f32 0.0, %v814
      %v816 = vpop.f32.mrf.mxu0
      %v817 = vpop.f32.mrf.mxu0
      %v818 = vadd.f32 0.0, %v817
      %v819 = vpop.f32.mrf.mxu0
      %820 = vmatprep.mubr.bf16.mxu0 0
      %821 = vmatmul.mubr.bf16.gmra.mxu0 %v385
      %v822 = vpop.f32.mrf.mxu0
      %v823 = vadd.f32 0.0, %v822
      %v824 = vpop.f32.mrf.mxu0
      %v825 = vpop.f32.mrf.mxu0
      %v826 = vadd.f32 0.0, %v825
      %v827 = vpop.f32.mrf.mxu0
      %828 = vmatprep.mubr.bf16.mxu0 0
      %829 = vmatmul.mubr.bf16.gmra.mxu0 %v386
      %v830 = vpop.f32.mrf.mxu0
      %v831 = vadd.f32 0.0, %v830
      %v832 = vpop.f32.mrf.mxu0
      %v833 = vpop.f32.mrf.mxu0
      %v834 = vadd.f32 0.0, %v833
      %v835 = vpop.f32.mrf.mxu0
      %836 = vmatprep.mubr.bf16.mxu0 0
      %837 = vmatmul.mubr.bf16.gmra.mxu0 %v387
      %v838 = vpop.f32.mrf.mxu0
      %v839 = vadd.f32 0.0, %v838
      %v840 = vpop.f32.mrf.mxu0
      %v841 = vpop.f32.mrf.mxu0
      %v842 = vadd.f32 0.0, %v841
      %v843 = vpop.f32.mrf.mxu0
      %844 = vmatprep.mubr.bf16.mxu0 0
      %845 = vmatmul.mubr.bf16.gmra.mxu0 %v388
      %v846 = vpop.f32.mrf.mxu0
      %v847 = vadd.f32 0.0, %v846
      %v848 = vpop.f32.mrf.mxu0
      %v849 = vpop.f32.mrf.mxu0
      %v850 = vadd.f32 0.0, %v849
      %v851 = vpop.f32.mrf.mxu0
      %852 = vmatprep.mubr.bf16.mxu0 0
      %853 = vmatmul.mubr.bf16.gmra.mxu0 %v714
      %v854 = vpop.f32.mrf.mxu0
      %v855 = vadd.f32 0.0, %v854
      %v856 = vpop.f32.mrf.mxu0
      %v857 = vpop.f32.mrf.mxu0
      %v858 = vadd.f32 0.0, %v857
      %v859 = vpop.f32.mrf.mxu0
      %860 = vdwg.mxu0
      %v861 = vadd.f32 %v631, %v799
      %v862 = vadd.f32 %v634, %v802
      %v863 = vadd.f32 %v639, %v807
      %v864 = vadd.f32 %v642, %v810
      %v865 = vadd.f32 %v647, %v815
      %v866 = vadd.f32 %v650, %v818
      %v867 = vadd.f32 %v655, %v823
      %v868 = vadd.f32 %v658, %v826
      %v869 = vadd.f32 %v663, %v831
      %v870 = vadd.f32 %v666, %v834
      %v871 = vadd.f32 %v671, %v839
      %v872 = vadd.f32 %v674, %v842
      %v873 = vadd.f32 %v679, %v847
      %v874 = vadd.f32 %v682, %v850
      %v875 = vadd.f32 %v687, %v855
      %v876 = vadd.f32 %v690, %v858
      %vm877 = vsmask.f32 3328
      %vm878 = vsmask.f32 7440
      %vm879 = vmor %vm877, %vm878
      %v881 = vshrl.u32 %v286, 16
      %v883 = vrot.slane %v881, 4
      %v884 = vshll.u32 %v286, 16
      %v886 = vrot.slane %v884, 5
      %v887 = vor.u32 %v883, %v886
      %v888 = vrot.slane %v887, 4
      %v890 = vshll.u32 %v287, 16
      %v892 = vrot.slane %v890, 5
      %v893 = vsel %vm879, %v888, %v892
      %v894 = vshrl.u32 %v287, 16
      %v896 = vrot.slane %v894, 4
      %v897 = vor.u32 %v896, %v892
      %v898 = vrot.slane %v897, 4
      %v900 = vshll.u32 %v288, 16
      %v902 = vrot.slane %v900, 5
      %v903 = vsel %vm879, %v898, %v902
      %v905 = vshrl.u32 %v289, 16
      %v907 = vrot.slane %v905, 4
      %v908 = vshll.u32 %v289, 16
      %v910 = vrot.slane %v908, 5
      %v911 = vor.u32 %v907, %v910
      %v912 = vrot.slane %v911, 4
      %v914 = vshll.u32 %v290, 16
      %v916 = vrot.slane %v914, 5
      %v917 = vsel %vm879, %v912, %v916
      %v918 = vshrl.u32 %v290, 16
      %v920 = vrot.slane %v918, 4
      %v921 = vor.u32 %v920, %v916
      %v922 = vrot.slane %v921, 4
      %v924 = vshll.u32 %v291, 16
      %v926 = vrot.slane %v924, 5
      %v927 = vsel %vm879, %v922, %v926
      %v929 = vshrl.u32 %v292, 16
      %v931 = vrot.slane %v929, 4
      %v932 = vshll.u32 %v292, 16
      %v934 = vrot.slane %v932, 5
      %v935 = vor.u32 %v931, %v934
      %v936 = vrot.slane %v935, 4
      %v938 = vshll.u32 %v293, 16
      %v940 = vrot.slane %v938, 5
      %v941 = vsel %vm879, %v936, %v940
      %v942 = vshrl.u32 %v293, 16
      %v944 = vrot.slane %v942, 4
      %v945 = vor.u32 %v944, %v940
      %v946 = vrot.slane %v945, 4
      %v948 = vshll.u32 %v294, 16
      %v950 = vrot.slane %v948, 5
      %v951 = vsel %vm879, %v946, %v950
      %v953 = vshrl.u32 %v295, 16
      %v955 = vrot.slane %v953, 4
      %v956 = vshll.u32 %v295, 16
      %v958 = vrot.slane %v956, 5
      %v959 = vor.u32 %v955, %v958
      %v960 = vrot.slane %v959, 4
      %v962 = vshll.u32 %v296, 16
      %v964 = vrot.slane %v962, 5
      %v965 = vsel %vm879, %v960, %v964
      %v966 = vshrl.u32 %v296, 16
      %v968 = vrot.slane %v966, 4
      %v969 = vor.u32 %v968, %v964
      %v970 = vrot.slane %v969, 4
      %v972 = vshll.u32 %v297, 16
      %v974 = vrot.slane %v972, 5
      %v975 = vsel %vm879, %v970, %v974
      %v977 = vshrl.u32 %v298, 16
      %v979 = vrot.slane %v977, 4
      %v980 = vshll.u32 %v298, 16
      %v982 = vrot.slane %v980, 5
      %v983 = vor.u32 %v979, %v982
      %v984 = vrot.slane %v983, 4
      %v986 = vshll.u32 %v299, 16
      %v988 = vrot.slane %v986, 5
      %v989 = vsel %vm879, %v984, %v988
      %v990 = vshrl.u32 %v299, 16
      %v992 = vrot.slane %v990, 4
      %v993 = vor.u32 %v992, %v988
      %v994 = vrot.slane %v993, 4
      %v996 = vshll.u32 %v300, 16
      %v998 = vrot.slane %v996, 5
      %v999 = vsel %vm879, %v994, %v998
      %v1001 = vshrl.u32 %v301, 16
      %v1003 = vrot.slane %v1001, 4
      %v1004 = vshll.u32 %v301, 16
      %v1006 = vrot.slane %v1004, 5
      %v1007 = vor.u32 %v1003, %v1006
      %v1008 = vrot.slane %v1007, 4
      %v1010 = vshll.u32 %v302, 16
      %v1012 = vrot.slane %v1010, 5
      %v1013 = vsel %vm879, %v1008, %v1012
      %v1014 = vshrl.u32 %v302, 16
      %v1016 = vrot.slane %v1014, 4
      %v1017 = vor.u32 %v1016, %v1012
      %v1018 = vrot.slane %v1017, 4
      %v1020 = vshll.u32 %v303, 16
      %v1022 = vrot.slane %v1020, 5
      %v1023 = vsel %vm879, %v1018, %v1022
      %v1025 = vshrl.u32 %v304, 16
      %v1027 = vrot.slane %v1025, 4
      %v1028 = vshll.u32 %v304, 16
      %v1030 = vrot.slane %v1028, 5
      %v1031 = vor.u32 %v1027, %v1030
      %v1032 = vrot.slane %v1031, 4
      %v1034 = vshll.u32 %v305, 16
      %v1036 = vrot.slane %v1034, 5
      %v1037 = vsel %vm879, %v1032, %v1036
      %v1038 = vshrl.u32 %v305, 16
      %v1040 = vrot.slane %v1038, 4
      %v1041 = vor.u32 %v1040, %v1036
      %v1042 = vrot.slane %v1041, 4
      %v1044 = vshll.u32 %v306, 16
      %v1046 = vrot.slane %v1044, 5
      %v1047 = vsel %vm879, %v1042, %v1046
      %v1049 = vshrl.u32 %v307, 16
      %v1051 = vrot.slane %v1049, 4
      %v1052 = vshll.u32 %v307, 16
      %v1054 = vrot.slane %v1052, 5
      %v1055 = vor.u32 %v1051, %v1054
      %v1056 = vrot.slane %v1055, 4
      %v1058 = vshll.u32 %v308, 16
      %v1060 = vrot.slane %v1058, 5
      %v1061 = vsel %vm879, %v1056, %v1060
      %v1062 = vshrl.u32 %v308, 16
      %v1064 = vrot.slane %v1062, 4
      %v1065 = vor.u32 %v1064, %v1060
      %v1066 = vrot.slane %v1065, 4
      %v1068 = vshll.u32 %v309, 16
      %v1070 = vrot.slane %v1068, 5
      %v1071 = vsel %vm879, %v1066, %v1070
      %s1072 = scalar_lea.vmem %s3, 64
      %v1073 = vld [vmem:[%s1072] sm:$0xf]
      %v1074 = vld [vmem:[%s1072 + $0x4] sm:$0xf]
      %v1075 = vld [vmem:[%s1072 + $0x8] sm:$0xf]
      %v1076 = vld [vmem:[%s1072 + $0xc] sm:$0xf]
      %v1077 = vld [vmem:[%s1072 + $0x10] sm:$0xf]
      %v1078 = vld [vmem:[%s1072 + $0x14] sm:$0xf]
      %v1079 = vld [vmem:[%s1072 + $0x18] sm:$0xf]
      %v1080 = vld [vmem:[%s1072 + $0x1c] sm:$0xf]
      %v1081 = vld [vmem:[%s1072 + $0x20] sm:$0xf]
      %v1082 = vld [vmem:[%s1072 + $0x24] sm:$0xf]
      %v1083 = vld [vmem:[%s1072 + $0x28] sm:$0xf]
      %v1084 = vld [vmem:[%s1072 + $0x2c] sm:$0xf]
      %v1085 = vld [vmem:[%s1072 + $0x30] sm:$0xf]
      %v1086 = vld [vmem:[%s1072 + $0x34] sm:$0xf]
      %v1087 = vld [vmem:[%s1072 + $0x38] sm:$0xf]
      %v1088 = vld [vmem:[%s1072 + $0x3c] sm:$0xf]
      %v1089 = vunpack.c.l.b16 %v893
      %v1090 = vunpack.c.l.b16 %v903
      %v1091 = vunpack.c.l.b16 %v917
      %v1092 = vunpack.c.l.b16 %v927
      %v1093 = vunpack.c.l.b16 %v941
      %v1094 = vunpack.c.l.b16 %v951
      %v1095 = vunpack.c.l.b16 %v965
      %v1096 = vunpack.c.l.b16 %v975
      %v1097 = vunpack.c.l.b16 %v989
      %v1098 = vunpack.c.l.b16 %v999
      %v1099 = vunpack.c.l.b16 %v1013
      %v1100 = vunpack.c.l.b16 %v1023
      %v1101 = vunpack.c.l.b16 %v1037
      %v1102 = vunpack.c.l.b16 %v1047
      %v1103 = vunpack.c.l.b16 %v1061
      %v1104 = vunpack.c.l.b16 %v1071
      %v1105 = vpack.c.b16 %v1090, %v1089
      %v1106 = vpack.c.b16 %v1092, %v1091
      %v1107 = vpack.c.b16 %v1094, %v1093
      %v1108 = vpack.c.b16 %v1096, %v1095
      %v1109 = vpack.c.b16 %v1098, %v1097
      %v1110 = vpack.c.b16 %v1100, %v1099
      %v1111 = vpack.c.b16 %v1102, %v1101
      %v1112 = vpack.c.b16 %v1104, %v1103
      %v1137 = vunpack.c.l.b16 %v1073
      %v1138 = vunpack.c.l.b16 %v1074
      %v1139 = vunpack.c.l.b16 %v1075
      %v1140 = vunpack.c.l.b16 %v1076
      %v1141 = vunpack.c.l.b16 %v1077
      %v1142 = vunpack.c.l.b16 %v1078
      %v1143 = vunpack.c.l.b16 %v1079
      %v1144 = vunpack.c.l.b16 %v1080
      %v1145 = vunpack.c.l.b16 %v1081
      %v1146 = vunpack.c.l.b16 %v1082
      %v1147 = vunpack.c.l.b16 %v1083
      %v1148 = vunpack.c.l.b16 %v1084
      %v1149 = vunpack.c.l.b16 %v1085
      %v1150 = vunpack.c.l.b16 %v1086
      %v1151 = vunpack.c.l.b16 %v1087
      %v1152 = vunpack.c.l.b16 %v1088
      %v1153 = vpack.c.b16 %v1138, %v1137
      %v1154 = vpack.c.b16 %v1140, %v1139
      %v1155 = vpack.c.b16 %v1142, %v1141
      %v1156 = vpack.c.b16 %v1144, %v1143
      %v1157 = vpack.c.b16 %v1146, %v1145
      %v1158 = vpack.c.b16 %v1148, %v1147
      %v1159 = vpack.c.b16 %v1150, %v1149
      %v1160 = vpack.c.b16 %v1152, %v1151
      %1169 = vmatprep.subr.bf16.mxu0 0
      %1170 = vmatpush1.bf16.msra.mxu0 %v1160
      %1171 = vmatprep.subr.bf16.mxu0 0
      %1172 = vmatpush1.bf16.msra.mxu0 %v1159
      %1173 = vmatprep.subr.bf16.mxu0 0
      %1174 = vmatpush1.bf16.msra.mxu0 %v1158
      %1175 = vmatprep.subr.bf16.mxu0 0
      %1176 = vmatpush1.bf16.msra.mxu0 %v1157
      %1177 = vmatprep.subr.bf16.mxu0 0
      %1178 = vmatpush1.bf16.msra.mxu0 %v1156
      %1179 = vmatprep.subr.bf16.mxu0 0
      %1180 = vmatpush1.bf16.msra.mxu0 %v1155
      %1181 = vmatprep.subr.bf16.mxu0 0
      %1182 = vmatpush1.bf16.msra.mxu0 %v1154
      %1183 = vmatprep.subr.bf16.mxu0 0
      %1184 = vmatpush1.bf16.msra.mxu0 %v1153
      %1185 = vmatprep.subr.bf16.mxu0 0
      %1186 = vmatpush2.bf16.msra.mxu0 0
      %1187 = vmatprep.subr.bf16.mxu0 0
      %1188 = vmatpush2.bf16.msra.mxu0 0
      %1189 = vmatprep.subr.bf16.mxu0 0
      %1190 = vmatpush2.bf16.msra.mxu0 0
      %1191 = vmatprep.subr.bf16.mxu0 0
      %1192 = vmatpush2.bf16.msra.mxu0 0
      %1193 = vmatprep.subr.bf16.mxu0 0
      %1194 = vmatpush2.bf16.msra.mxu0 0
      %1195 = vmatprep.subr.bf16.mxu0 0
      %1196 = vmatpush2.bf16.msra.mxu0 0
      %1197 = vmatprep.subr.bf16.mxu0 0
      %1198 = vmatpush2.bf16.msra.mxu0 0
      %1199 = vmatprep.subr.bf16.mxu0 0
      %1200 = vmatpush2.bf16.msra.mxu0 0
      %1201 = vmatprep.mubr.bf16.mxu0 0
      %1202 = vmatmul.mubr.bf16.gmra.mxu0 %v1105
      %v1203 = vpop.f32.mrf.mxu0
      %v1204 = vadd.f32 0.0, %v1203
      %v1205 = vpop.f32.mrf.mxu0
      %v1206 = vpop.f32.mrf.mxu0
      %v1207 = vadd.f32 0.0, %v1206
      %v1208 = vpop.f32.mrf.mxu0
      %1209 = vmatprep.mubr.bf16.mxu0 0
      %1210 = vmatmul.mubr.bf16.gmra.mxu0 %v1106
      %v1211 = vpop.f32.mrf.mxu0
      %v1212 = vadd.f32 0.0, %v1211
      %v1213 = vpop.f32.mrf.mxu0
      %v1214 = vpop.f32.mrf.mxu0
      %v1215 = vadd.f32 0.0, %v1214
      %v1216 = vpop.f32.mrf.mxu0
      %1217 = vmatprep.mubr.bf16.mxu0 0
      %1218 = vmatmul.mubr.bf16.gmra.mxu0 %v1107
      %v1219 = vpop.f32.mrf.mxu0
      %v1220 = vadd.f32 0.0, %v1219
      %v1221 = vpop.f32.mrf.mxu0
      %v1222 = vpop.f32.mrf.mxu0
      %v1223 = vadd.f32 0.0, %v1222
      %v1224 = vpop.f32.mrf.mxu0
      %1225 = vmatprep.mubr.bf16.mxu0 0
      %1226 = vmatmul.mubr.bf16.gmra.mxu0 %v1108
      %v1227 = vpop.f32.mrf.mxu0
      %v1228 = vadd.f32 0.0, %v1227
      %v1229 = vpop.f32.mrf.mxu0
      %v1230 = vpop.f32.mrf.mxu0
      %v1231 = vadd.f32 0.0, %v1230
      %v1232 = vpop.f32.mrf.mxu0
      %1233 = vmatprep.mubr.bf16.mxu0 0
      %1234 = vmatmul.mubr.bf16.gmra.mxu0 %v1109
      %v1235 = vpop.f32.mrf.mxu0
      %v1236 = vadd.f32 0.0, %v1235
      %v1237 = vpop.f32.mrf.mxu0
      %v1238 = vpop.f32.mrf.mxu0
      %v1239 = vadd.f32 0.0, %v1238
      %v1240 = vpop.f32.mrf.mxu0
      %1241 = vmatprep.mubr.bf16.mxu0 0
      %1242 = vmatmul.mubr.bf16.gmra.mxu0 %v1110
      %v1243 = vpop.f32.mrf.mxu0
      %v1244 = vadd.f32 0.0, %v1243
      %v1245 = vpop.f32.mrf.mxu0
      %v1246 = vpop.f32.mrf.mxu0
      %v1247 = vadd.f32 0.0, %v1246
      %v1248 = vpop.f32.mrf.mxu0
      %1249 = vmatprep.mubr.bf16.mxu0 0
      %1250 = vmatmul.mubr.bf16.gmra.mxu0 %v1111
      %v1251 = vpop.f32.mrf.mxu0
      %v1252 = vadd.f32 0.0, %v1251
      %v1253 = vpop.f32.mrf.mxu0
      %v1254 = vpop.f32.mrf.mxu0
      %v1255 = vadd.f32 0.0, %v1254
      %v1256 = vpop.f32.mrf.mxu0
      %1257 = vmatprep.mubr.bf16.mxu0 0
      %1258 = vmatmul.mubr.bf16.gmra.mxu0 %v1112
      %v1259 = vpop.f32.mrf.mxu0
      %v1260 = vadd.f32 0.0, %v1259
      %v1261 = vpop.f32.mrf.mxu0
      %v1262 = vpop.f32.mrf.mxu0
      %v1263 = vadd.f32 0.0, %v1262
      %v1264 = vpop.f32.mrf.mxu0
      %1265 = vdwg.mxu0
      %v1266 = vadd.f32 %v861, %v1204
      %v1267 = vadd.f32 %v862, %v1207
      %v1268 = vadd.f32 %v863, %v1212
      %v1269 = vadd.f32 %v864, %v1215
      %v1270 = vadd.f32 %v865, %v1220
      %v1271 = vadd.f32 %v866, %v1223
      %v1272 = vadd.f32 %v867, %v1228
      %v1273 = vadd.f32 %v868, %v1231
      %v1274 = vadd.f32 %v869, %v1236
      %v1275 = vadd.f32 %v870, %v1239
      %v1276 = vadd.f32 %v871, %v1244
      %v1277 = vadd.f32 %v872, %v1247
      %v1278 = vadd.f32 %v873, %v1252
      %v1279 = vadd.f32 %v874, %v1255
      %v1280 = vadd.f32 %v875, %v1260
      %v1281 = vadd.f32 %v876, %v1263
      %v1283 = vshrl.u32 %v310, 16
      %v1285 = vrot.slane %v1283, 4
      %v1286 = vshll.u32 %v310, 16
      %v1288 = vrot.slane %v1286, 5
      %v1289 = vor.u32 %v1285, %v1288
      %v1290 = vrot.slane %v1289, 4
      %v1292 = vshll.u32 %v311, 16
      %v1294 = vrot.slane %v1292, 5
      %v1295 = vsel %vm879, %v1290, %v1294
      %v1296 = vshrl.u32 %v311, 16
      %v1298 = vrot.slane %v1296, 4
      %v1299 = vor.u32 %v1298, %v1294
      %v1300 = vrot.slane %v1299, 4
      %v1302 = vshll.u32 %v312, 16
      %v1304 = vrot.slane %v1302, 5
      %v1305 = vsel %vm879, %v1300, %v1304
      %s1306 = scalar_lea.vmem %s3, 256
      %v1307 = vld [vmem:[%s1306] sm:$0xf]
      %v1308 = vld [vmem:[%s1306 + $0x4] sm:$0xf]
      %v1309 = vld [vmem:[%s1306 + $0x8] sm:$0xf]
      %v1310 = vld [vmem:[%s1306 + $0xc] sm:$0xf]
      %v1311 = vld [vmem:[%s1306 + $0x10] sm:$0xf]
      %v1312 = vld [vmem:[%s1306 + $0x14] sm:$0xf]
      %v1313 = vld [vmem:[%s1306 + $0x18] sm:$0xf]
      %v1314 = vld [vmem:[%s1306 + $0x1c] sm:$0xf]
      %v1315 = vld [vmem:[%s1306 + $0x20] sm:$0xf]
      %v1316 = vld [vmem:[%s1306 + $0x24] sm:$0xf]
      %v1317 = vld [vmem:[%s1306 + $0x28] sm:$0xf]
      %v1318 = vld [vmem:[%s1306 + $0x2c] sm:$0xf]
      %v1319 = vld [vmem:[%s1306 + $0x30] sm:$0xf]
      %v1320 = vld [vmem:[%s1306 + $0x34] sm:$0xf]
      %v1321 = vld [vmem:[%s1306 + $0x38] sm:$0xf]
      %v1322 = vld [vmem:[%s1306 + $0x3c] sm:$0xf]
      %v1323 = vunpack.c.l.b16 %v1295
      %v1324 = vunpack.c.l.b16 %v1305
      %v1325 = vpack.c.b16 %v1324, %v1323
      %v1343 = vunpack.c.l.b16 %v1307
      %v1344 = vunpack.c.l.b16 %v1308
      %v1345 = vunpack.c.l.b16 %v1309
      %v1346 = vunpack.c.l.b16 %v1310
      %v1347 = vunpack.c.l.b16 %v1311
      %v1348 = vunpack.c.l.b16 %v1312
      %v1349 = vunpack.c.l.b16 %v1313
      %v1350 = vunpack.c.l.b16 %v1314
      %v1351 = vunpack.c.l.b16 %v1315
      %v1352 = vunpack.c.l.b16 %v1316
      %v1353 = vunpack.c.l.b16 %v1317
      %v1354 = vunpack.c.l.b16 %v1318
      %v1355 = vunpack.c.l.b16 %v1319
      %v1356 = vunpack.c.l.b16 %v1320
      %v1357 = vunpack.c.l.b16 %v1321
      %v1358 = vunpack.c.l.b16 %v1322
      %v1359 = vpack.c.b16 %v1344, %v1343
      %v1360 = vpack.c.b16 %v1346, %v1345
      %v1361 = vpack.c.b16 %v1348, %v1347
      %v1362 = vpack.c.b16 %v1350, %v1349
      %v1363 = vpack.c.b16 %v1352, %v1351
      %v1364 = vpack.c.b16 %v1354, %v1353
      %v1365 = vpack.c.b16 %v1356, %v1355
      %v1366 = vpack.c.b16 %v1358, %v1357
      %1375 = vmatprep.subr.bf16.mxu0 0
      %1376 = vmatpush1.bf16.msra.mxu0 %v1366
      %1377 = vmatprep.subr.bf16.mxu0 0
      %1378 = vmatpush1.bf16.msra.mxu0 %v1365
      %1379 = vmatprep.subr.bf16.mxu0 0
      %1380 = vmatpush1.bf16.msra.mxu0 %v1364
      %1381 = vmatprep.subr.bf16.mxu0 0
      %1382 = vmatpush1.bf16.msra.mxu0 %v1363
      %1383 = vmatprep.subr.bf16.mxu0 0
      %1384 = vmatpush1.bf16.msra.mxu0 %v1362
      %1385 = vmatprep.subr.bf16.mxu0 0
      %1386 = vmatpush1.bf16.msra.mxu0 %v1361
      %1387 = vmatprep.subr.bf16.mxu0 0
      %1388 = vmatpush1.bf16.msra.mxu0 %v1360
      %1389 = vmatprep.subr.bf16.mxu0 0
      %1390 = vmatpush1.bf16.msra.mxu0 %v1359
      %1391 = vmatprep.subr.bf16.mxu0 0
      %1392 = vmatpush2.bf16.msra.mxu0 0
      %1393 = vmatprep.subr.bf16.mxu0 0
      %1394 = vmatpush2.bf16.msra.mxu0 0
      %1395 = vmatprep.subr.bf16.mxu0 0
      %1396 = vmatpush2.bf16.msra.mxu0 0
      %1397 = vmatprep.subr.bf16.mxu0 0
      %1398 = vmatpush2.bf16.msra.mxu0 0
      %1399 = vmatprep.subr.bf16.mxu0 0
      %1400 = vmatpush2.bf16.msra.mxu0 0
      %1401 = vmatprep.subr.bf16.mxu0 0
      %1402 = vmatpush2.bf16.msra.mxu0 0
      %1403 = vmatprep.subr.bf16.mxu0 0
      %1404 = vmatpush2.bf16.msra.mxu0 0
      %1405 = vmatprep.subr.bf16.mxu0 0
      %1406 = vmatpush2.bf16.msra.mxu0 0
      %1407 = vmatprep.mubr.bf16.mxu0 0
      %1408 = vmatmul.mubr.bf16.gmra.mxu0 %v1106
      %v1409 = vpop.f32.mrf.mxu0
      %v1410 = vadd.f32 0.0, %v1409
      %v1411 = vpop.f32.mrf.mxu0
      %v1412 = vpop.f32.mrf.mxu0
      %v1413 = vadd.f32 0.0, %v1412
      %v1414 = vpop.f32.mrf.mxu0
      %1415 = vmatprep.mubr.bf16.mxu0 0
      %1416 = vmatmul.mubr.bf16.gmra.mxu0 %v1107
      %v1417 = vpop.f32.mrf.mxu0
      %v1418 = vadd.f32 0.0, %v1417
      %v1419 = vpop.f32.mrf.mxu0
      %v1420 = vpop.f32.mrf.mxu0
      %v1421 = vadd.f32 0.0, %v1420
      %v1422 = vpop.f32.mrf.mxu0
      %1423 = vmatprep.mubr.bf16.mxu0 0
      %1424 = vmatmul.mubr.bf16.gmra.mxu0 %v1108
      %v1425 = vpop.f32.mrf.mxu0
      %v1426 = vadd.f32 0.0, %v1425
      %v1427 = vpop.f32.mrf.mxu0
      %v1428 = vpop.f32.mrf.mxu0
      %v1429 = vadd.f32 0.0, %v1428
      %v1430 = vpop.f32.mrf.mxu0
      %1431 = vmatprep.mubr.bf16.mxu0 0
      %1432 = vmatmul.mubr.bf16.gmra.mxu0 %v1109
      %v1433 = vpop.f32.mrf.mxu0
      %v1434 = vadd.f32 0.0, %v1433
      %v1435 = vpop.f32.mrf.mxu0
      %v1436 = vpop.f32.mrf.mxu0
      %v1437 = vadd.f32 0.0, %v1436
      %v1438 = vpop.f32.mrf.mxu0
      %1439 = vmatprep.mubr.bf16.mxu0 0
      %1440 = vmatmul.mubr.bf16.gmra.mxu0 %v1110
      %v1441 = vpop.f32.mrf.mxu0
      %v1442 = vadd.f32 0.0, %v1441
      %v1443 = vpop.f32.mrf.mxu0
      %v1444 = vpop.f32.mrf.mxu0
      %v1445 = vadd.f32 0.0, %v1444
      %v1446 = vpop.f32.mrf.mxu0
      %1447 = vmatprep.mubr.bf16.mxu0 0
      %1448 = vmatmul.mubr.bf16.gmra.mxu0 %v1111
      %v1449 = vpop.f32.mrf.mxu0
      %v1450 = vadd.f32 0.0, %v1449
      %v1451 = vpop.f32.mrf.mxu0
      %v1452 = vpop.f32.mrf.mxu0
      %v1453 = vadd.f32 0.0, %v1452
      %v1454 = vpop.f32.mrf.mxu0
      %1455 = vmatprep.mubr.bf16.mxu0 0
      %1456 = vmatmul.mubr.bf16.gmra.mxu0 %v1112
      %v1457 = vpop.f32.mrf.mxu0
      %v1458 = vadd.f32 0.0, %v1457
      %v1459 = vpop.f32.mrf.mxu0
      %v1460 = vpop.f32.mrf.mxu0
      %v1461 = vadd.f32 0.0, %v1460
      %v1462 = vpop.f32.mrf.mxu0
      %1463 = vmatprep.mubr.bf16.mxu0 0
      %1464 = vmatmul.mubr.bf16.gmra.mxu0 %v1325
      %v1465 = vpop.f32.mrf.mxu0
      %v1466 = vadd.f32 0.0, %v1465
      %v1467 = vpop.f32.mrf.mxu0
      %v1468 = vpop.f32.mrf.mxu0
      %v1469 = vadd.f32 0.0, %v1468
      %v1470 = vpop.f32.mrf.mxu0
      %1471 = vdwg.mxu0
      %v1472 = vadd.f32 %v1266, %v1410
      %v1473 = vadd.f32 %v1267, %v1413
      %v1474 = vadd.f32 %v1268, %v1418
      %v1475 = vadd.f32 %v1269, %v1421
      %v1476 = vadd.f32 %v1270, %v1426
      %v1477 = vadd.f32 %v1271, %v1429
      %v1478 = vadd.f32 %v1272, %v1434
      %v1479 = vadd.f32 %v1273, %v1437
      %v1480 = vadd.f32 %v1274, %v1442
      %v1481 = vadd.f32 %v1275, %v1445
      %v1482 = vadd.f32 %v1276, %v1450
      %v1483 = vadd.f32 %v1277, %v1453
      %v1484 = vadd.f32 %v1278, %v1458
      %v1485 = vadd.f32 %v1279, %v1461
      %v1486 = vadd.f32 %v1280, %v1466
      %v1487 = vadd.f32 %v1281, %v1469
      %v1489 = vshrl.u32 %v313, 16
      %v1491 = vrot.slane %v1489, 4
      %v1492 = vshll.u32 %v313, 16
      %v1494 = vrot.slane %v1492, 5
      %v1495 = vor.u32 %v1491, %v1494
      %v1496 = vrot.slane %v1495, 4
      %v1498 = vshll.u32 %v314, 16
      %v1500 = vrot.slane %v1498, 5
      %v1501 = vsel %vm879, %v1496, %v1500
      %v1502 = vshrl.u32 %v314, 16
      %v1504 = vrot.slane %v1502, 4
      %v1505 = vor.u32 %v1504, %v1500
      %v1506 = vrot.slane %v1505, 4
      %v1508 = vshll.u32 %v315, 16
      %v1510 = vrot.slane %v1508, 5
      %v1511 = vsel %vm879, %v1506, %v1510
      %s1512 = scalar_lea.vmem %s3, 448
      %v1513 = vld [vmem:[%s1512] sm:$0xf]
      %v1514 = vld [vmem:[%s1512 + $0x4] sm:$0xf]
      %v1515 = vld [vmem:[%s1512 + $0x8] sm:$0xf]
      %v1516 = vld [vmem:[%s1512 + $0xc] sm:$0xf]
      %v1517 = vld [vmem:[%s1512 + $0x10] sm:$0xf]
      %v1518 = vld [vmem:[%s1512 + $0x14] sm:$0xf]
      %v1519 = vld [vmem:[%s1512 + $0x18] sm:$0xf]
      %v1520 = vld [vmem:[%s1512 + $0x1c] sm:$0xf]
      %v1521 = vld [vmem:[%s1512 + $0x20] sm:$0xf]
      %v1522 = vld [vmem:[%s1512 + $0x24] sm:$0xf]
      %v1523 = vld [vmem:[%s1512 + $0x28] sm:$0xf]
      %v1524 = vld [vmem:[%s1512 + $0x2c] sm:$0xf]
      %v1525 = vld [vmem:[%s1512 + $0x30] sm:$0xf]
      %v1526 = vld [vmem:[%s1512 + $0x34] sm:$0xf]
      %v1527 = vld [vmem:[%s1512 + $0x38] sm:$0xf]
      %v1528 = vld [vmem:[%s1512 + $0x3c] sm:$0xf]
      %v1529 = vunpack.c.l.b16 %v1501
      %v1530 = vunpack.c.l.b16 %v1511
      %v1531 = vpack.c.b16 %v1530, %v1529
      %v1549 = vunpack.c.l.b16 %v1513
      %v1550 = vunpack.c.l.b16 %v1514
      %v1551 = vunpack.c.l.b16 %v1515
      %v1552 = vunpack.c.l.b16 %v1516
      %v1553 = vunpack.c.l.b16 %v1517
      %v1554 = vunpack.c.l.b16 %v1518
      %v1555 = vunpack.c.l.b16 %v1519
      %v1556 = vunpack.c.l.b16 %v1520
      %v1557 = vunpack.c.l.b16 %v1521
      %v1558 = vunpack.c.l.b16 %v1522
      %v1559 = vunpack.c.l.b16 %v1523
      %v1560 = vunpack.c.l.b16 %v1524
      %v1561 = vunpack.c.l.b16 %v1525
      %v1562 = vunpack.c.l.b16 %v1526
      %v1563 = vunpack.c.l.b16 %v1527
      %v1564 = vunpack.c.l.b16 %v1528
      %v1565 = vpack.c.b16 %v1550, %v1549
      %v1566 = vpack.c.b16 %v1552, %v1551
      %v1567 = vpack.c.b16 %v1554, %v1553
      %v1568 = vpack.c.b16 %v1556, %v1555
      %v1569 = vpack.c.b16 %v1558, %v1557
      %v1570 = vpack.c.b16 %v1560, %v1559
      %v1571 = vpack.c.b16 %v1562, %v1561
      %v1572 = vpack.c.b16 %v1564, %v1563
      %1581 = vmatprep.subr.bf16.mxu0 0
      %1582 = vmatpush1.bf16.msra.mxu0 %v1572
      %1583 = vmatprep.subr.bf16.mxu0 0
      %1584 = vmatpush1.bf16.msra.mxu0 %v1571
      %1585 = vmatprep.subr.bf16.mxu0 0
      %1586 = vmatpush1.bf16.msra.mxu0 %v1570
      %1587 = vmatprep.subr.bf16.mxu0 0
      %1588 = vmatpush1.bf16.msra.mxu0 %v1569
      %1589 = vmatprep.subr.bf16.mxu0 0
      %1590 = vmatpush1.bf16.msra.mxu0 %v1568
      %1591 = vmatprep.subr.bf16.mxu0 0
      %1592 = vmatpush1.bf16.msra.mxu0 %v1567
      %1593 = vmatprep.subr.bf16.mxu0 0
      %1594 = vmatpush1.bf16.msra.mxu0 %v1566
      %1595 = vmatprep.subr.bf16.mxu0 0
      %1596 = vmatpush1.bf16.msra.mxu0 %v1565
      %1597 = vmatprep.subr.bf16.mxu0 0
      %1598 = vmatpush2.bf16.msra.mxu0 0
      %1599 = vmatprep.subr.bf16.mxu0 0
      %1600 = vmatpush2.bf16.msra.mxu0 0
      %1601 = vmatprep.subr.bf16.mxu0 0
      %1602 = vmatpush2.bf16.msra.mxu0 0
      %1603 = vmatprep.subr.bf16.mxu0 0
      %1604 = vmatpush2.bf16.msra.mxu0 0
      %1605 = vmatprep.subr.bf16.mxu0 0
      %1606 = vmatpush2.bf16.msra.mxu0 0
      %1607 = vmatprep.subr.bf16.mxu0 0
      %1608 = vmatpush2.bf16.msra.mxu0 0
      %1609 = vmatprep.subr.bf16.mxu0 0
      %1610 = vmatpush2.bf16.msra.mxu0 0
      %1611 = vmatprep.subr.bf16.mxu0 0
      %1612 = vmatpush2.bf16.msra.mxu0 0
      %1613 = vmatprep.mubr.bf16.mxu0 0
      %1614 = vmatmul.mubr.bf16.gmra.mxu0 %v1107
      %v1615 = vpop.f32.mrf.mxu0
      %v1616 = vadd.f32 0.0, %v1615
      %v1617 = vpop.f32.mrf.mxu0
      %v1618 = vpop.f32.mrf.mxu0
      %v1619 = vadd.f32 0.0, %v1618
      %v1620 = vpop.f32.mrf.mxu0
      %1621 = vmatprep.mubr.bf16.mxu0 0
      %1622 = vmatmul.mubr.bf16.gmra.mxu0 %v1108
      %v1623 = vpop.f32.mrf.mxu0
      %v1624 = vadd.f32 0.0, %v1623
      %v1625 = vpop.f32.mrf.mxu0
      %v1626 = vpop.f32.mrf.mxu0
      %v1627 = vadd.f32 0.0, %v1626
      %v1628 = vpop.f32.mrf.mxu0
      %1629 = vmatprep.mubr.bf16.mxu0 0
      %1630 = vmatmul.mubr.bf16.gmra.mxu0 %v1109
      %v1631 = vpop.f32.mrf.mxu0
      %v1632 = vadd.f32 0.0, %v1631
      %v1633 = vpop.f32.mrf.mxu0
      %v1634 = vpop.f32.mrf.mxu0
      %v1635 = vadd.f32 0.0, %v1634
      %v1636 = vpop.f32.mrf.mxu0
      %1637 = vmatprep.mubr.bf16.mxu0 0
      %1638 = vmatmul.mubr.bf16.gmra.mxu0 %v1110
      %v1639 = vpop.f32.mrf.mxu0
      %v1640 = vadd.f32 0.0, %v1639
      %v1641 = vpop.f32.mrf.mxu0
      %v1642 = vpop.f32.mrf.mxu0
      %v1643 = vadd.f32 0.0, %v1642
      %v1644 = vpop.f32.mrf.mxu0
      %1645 = vmatprep.mubr.bf16.mxu0 0
      %1646 = vmatmul.mubr.bf16.gmra.mxu0 %v1111
      %v1647 = vpop.f32.mrf.mxu0
      %v1648 = vadd.f32 0.0, %v1647
      %v1649 = vpop.f32.mrf.mxu0
      %v1650 = vpop.f32.mrf.mxu0
      %v1651 = vadd.f32 0.0, %v1650
      %v1652 = vpop.f32.mrf.mxu0
      %1653 = vmatprep.mubr.bf16.mxu0 0
      %1654 = vmatmul.mubr.bf16.gmra.mxu0 %v1112
      %v1655 = vpop.f32.mrf.mxu0
      %v1656 = vadd.f32 0.0, %v1655
      %v1657 = vpop.f32.mrf.mxu0
      %v1658 = vpop.f32.mrf.mxu0
      %v1659 = vadd.f32 0.0, %v1658
      %v1660 = vpop.f32.mrf.mxu0
      %1661 = vmatprep.mubr.bf16.mxu0 0
      %1662 = vmatmul.mubr.bf16.gmra.mxu0 %v1325
      %v1663 = vpop.f32.mrf.mxu0
      %v1664 = vadd.f32 0.0, %v1663
      %v1665 = vpop.f32.mrf.mxu0
      %v1666 = vpop.f32.mrf.mxu0
      %v1667 = vadd.f32 0.0, %v1666
      %v1668 = vpop.f32.mrf.mxu0
      %1669 = vmatprep.mubr.bf16.mxu0 0
      %1670 = vmatmul.mubr.bf16.gmra.mxu0 %v1531
      %v1671 = vpop.f32.mrf.mxu0
      %v1672 = vadd.f32 0.0, %v1671
      %v1673 = vpop.f32.mrf.mxu0
      %v1674 = vpop.f32.mrf.mxu0
      %v1675 = vadd.f32 0.0, %v1674
      %v1676 = vpop.f32.mrf.mxu0
      %1677 = vdwg.mxu0
      %v1678 = vadd.f32 %v1472, %v1616
      %v1679 = vadd.f32 %v1473, %v1619
      %v1680 = vadd.f32 %v1474, %v1624
      %v1681 = vadd.f32 %v1475, %v1627
      %v1682 = vadd.f32 %v1476, %v1632
      %v1683 = vadd.f32 %v1477, %v1635
      %v1684 = vadd.f32 %v1478, %v1640
      %v1685 = vadd.f32 %v1479, %v1643
      %v1686 = vadd.f32 %v1480, %v1648
      %v1687 = vadd.f32 %v1481, %v1651
      %v1688 = vadd.f32 %v1482, %v1656
      %v1689 = vadd.f32 %v1483, %v1659
      %v1690 = vadd.f32 %v1484, %v1664
      %v1691 = vadd.f32 %v1485, %v1667
      %v1692 = vadd.f32 %v1486, %v1672
      %v1693 = vadd.f32 %v1487, %v1675
      %vm1702 = vcmask 1042432
      %vm1703 = vcmask 1046532
      %vm1704 = vmor %vm1702, %vm1703
      %v1705 = vrot.slane %v286, 5
      %v1706 = vrot.slane %v1705, 4
      %v1707 = vrot.slane %v287, 5
      %v1708 = vsel %vm1704, %v1706, %v1707
      %v1709 = vrot.slane %v1707, 4
      %v1710 = vrot.slane %v288, 5
      %v1711 = vsel %vm1704, %v1709, %v1710
      %v1712 = vrot.slane %v289, 5
      %v1713 = vrot.slane %v1712, 4
      %v1714 = vrot.slane %v290, 5
      %v1715 = vsel %vm1704, %v1713, %v1714
      %v1716 = vrot.slane %v1714, 4
      %v1717 = vrot.slane %v291, 5
      %v1718 = vsel %vm1704, %v1716, %v1717
      %v1719 = vrot.slane %v292, 5
      %v1720 = vrot.slane %v1719, 4
      %v1721 = vrot.slane %v293, 5
      %v1722 = vsel %vm1704, %v1720, %v1721
      %v1723 = vrot.slane %v1721, 4
      %v1724 = vrot.slane %v294, 5
      %v1725 = vsel %vm1704, %v1723, %v1724
      %v1726 = vrot.slane %v295, 5
      %v1727 = vrot.slane %v1726, 4
      %v1728 = vrot.slane %v296, 5
      %v1729 = vsel %vm1704, %v1727, %v1728
      %v1730 = vrot.slane %v1728, 4
      %v1731 = vrot.slane %v297, 5
      %v1732 = vsel %vm1704, %v1730, %v1731
      %v1733 = vrot.slane %v298, 5
      %v1734 = vrot.slane %v1733, 4
      %v1735 = vrot.slane %v299, 5
      %v1736 = vsel %vm1704, %v1734, %v1735
      %v1737 = vrot.slane %v1735, 4
      %v1738 = vrot.slane %v300, 5
      %v1739 = vsel %vm1704, %v1737, %v1738
      %v1740 = vrot.slane %v301, 5
      %v1741 = vrot.slane %v1740, 4
      %v1742 = vrot.slane %v302, 5
      %v1743 = vsel %vm1704, %v1741, %v1742
      %v1744 = vrot.slane %v1742, 4
      %v1745 = vrot.slane %v303, 5
      %v1746 = vsel %vm1704, %v1744, %v1745
      %v1747 = vrot.slane %v304, 5
      %v1748 = vrot.slane %v1747, 4
      %v1749 = vrot.slane %v305, 5
      %v1750 = vsel %vm1704, %v1748, %v1749
      %v1751 = vrot.slane %v1749, 4
      %v1752 = vrot.slane %v306, 5
      %v1753 = vsel %vm1704, %v1751, %v1752
      %v1754 = vrot.slane %v307, 5
      %v1755 = vrot.slane %v1754, 4
      %v1756 = vrot.slane %v308, 5
      %v1757 = vsel %vm1704, %v1755, %v1756
      %v1758 = vrot.slane %v1756, 4
      %v1759 = vrot.slane %v309, 5
      %v1760 = vsel %vm1704, %v1758, %v1759
      %s1761 = scalar_lea.vmem %s3, 128
      %v1762 = vld [vmem:[%s1761] sm:$0xf]
      %v1763 = vld [vmem:[%s1761 + $0x4] sm:$0xf]
      %v1764 = vld [vmem:[%s1761 + $0x8] sm:$0xf]
      %v1765 = vld [vmem:[%s1761 + $0xc] sm:$0xf]
      %v1766 = vld [vmem:[%s1761 + $0x10] sm:$0xf]
      %v1767 = vld [vmem:[%s1761 + $0x14] sm:$0xf]
      %v1768 = vld [vmem:[%s1761 + $0x18] sm:$0xf]
      %v1769 = vld [vmem:[%s1761 + $0x1c] sm:$0xf]
      %v1770 = vld [vmem:[%s1761 + $0x20] sm:$0xf]
      %v1771 = vld [vmem:[%s1761 + $0x24] sm:$0xf]
      %v1772 = vld [vmem:[%s1761 + $0x28] sm:$0xf]
      %v1773 = vld [vmem:[%s1761 + $0x2c] sm:$0xf]
      %v1774 = vld [vmem:[%s1761 + $0x30] sm:$0xf]
      %v1775 = vld [vmem:[%s1761 + $0x34] sm:$0xf]
      %v1776 = vld [vmem:[%s1761 + $0x38] sm:$0xf]
      %v1777 = vld [vmem:[%s1761 + $0x3c] sm:$0xf]
      %v1778 = vunpack.c.l.b16 %v1708
      %v1779 = vunpack.c.l.b16 %v1711
      %v1780 = vunpack.c.l.b16 %v1715
      %v1781 = vunpack.c.l.b16 %v1718
      %v1782 = vunpack.c.l.b16 %v1722
      %v1783 = vunpack.c.l.b16 %v1725
      %v1784 = vunpack.c.l.b16 %v1729
      %v1785 = vunpack.c.l.b16 %v1732
      %v1786 = vunpack.c.l.b16 %v1736
      %v1787 = vunpack.c.l.b16 %v1739
      %v1788 = vunpack.c.l.b16 %v1743
      %v1789 = vunpack.c.l.b16 %v1746
      %v1790 = vunpack.c.l.b16 %v1750
      %v1791 = vunpack.c.l.b16 %v1753
      %v1792 = vunpack.c.l.b16 %v1757
      %v1793 = vunpack.c.l.b16 %v1760
      %v1794 = vpack.c.b16 %v1779, %v1778
      %v1795 = vpack.c.b16 %v1781, %v1780
      %v1796 = vpack.c.b16 %v1783, %v1782
      %v1797 = vpack.c.b16 %v1785, %v1784
      %v1798 = vpack.c.b16 %v1787, %v1786
      %v1799 = vpack.c.b16 %v1789, %v1788
      %v1800 = vpack.c.b16 %v1791, %v1790
      %v1801 = vpack.c.b16 %v1793, %v1792
      %v1826 = vunpack.c.l.b16 %v1762
      %v1827 = vunpack.c.l.b16 %v1763
      %v1828 = vunpack.c.l.b16 %v1764
      %v1829 = vunpack.c.l.b16 %v1765
      %v1830 = vunpack.c.l.b16 %v1766
      %v1831 = vunpack.c.l.b16 %v1767
      %v1832 = vunpack.c.l.b16 %v1768
      %v1833 = vunpack.c.l.b16 %v1769
      %v1834 = vunpack.c.l.b16 %v1770
      %v1835 = vunpack.c.l.b16 %v1771
      %v1836 = vunpack.c.l.b16 %v1772
      %v1837 = vunpack.c.l.b16 %v1773
      %v1838 = vunpack.c.l.b16 %v1774
      %v1839 = vunpack.c.l.b16 %v1775
      %v1840 = vunpack.c.l.b16 %v1776
      %v1841 = vunpack.c.l.b16 %v1777
      %v1842 = vpack.c.b16 %v1827, %v1826
      %v1843 = vpack.c.b16 %v1829, %v1828
      %v1844 = vpack.c.b16 %v1831, %v1830
      %v1845 = vpack.c.b16 %v1833, %v1832
      %v1846 = vpack.c.b16 %v1835, %v1834
      %v1847 = vpack.c.b16 %v1837, %v1836
      %v1848 = vpack.c.b16 %v1839, %v1838
      %v1849 = vpack.c.b16 %v1841, %v1840
      %1858 = vmatprep.subr.bf16.mxu0 0
      %1859 = vmatpush1.bf16.msra.mxu0 %v1849
      %1860 = vmatprep.subr.bf16.mxu0 0
      %1861 = vmatpush1.bf16.msra.mxu0 %v1848
      %1862 = vmatprep.subr.bf16.mxu0 0
      %1863 = vmatpush1.bf16.msra.mxu0 %v1847
      %1864 = vmatprep.subr.bf16.mxu0 0
      %1865 = vmatpush1.bf16.msra.mxu0 %v1846
      %1866 = vmatprep.subr.bf16.mxu0 0
      %1867 = vmatpush1.bf16.msra.mxu0 %v1845
      %1868 = vmatprep.subr.bf16.mxu0 0
      %1869 = vmatpush1.bf16.msra.mxu0 %v1844
      %1870 = vmatprep.subr.bf16.mxu0 0
      %1871 = vmatpush1.bf16.msra.mxu0 %v1843
      %1872 = vmatprep.subr.bf16.mxu0 0
      %1873 = vmatpush1.bf16.msra.mxu0 %v1842
      %1874 = vmatprep.subr.bf16.mxu0 0
      %1875 = vmatpush2.bf16.msra.mxu0 0
      %1876 = vmatprep.subr.bf16.mxu0 0
      %1877 = vmatpush2.bf16.msra.mxu0 0
      %1878 = vmatprep.subr.bf16.mxu0 0
      %1879 = vmatpush2.bf16.msra.mxu0 0
      %1880 = vmatprep.subr.bf16.mxu0 0
      %1881 = vmatpush2.bf16.msra.mxu0 0
      %1882 = vmatprep.subr.bf16.mxu0 0
      %1883 = vmatpush2.bf16.msra.mxu0 0
      %1884 = vmatprep.subr.bf16.mxu0 0
      %1885 = vmatpush2.bf16.msra.mxu0 0
      %1886 = vmatprep.subr.bf16.mxu0 0
      %1887 = vmatpush2.bf16.msra.mxu0 0
      %1888 = vmatprep.subr.bf16.mxu0 0
      %1889 = vmatpush2.bf16.msra.mxu0 0
      %1890 = vmatprep.mubr.bf16.mxu0 0
      %1891 = vmatmul.mubr.bf16.gmra.mxu0 %v1794
      %v1892 = vpop.f32.mrf.mxu0
      %v1893 = vadd.f32 0.0, %v1892
      %v1894 = vpop.f32.mrf.mxu0
      %v1895 = vpop.f32.mrf.mxu0
      %v1896 = vadd.f32 0.0, %v1895
      %v1897 = vpop.f32.mrf.mxu0
      %1898 = vmatprep.mubr.bf16.mxu0 0
      %1899 = vmatmul.mubr.bf16.gmra.mxu0 %v1795
      %v1900 = vpop.f32.mrf.mxu0
      %v1901 = vadd.f32 0.0, %v1900
      %v1902 = vpop.f32.mrf.mxu0
      %v1903 = vpop.f32.mrf.mxu0
      %v1904 = vadd.f32 0.0, %v1903
      %v1905 = vpop.f32.mrf.mxu0
      %1906 = vmatprep.mubr.bf16.mxu0 0
      %1907 = vmatmul.mubr.bf16.gmra.mxu0 %v1796
      %v1908 = vpop.f32.mrf.mxu0
      %v1909 = vadd.f32 0.0, %v1908
      %v1910 = vpop.f32.mrf.mxu0
      %v1911 = vpop.f32.mrf.mxu0
      %v1912 = vadd.f32 0.0, %v1911
      %v1913 = vpop.f32.mrf.mxu0
      %1914 = vmatprep.mubr.bf16.mxu0 0
      %1915 = vmatmul.mubr.bf16.gmra.mxu0 %v1797
      %v1916 = vpop.f32.mrf.mxu0
      %v1917 = vadd.f32 0.0, %v1916
      %v1918 = vpop.f32.mrf.mxu0
      %v1919 = vpop.f32.mrf.mxu0
      %v1920 = vadd.f32 0.0, %v1919
      %v1921 = vpop.f32.mrf.mxu0
      %1922 = vmatprep.mubr.bf16.mxu0 0
      %1923 = vmatmul.mubr.bf16.gmra.mxu0 %v1798
      %v1924 = vpop.f32.mrf.mxu0
      %v1925 = vadd.f32 0.0, %v1924
      %v1926 = vpop.f32.mrf.mxu0
      %v1927 = vpop.f32.mrf.mxu0
      %v1928 = vadd.f32 0.0, %v1927
      %v1929 = vpop.f32.mrf.mxu0
      %1930 = vmatprep.mubr.bf16.mxu0 0
      %1931 = vmatmul.mubr.bf16.gmra.mxu0 %v1799
      %v1932 = vpop.f32.mrf.mxu0
      %v1933 = vadd.f32 0.0, %v1932
      %v1934 = vpop.f32.mrf.mxu0
      %v1935 = vpop.f32.mrf.mxu0
      %v1936 = vadd.f32 0.0, %v1935
      %v1937 = vpop.f32.mrf.mxu0
      %1938 = vmatprep.mubr.bf16.mxu0 0
      %1939 = vmatmul.mubr.bf16.gmra.mxu0 %v1800
      %v1940 = vpop.f32.mrf.mxu0
      %v1941 = vadd.f32 0.0, %v1940
      %v1942 = vpop.f32.mrf.mxu0
      %v1943 = vpop.f32.mrf.mxu0
      %v1944 = vadd.f32 0.0, %v1943
      %v1945 = vpop.f32.mrf.mxu0
      %1946 = vmatprep.mubr.bf16.mxu0 0
      %1947 = vmatmul.mubr.bf16.gmra.mxu0 %v1801
      %v1948 = vpop.f32.mrf.mxu0
      %v1949 = vadd.f32 0.0, %v1948
      %v1950 = vpop.f32.mrf.mxu0
      %v1951 = vpop.f32.mrf.mxu0
      %v1952 = vadd.f32 0.0, %v1951
      %v1953 = vpop.f32.mrf.mxu0
      %1954 = vdwg.mxu0
      %v1955 = vadd.f32 %v1678, %v1893
      %v1956 = vadd.f32 %v1679, %v1896
      %v1957 = vadd.f32 %v1680, %v1901
      %v1958 = vadd.f32 %v1681, %v1904
      %v1959 = vadd.f32 %v1682, %v1909
      %v1960 = vadd.f32 %v1683, %v1912
      %v1961 = vadd.f32 %v1684, %v1917
      %v1962 = vadd.f32 %v1685, %v1920
      %v1963 = vadd.f32 %v1686, %v1925
      %v1964 = vadd.f32 %v1687, %v1928
      %v1965 = vadd.f32 %v1688, %v1933
      %v1966 = vadd.f32 %v1689, %v1936
      %v1967 = vadd.f32 %v1690, %v1941
      %v1968 = vadd.f32 %v1691, %v1944
      %v1969 = vadd.f32 %v1692, %v1949
      %v1970 = vadd.f32 %v1693, %v1952
      %v1972 = vrot.slane %v310, 5
      %v1973 = vrot.slane %v1972, 4
      %v1974 = vrot.slane %v311, 5
      %v1975 = vsel %vm1704, %v1973, %v1974
      %v1976 = vrot.slane %v1974, 4
      %v1977 = vrot.slane %v312, 5
      %v1978 = vsel %vm1704, %v1976, %v1977
      %s1979 = scalar_lea.vmem %s3, 320
      %v1980 = vld [vmem:[%s1979] sm:$0xf]
      %v1981 = vld [vmem:[%s1979 + $0x4] sm:$0xf]
      %v1982 = vld [vmem:[%s1979 + $0x8] sm:$0xf]
      %v1983 = vld [vmem:[%s1979 + $0xc] sm:$0xf]
      %v1984 = vld [vmem:[%s1979 + $0x10] sm:$0xf]
      %v1985 = vld [vmem:[%s1979 + $0x14] sm:$0xf]
      %v1986 = vld [vmem:[%s1979 + $0x18] sm:$0xf]
      %v1987 = vld [vmem:[%s1979 + $0x1c] sm:$0xf]
      %v1988 = vld [vmem:[%s1979 + $0x20] sm:$0xf]
      %v1989 = vld [vmem:[%s1979 + $0x24] sm:$0xf]
      %v1990 = vld [vmem:[%s1979 + $0x28] sm:$0xf]
      %v1991 = vld [vmem:[%s1979 + $0x2c] sm:$0xf]
      %v1992 = vld [vmem:[%s1979 + $0x30] sm:$0xf]
      %v1993 = vld [vmem:[%s1979 + $0x34] sm:$0xf]
      %v1994 = vld [vmem:[%s1979 + $0x38] sm:$0xf]
      %v1995 = vld [vmem:[%s1979 + $0x3c] sm:$0xf]
      %v1996 = vunpack.c.l.b16 %v1975
      %v1997 = vunpack.c.l.b16 %v1978
      %v1998 = vpack.c.b16 %v1997, %v1996
      %v2016 = vunpack.c.l.b16 %v1980
      %v2017 = vunpack.c.l.b16 %v1981
      %v2018 = vunpack.c.l.b16 %v1982
      %v2019 = vunpack.c.l.b16 %v1983
      %v2020 = vunpack.c.l.b16 %v1984
      %v2021 = vunpack.c.l.b16 %v1985
      %v2022 = vunpack.c.l.b16 %v1986
      %v2023 = vunpack.c.l.b16 %v1987
      %v2024 = vunpack.c.l.b16 %v1988
      %v2025 = vunpack.c.l.b16 %v1989
      %v2026 = vunpack.c.l.b16 %v1990
      %v2027 = vunpack.c.l.b16 %v1991
      %v2028 = vunpack.c.l.b16 %v1992
      %v2029 = vunpack.c.l.b16 %v1993
      %v2030 = vunpack.c.l.b16 %v1994
      %v2031 = vunpack.c.l.b16 %v1995
      %v2032 = vpack.c.b16 %v2017, %v2016
      %v2033 = vpack.c.b16 %v2019, %v2018
      %v2034 = vpack.c.b16 %v2021, %v2020
      %v2035 = vpack.c.b16 %v2023, %v2022
      %v2036 = vpack.c.b16 %v2025, %v2024
      %v2037 = vpack.c.b16 %v2027, %v2026
      %v2038 = vpack.c.b16 %v2029, %v2028
      %v2039 = vpack.c.b16 %v2031, %v2030
      %2048 = vmatprep.subr.bf16.mxu0 0
      %2049 = vmatpush1.bf16.msra.mxu0 %v2039
      %2050 = vmatprep.subr.bf16.mxu0 0
      %2051 = vmatpush1.bf16.msra.mxu0 %v2038
      %2052 = vmatprep.subr.bf16.mxu0 0
      %2053 = vmatpush1.bf16.msra.mxu0 %v2037
      %2054 = vmatprep.subr.bf16.mxu0 0
      %2055 = vmatpush1.bf16.msra.mxu0 %v2036
      %2056 = vmatprep.subr.bf16.mxu0 0
      %2057 = vmatpush1.bf16.msra.mxu0 %v2035
      %2058 = vmatprep.subr.bf16.mxu0 0
      %2059 = vmatpush1.bf16.msra.mxu0 %v2034
      %2060 = vmatprep.subr.bf16.mxu0 0
      %2061 = vmatpush1.bf16.msra.mxu0 %v2033
      %2062 = vmatprep.subr.bf16.mxu0 0
      %2063 = vmatpush1.bf16.msra.mxu0 %v2032
      %2064 = vmatprep.subr.bf16.mxu0 0
      %2065 = vmatpush2.bf16.msra.mxu0 0
      %2066 = vmatprep.subr.bf16.mxu0 0
      %2067 = vmatpush2.bf16.msra.mxu0 0
      %2068 = vmatprep.subr.bf16.mxu0 0
      %2069 = vmatpush2.bf16.msra.mxu0 0
      %2070 = vmatprep.subr.bf16.mxu0 0
      %2071 = vmatpush2.bf16.msra.mxu0 0
      %2072 = vmatprep.subr.bf16.mxu0 0
      %2073 = vmatpush2.bf16.msra.mxu0 0
      %2074 = vmatprep.subr.bf16.mxu0 0
      %2075 = vmatpush2.bf16.msra.mxu0 0
      %2076 = vmatprep.subr.bf16.mxu0 0
      %2077 = vmatpush2.bf16.msra.mxu0 0
      %2078 = vmatprep.subr.bf16.mxu0 0
      %2079 = vmatpush2.bf16.msra.mxu0 0
      %2080 = vmatprep.mubr.bf16.mxu0 0
      %2081 = vmatmul.mubr.bf16.gmra.mxu0 %v1795
      %v2082 = vpop.f32.mrf.mxu0
      %v2083 = vadd.f32 0.0, %v2082
      %v2084 = vpop.f32.mrf.mxu0
      %v2085 = vpop.f32.mrf.mxu0
      %v2086 = vadd.f32 0.0, %v2085
      %v2087 = vpop.f32.mrf.mxu0
      %2088 = vmatprep.mubr.bf16.mxu0 0
      %2089 = vmatmul.mubr.bf16.gmra.mxu0 %v1796
      %v2090 = vpop.f32.mrf.mxu0
      %v2091 = vadd.f32 0.0, %v2090
      %v2092 = vpop.f32.mrf.mxu0
      %v2093 = vpop.f32.mrf.mxu0
      %v2094 = vadd.f32 0.0, %v2093
      %v2095 = vpop.f32.mrf.mxu0
      %2096 = vmatprep.mubr.bf16.mxu0 0
      %2097 = vmatmul.mubr.bf16.gmra.mxu0 %v1797
      %v2098 = vpop.f32.mrf.mxu0
      %v2099 = vadd.f32 0.0, %v2098
      %v2100 = vpop.f32.mrf.mxu0
      %v2101 = vpop.f32.mrf.mxu0
      %v2102 = vadd.f32 0.0, %v2101
      %v2103 = vpop.f32.mrf.mxu0
      %2104 = vmatprep.mubr.bf16.mxu0 0
      %2105 = vmatmul.mubr.bf16.gmra.mxu0 %v1798
      %v2106 = vpop.f32.mrf.mxu0
      %v2107 = vadd.f32 0.0, %v2106
      %v2108 = vpop.f32.mrf.mxu0
      %v2109 = vpop.f32.mrf.mxu0
      %v2110 = vadd.f32 0.0, %v2109
      %v2111 = vpop.f32.mrf.mxu0
      %2112 = vmatprep.mubr.bf16.mxu0 0
      %2113 = vmatmul.mubr.bf16.gmra.mxu0 %v1799
      %v2114 = vpop.f32.mrf.mxu0
      %v2115 = vadd.f32 0.0, %v2114
      %v2116 = vpop.f32.mrf.mxu0
      %v2117 = vpop.f32.mrf.mxu0
      %v2118 = vadd.f32 0.0, %v2117
      %v2119 = vpop.f32.mrf.mxu0
      %2120 = vmatprep.mubr.bf16.mxu0 0
      %2121 = vmatmul.mubr.bf16.gmra.mxu0 %v1800
      %v2122 = vpop.f32.mrf.mxu0
      %v2123 = vadd.f32 0.0, %v2122
      %v2124 = vpop.f32.mrf.mxu0
      %v2125 = vpop.f32.mrf.mxu0
      %v2126 = vadd.f32 0.0, %v2125
      %v2127 = vpop.f32.mrf.mxu0
      %2128 = vmatprep.mubr.bf16.mxu0 0
      %2129 = vmatmul.mubr.bf16.gmra.mxu0 %v1801
      %v2130 = vpop.f32.mrf.mxu0
      %v2131 = vadd.f32 0.0, %v2130
      %v2132 = vpop.f32.mrf.mxu0
      %v2133 = vpop.f32.mrf.mxu0
      %v2134 = vadd.f32 0.0, %v2133
      %v2135 = vpop.f32.mrf.mxu0
      %2136 = vmatprep.mubr.bf16.mxu0 0
      %2137 = vmatmul.mubr.bf16.gmra.mxu0 %v1998
      %v2138 = vpop.f32.mrf.mxu0
      %v2139 = vadd.f32 0.0, %v2138
      %v2140 = vpop.f32.mrf.mxu0
      %v2141 = vpop.f32.mrf.mxu0
      %v2142 = vadd.f32 0.0, %v2141
      %v2143 = vpop.f32.mrf.mxu0
      %2144 = vdwg.mxu0
      %v2145 = vadd.f32 %v1955, %v2083
      %v2146 = vadd.f32 %v1956, %v2086
      %v2147 = vadd.f32 %v1957, %v2091
      %v2148 = vadd.f32 %v1958, %v2094
      %v2149 = vadd.f32 %v1959, %v2099
      %v2150 = vadd.f32 %v1960, %v2102
      %v2151 = vadd.f32 %v1961, %v2107
      %v2152 = vadd.f32 %v1962, %v2110
      %v2153 = vadd.f32 %v1963, %v2115
      %v2154 = vadd.f32 %v1964, %v2118
      %v2155 = vadd.f32 %v1965, %v2123
      %v2156 = vadd.f32 %v1966, %v2126
      %v2157 = vadd.f32 %v1967, %v2131
      %v2158 = vadd.f32 %v1968, %v2134
      %v2159 = vadd.f32 %v1969, %v2139
      %v2160 = vadd.f32 %v1970, %v2142
      %v2162 = vrot.slane %v313, 5
      %v2163 = vrot.slane %v2162, 4
      %v2164 = vrot.slane %v314, 5
      %v2165 = vsel %vm1704, %v2163, %v2164
      %v2166 = vrot.slane %v2164, 4
      %v2167 = vrot.slane %v315, 5
      %v2168 = vsel %vm1704, %v2166, %v2167
      %s2169 = scalar_lea.vmem %s3, 512
      %v2170 = vld [vmem:[%s2169] sm:$0xf]
      %v2171 = vld [vmem:[%s2169 + $0x4] sm:$0xf]
      %v2172 = vld [vmem:[%s2169 + $0x8] sm:$0xf]
      %v2173 = vld [vmem:[%s2169 + $0xc] sm:$0xf]
      %v2174 = vld [vmem:[%s2169 + $0x10] sm:$0xf]
      %v2175 = vld [vmem:[%s2169 + $0x14] sm:$0xf]
      %v2176 = vld [vmem:[%s2169 + $0x18] sm:$0xf]
      %v2177 = vld [vmem:[%s2169 + $0x1c] sm:$0xf]
      %v2178 = vld [vmem:[%s2169 + $0x20] sm:$0xf]
      %v2179 = vld [vmem:[%s2169 + $0x24] sm:$0xf]
      %v2180 = vld [vmem:[%s2169 + $0x28] sm:$0xf]
      %v2181 = vld [vmem:[%s2169 + $0x2c] sm:$0xf]
      %v2182 = vld [vmem:[%s2169 + $0x30] sm:$0xf]
      %v2183 = vld [vmem:[%s2169 + $0x34] sm:$0xf]
      %v2184 = vld [vmem:[%s2169 + $0x38] sm:$0xf]
      %v2185 = vld [vmem:[%s2169 + $0x3c] sm:$0xf]
      %v2186 = vunpack.c.l.b16 %v2165
      %v2187 = vunpack.c.l.b16 %v2168
      %v2188 = vpack.c.b16 %v2187, %v2186
      %v2206 = vunpack.c.l.b16 %v2170
      %v2207 = vunpack.c.l.b16 %v2171
      %v2208 = vunpack.c.l.b16 %v2172
      %v2209 = vunpack.c.l.b16 %v2173
      %v2210 = vunpack.c.l.b16 %v2174
      %v2211 = vunpack.c.l.b16 %v2175
      %v2212 = vunpack.c.l.b16 %v2176
      %v2213 = vunpack.c.l.b16 %v2177
      %v2214 = vunpack.c.l.b16 %v2178
      %v2215 = vunpack.c.l.b16 %v2179
      %v2216 = vunpack.c.l.b16 %v2180
      %v2217 = vunpack.c.l.b16 %v2181
      %v2218 = vunpack.c.l.b16 %v2182
      %v2219 = vunpack.c.l.b16 %v2183
      %v2220 = vunpack.c.l.b16 %v2184
      %v2221 = vunpack.c.l.b16 %v2185
      %v2222 = vpack.c.b16 %v2207, %v2206
      %v2223 = vpack.c.b16 %v2209, %v2208
      %v2224 = vpack.c.b16 %v2211, %v2210
      %v2225 = vpack.c.b16 %v2213, %v2212
      %v2226 = vpack.c.b16 %v2215, %v2214
      %v2227 = vpack.c.b16 %v2217, %v2216
      %v2228 = vpack.c.b16 %v2219, %v2218
      %v2229 = vpack.c.b16 %v2221, %v2220
      %2238 = vmatprep.subr.bf16.mxu0 0
      %2239 = vmatpush1.bf16.msra.mxu0 %v2229
      %2240 = vmatprep.subr.bf16.mxu0 0
      %2241 = vmatpush1.bf16.msra.mxu0 %v2228
      %2242 = vmatprep.subr.bf16.mxu0 0
      %2243 = vmatpush1.bf16.msra.mxu0 %v2227
      %2244 = vmatprep.subr.bf16.mxu0 0
      %2245 = vmatpush1.bf16.msra.mxu0 %v2226
      %2246 = vmatprep.subr.bf16.mxu0 0
      %2247 = vmatpush1.bf16.msra.mxu0 %v2225
      %2248 = vmatprep.subr.bf16.mxu0 0
      %2249 = vmatpush1.bf16.msra.mxu0 %v2224
      %2250 = vmatprep.subr.bf16.mxu0 0
      %2251 = vmatpush1.bf16.msra.mxu0 %v2223
      %2252 = vmatprep.subr.bf16.mxu0 0
      %2253 = vmatpush1.bf16.msra.mxu0 %v2222
      %2254 = vmatprep.subr.bf16.mxu0 0
      %2255 = vmatpush2.bf16.msra.mxu0 0
      %2256 = vmatprep.subr.bf16.mxu0 0
      %2257 = vmatpush2.bf16.msra.mxu0 0
      %2258 = vmatprep.subr.bf16.mxu0 0
      %2259 = vmatpush2.bf16.msra.mxu0 0
      %2260 = vmatprep.subr.bf16.mxu0 0
      %2261 = vmatpush2.bf16.msra.mxu0 0
      %2262 = vmatprep.subr.bf16.mxu0 0
      %2263 = vmatpush2.bf16.msra.mxu0 0
      %2264 = vmatprep.subr.bf16.mxu0 0
      %2265 = vmatpush2.bf16.msra.mxu0 0
      %2266 = vmatprep.subr.bf16.mxu0 0
      %2267 = vmatpush2.bf16.msra.mxu0 0
      %2268 = vmatprep.subr.bf16.mxu0 0
      %2269 = vmatpush2.bf16.msra.mxu0 0
      %2270 = vmatprep.mubr.bf16.mxu0 0
      %2271 = vmatmul.mubr.bf16.gmra.mxu0 %v1796
      %v2272 = vpop.f32.mrf.mxu0
      %v2273 = vadd.f32 0.0, %v2272
      %v2274 = vpop.f32.mrf.mxu0
      %v2275 = vpop.f32.mrf.mxu0
      %v2276 = vadd.f32 0.0, %v2275
      %v2277 = vpop.f32.mrf.mxu0
      %2278 = vmatprep.mubr.bf16.mxu0 0
      %2279 = vmatmul.mubr.bf16.gmra.mxu0 %v1797
      %v2280 = vpop.f32.mrf.mxu0
      %v2281 = vadd.f32 0.0, %v2280
      %v2282 = vpop.f32.mrf.mxu0
      %v2283 = vpop.f32.mrf.mxu0
      %v2284 = vadd.f32 0.0, %v2283
      %v2285 = vpop.f32.mrf.mxu0
      %2286 = vmatprep.mubr.bf16.mxu0 0
      %2287 = vmatmul.mubr.bf16.gmra.mxu0 %v1798
      %v2288 = vpop.f32.mrf.mxu0
      %v2289 = vadd.f32 0.0, %v2288
      %v2290 = vpop.f32.mrf.mxu0
      %v2291 = vpop.f32.mrf.mxu0
      %v2292 = vadd.f32 0.0, %v2291
      %v2293 = vpop.f32.mrf.mxu0
      %2294 = vmatprep.mubr.bf16.mxu0 0
      %2295 = vmatmul.mubr.bf16.gmra.mxu0 %v1799
      %v2296 = vpop.f32.mrf.mxu0
      %v2297 = vadd.f32 0.0, %v2296
      %v2298 = vpop.f32.mrf.mxu0
      %v2299 = vpop.f32.mrf.mxu0
      %v2300 = vadd.f32 0.0, %v2299
      %v2301 = vpop.f32.mrf.mxu0
      %2302 = vmatprep.mubr.bf16.mxu0 0
      %2303 = vmatmul.mubr.bf16.gmra.mxu0 %v1800
      %v2304 = vpop.f32.mrf.mxu0
      %v2305 = vadd.f32 0.0, %v2304
      %v2306 = vpop.f32.mrf.mxu0
      %v2307 = vpop.f32.mrf.mxu0
      %v2308 = vadd.f32 0.0, %v2307
      %v2309 = vpop.f32.mrf.mxu0
      %2310 = vmatprep.mubr.bf16.mxu0 0
      %2311 = vmatmul.mubr.bf16.gmra.mxu0 %v1801
      %v2312 = vpop.f32.mrf.mxu0
      %v2313 = vadd.f32 0.0, %v2312
      %v2314 = vpop.f32.mrf.mxu0
      %v2315 = vpop.f32.mrf.mxu0
      %v2316 = vadd.f32 0.0, %v2315
      %v2317 = vpop.f32.mrf.mxu0
      %2318 = vmatprep.mubr.bf16.mxu0 0
      %2319 = vmatmul.mubr.bf16.gmra.mxu0 %v1998
      %v2320 = vpop.f32.mrf.mxu0
      %v2321 = vadd.f32 0.0, %v2320
      %v2322 = vpop.f32.mrf.mxu0
      %v2323 = vpop.f32.mrf.mxu0
      %v2324 = vadd.f32 0.0, %v2323
      %v2325 = vpop.f32.mrf.mxu0
      %2326 = vmatprep.mubr.bf16.mxu0 0
      %2327 = vmatmul.mubr.bf16.gmra.mxu0 %v2188
      %v2328 = vpop.f32.mrf.mxu0
      %v2329 = vadd.f32 0.0, %v2328
      %v2330 = vpop.f32.mrf.mxu0
      %v2331 = vpop.f32.mrf.mxu0
      %v2332 = vadd.f32 0.0, %v2331
      %v2333 = vpop.f32.mrf.mxu0
      %2334 = vdwg.mxu0
      %v2335 = vadd.f32 %v2145, %v2273
      %v2336 = vadd.f32 %v2146, %v2276
      %v2337 = vadd.f32 %v2147, %v2281
      %v2338 = vadd.f32 %v2148, %v2284
      %v2339 = vadd.f32 %v2149, %v2289
      %v2340 = vadd.f32 %v2150, %v2292
      %v2341 = vadd.f32 %v2151, %v2297
      %v2342 = vadd.f32 %v2152, %v2300
      %v2343 = vadd.f32 %v2153, %v2305
      %v2344 = vadd.f32 %v2154, %v2308
      %v2345 = vadd.f32 %v2155, %v2313
      %v2346 = vadd.f32 %v2156, %v2316
      %v2347 = vadd.f32 %v2157, %v2321
      %v2348 = vadd.f32 %v2158, %v2324
      %v2349 = vadd.f32 %v2159, %v2329
      %v2350 = vadd.f32 %v2160, %v2332
      %v2351 = vpack.c.bf16 %v2336, %v2335
      %v2352 = vpack.c.bf16 %v2338, %v2337
      %v2353 = vpack.c.bf16 %v2340, %v2339
      %v2354 = vpack.c.bf16 %v2342, %v2341
      %v2355 = vpack.c.bf16 %v2344, %v2343
      %v2356 = vpack.c.bf16 %v2346, %v2345
      %v2357 = vpack.c.bf16 %v2348, %v2347
      %v2358 = vpack.c.bf16 %v2350, %v2349
      %v2367 = vunpack.c.l.b16 %v2351
      %v2368 = vunpack.c.h.b16 %v2351
      %v2369 = vunpack.c.l.b16 %v2352
      %v2370 = vunpack.c.h.b16 %v2352
      %v2371 = vunpack.c.l.b16 %v2353
      %v2372 = vunpack.c.h.b16 %v2353
      %v2373 = vunpack.c.l.b16 %v2354
      %v2374 = vunpack.c.h.b16 %v2354
      %v2375 = vunpack.c.l.b16 %v2355
      %v2376 = vunpack.c.h.b16 %v2355
      %v2377 = vunpack.c.l.b16 %v2356
      %v2378 = vunpack.c.h.b16 %v2356
      %v2379 = vunpack.c.l.b16 %v2357
      %v2380 = vunpack.c.h.b16 %v2357
      %v2381 = vunpack.c.l.b16 %v2358
      %v2382 = vunpack.c.h.b16 %v2358
      %v2383 = vpack.c.b16 %v2367, %v2367
      %v2384 = vpack.c.b16 %v2368, %v2368
      %v2385 = vpack.c.b16 %v2369, %v2369
      %v2386 = vpack.c.b16 %v2370, %v2370
      %v2387 = vpack.c.b16 %v2371, %v2371
      %v2388 = vpack.c.b16 %v2372, %v2372
      %v2389 = vpack.c.b16 %v2373, %v2373
      %v2390 = vpack.c.b16 %v2374, %v2374
      %v2391 = vpack.c.b16 %v2375, %v2375
      %v2392 = vpack.c.b16 %v2376, %v2376
      %v2393 = vpack.c.b16 %v2377, %v2377
      %v2394 = vpack.c.b16 %v2378, %v2378
      %v2395 = vpack.c.b16 %v2379, %v2379
      %v2396 = vpack.c.b16 %v2380, %v2380
      %v2397 = vpack.c.b16 %v2381, %v2381
      %v2398 = vpack.c.b16 %v2382, %v2382
      %2415 = vst [vmem:[%s275] sm:$0xf] %v2383
      %2416 = vst [vmem:[%s275 + $0x4] sm:$0xf] %v2384
      %2417 = vst [vmem:[%s275 + $0x8] sm:$0xf] %v2385
      %2418 = vst [vmem:[%s275 + $0xc] sm:$0xf] %v2386
      %2419 = vst [vmem:[%s275 + $0x10] sm:$0xf] %v2387
      %2420 = vst [vmem:[%s275 + $0x14] sm:$0xf] %v2388
      %2421 = vst [vmem:[%s275 + $0x18] sm:$0xf] %v2389
      %2422 = vst [vmem:[%s275 + $0x1c] sm:$0xf] %v2390
      %2423 = vst [vmem:[%s275 + $0x20] sm:$0xf] %v2391
      %2424 = vst [vmem:[%s275 + $0x24] sm:$0xf] %v2392
      %2425 = vst [vmem:[%s275 + $0x28] sm:$0xf] %v2393
      %2426 = vst [vmem:[%s275 + $0x2c] sm:$0xf] %v2394
      %2427 = vst [vmem:[%s275 + $0x30] sm:$0xf] %v2395
      %2428 = vst [vmem:[%s275 + $0x34] sm:$0xf] %v2396
      %2429 = vst [vmem:[%s275 + $0x38] sm:$0xf] %v2397
      %2430 = vst [vmem:[%s275 + $0x3c] sm:$0xf] %v2398
      %v2431 = vadd.f32 %v2335, %v2336
      %v2432 = vadd.f32 %v2431, %v2337
      %v2433 = vadd.f32 %v2432, %v2338
      %v2434 = vadd.f32 %v2433, %v2339
      %v2435 = vadd.f32 %v2434, %v2340
      %v2436 = vadd.f32 %v2435, %v2341
      %v2437 = vadd.f32 %v2436, %v2342
      %v2438 = vadd.f32 %v2437, %v2343
      %v2439 = vadd.f32 %v2438, %v2344
      %v2440 = vadd.f32 %v2439, %v2345
      %v2441 = vadd.f32 %v2440, %v2346
      %v2442 = vadd.f32 %v2441, %v2347
      %v2443 = vadd.f32 %v2442, %v2348
      %v2444 = vadd.f32 %v2443, %v2349
      %v2445 = vadd.f32 %v2444, %v2350
      %v2446 = vrot.slane %v2445, 4
      %v2447 = vadd.f32 %v2445, %v2446
      %v2448 = vrot.slane %v2447, 2
      %v2449 = vadd.f32 %v2447, %v2448
      %v2450 = vrot.slane %v2449, 1
      %v2451 = vadd.f32 %v2449, %v2450
      %v2452 = vmul.f32 %v2335, %v2335
      %v2453 = vmul.f32 %v2336, %v2336
      %v2454 = vmul.f32 %v2337, %v2337
      %v2455 = vmul.f32 %v2338, %v2338
      %v2456 = vmul.f32 %v2339, %v2339
      %v2457 = vmul.f32 %v2340, %v2340
      %v2458 = vmul.f32 %v2341, %v2341
      %v2459 = vmul.f32 %v2342, %v2342
      %v2460 = vmul.f32 %v2343, %v2343
      %v2461 = vmul.f32 %v2344, %v2344
      %v2462 = vmul.f32 %v2345, %v2345
      %v2463 = vmul.f32 %v2346, %v2346
      %v2464 = vmul.f32 %v2347, %v2347
      %v2465 = vmul.f32 %v2348, %v2348
      %v2466 = vmul.f32 %v2349, %v2349
      %v2467 = vmul.f32 %v2350, %v2350
      %v2468 = vadd.f32 %v2452, %v2453
      %v2469 = vadd.f32 %v2468, %v2454
      %v2470 = vadd.f32 %v2469, %v2455
      %v2471 = vadd.f32 %v2470, %v2456
      %v2472 = vadd.f32 %v2471, %v2457
      %v2473 = vadd.f32 %v2472, %v2458
      %v2474 = vadd.f32 %v2473, %v2459
      %v2475 = vadd.f32 %v2474, %v2460
      %v2476 = vadd.f32 %v2475, %v2461
      %v2477 = vadd.f32 %v2476, %v2462
      %v2478 = vadd.f32 %v2477, %v2463
      %v2479 = vadd.f32 %v2478, %v2464
      %v2480 = vadd.f32 %v2479, %v2465
      %v2481 = vadd.f32 %v2480, %v2466
      %v2482 = vadd.f32 %v2481, %v2467
      %v2483 = vrot.slane %v2482, 4
      %v2484 = vadd.f32 %v2482, %v2483
      %v2485 = vrot.slane %v2484, 2
      %v2486 = vadd.f32 %v2484, %v2485
      %v2487 = vrot.slane %v2486, 1
      %v2488 = vadd.f32 %v2486, %v2487
      %vm2489 = vcmask 1040384
      %v2490 = vsel %vm2489, %v2451, %v2488
      %2491 = vst [vmem:[%s284] sm:$0x3] %v2490
      %s2492 = smul.u32 8, %s22
      %p2493 = scmp.lt.s32.totalorder %s21, 1
      %s2494 = scalar_select %p2493, %s21, 1
      %p2495 = scmp.lt.s32.totalorder %s2492, 15
      %s2496 = scalar_select %p2495, %s2492, 15
      %s2497 = smul.addr %s2496, 2
      %s2498 = smul.addr %s2494, 32
      %s2499 = sadd.s32 %s2497, %s2498
      %s2500 = smul.addr %s2499, 4
      %s2501 = scalar_lea.vmem %s4, %s2500
      %p2502 = scmp.lt.s32.totalorder %s21, 1
      %s2503 = scalar_select %p2502, %s21, 1
      %p2504 = scmp.lt.s32.totalorder %s22, 1
      %s2505 = scalar_select %p2504, %s22, 1
      %s2506 = smul.addr %s2503, 2
      %s2507 = sadd.s32 %s2505, %s2506
      %s2508 = smul.addr %s2507, 2
      %s2509 = scalar_lea.vmem %s5, %s2508
      // Predicated region
      $region37: #{double_conv_forward.3} parent=35 // pred_check
        %p2510 = pneg %p140
      $region38: #{double_conv_forward.3} parent=35 // pred_check_branch
        %2512 = sbr.rel (%p2510) target = $region40
      $region39: #{double_conv_forward.3} parent=35 // pred_region
        %s2513 = smul.u32 8, %s22
      $region40: #{double_conv_forward.3} parent=35 // pred_fallthru
        _
      // Predicated region
      $region41: #{double_conv_forward.3} parent=35 // pred_check
        %p2514 = pneg %p168
      $region42: #{double_conv_forward.3} parent=35 // pred_check_branch
        %2516 = sbr.rel (%p2514) target = $region44
      $region43: #{double_conv_forward.3} parent=35 // pred_region
        _
      $region44: #{double_conv_forward.3} parent=35 // pred_fallthru
        _
    $region36: #{double_conv_forward.3} parent=5 // pred_fallthru
      _
    %p2517 = scmp.le.s32.totalorder 2, %s12
    // Predicated region
    $region45: #{double_conv_forward.3} parent=5 // pred_check
      %p2518 = pneg %p2517
    $region46: #{double_conv_forward.3} parent=5 // pred_check_branch
      %2520 = sbr.rel (%p2518) target = $region48
    $region47: #{double_conv_forward.3} parent=5 // pred_region
      %s2521 = ssub.s32 %s12, 2
      // Predicated region
      $region49: #{double_conv_forward.3} parent=47 // pred_check
        %p2522 = pneg %p146
      $region50: #{double_conv_forward.3} parent=47 // pred_check_branch
        %2524 = sbr.rel (%p2522) target = $region52
      $region51: #{double_conv_forward.3} parent=47 // pred_region
        %s2525 = smul.u32 8, %s24
        %p2526 = scmp.lt.s32.totalorder %s23, 1
        %s2527 = scalar_select %p2526, %s23, 1
        %p2528 = scmp.lt.s32.totalorder %s2525, 15
        %s2529 = scalar_select %p2528, %s2525, 15
        %s2530 = smul.addr %s2529, 2
        %s2531 = smul.addr %s2527, 32
        %s2532 = sadd.s32 %s2530, %s2531
        %s2533 = smul.addr %s2532, 4
        %s2534 = scalar_lea.vmem %s4, %s2533
      $region52: #{double_conv_forward.3} parent=47 // pred_fallthru
        _
      // Predicated region
      $region53: #{double_conv_forward.3} parent=47 // pred_check
        %p2535 = pneg %p174
      $region54: #{double_conv_forward.3} parent=47 // pred_check_branch
        %2537 = sbr.rel (%p2535) target = $region56
      $region55: #{double_conv_forward.3} parent=47 // pred_region
        %p2538 = scmp.lt.s32.totalorder %s23, 1
        %s2539 = scalar_select %p2538, %s23, 1
        %p2540 = scmp.lt.s32.totalorder %s24, 1
        %s2541 = scalar_select %p2540, %s24, 1
        %s2542 = smul.addr %s2539, 2
        %s2543 = sadd.s32 %s2541, %s2542
        %s2544 = smul.addr %s2543, 2
        %s2545 = scalar_lea.vmem %s5, %s2544
      $region56: #{double_conv_forward.3} parent=47 // pred_fallthru
        _
    $region48: #{double_conv_forward.3} parent=5 // pred_fallthru
      _
  $region6: #{double_conv_forward.3} parent=0 // loop_footer
    %s16 = sadd.s32 1, %s12
  $region7: #{double_conv_forward.3} parent=0 // loop_footer_branch
    %11 = sbr.rel target = $region3
  $region8: #{double_conv_forward.3} parent=0 // loop_exit
    _

// kernel: double_conv_forward.4
$region0: #{double_conv_forward.4}
  #allocation0 [shape = 'u32[]', space=smem, size = 0x4, offset = 0x4, fixed_abs, tag = 'smem constant byte address 0x4 - core index']
  #allocation1 [shape = 'u32[144,128]{1,0:T(1,128)}', space=vmem, size = 0x12000, scoped, tag = 'internal scratch']
  %s0 = inlined_call_operand.vmem [shape: bf16[2,2,10,18,128], index: 0, kind: input, shape index: {}]
  %s1 = inlined_call_operand.vmem [shape: f32[1,128], index: 1, kind: input, shape index: {}]
  %s2 = inlined_call_operand.vmem [shape: f32[1,128], index: 2, kind: input, shape index: {}]
  %s3 = inlined_call_operand.vmem [shape: bf16[3,3,128,128], index: 3, kind: input, shape index: {}]
  %s4 = inlined_call_operand.vmem [shape: bf16[2,16,16,128], index: 4, kind: output, shape index: {0}]
  %s5 = inlined_call_operand.vmem [shape: f32[2,2,2,128], index: 5, kind: output, shape index: {1}]
  %6 = xla_tuple %s4, %s5
  %s7 = sld [smem:[#allocation0]]
  $region57: #{double_conv_forward.4} parent=0
    _
  %s9 = ssub.s32 1, %s7
  %s10 = scalar_select 0, %s9, %s7
  loop: start=0, step=1, limit=6
  $region2: #{double_conv_forward.4} parent=0 // loop_pre_header
    _
  $region3: #{double_conv_forward.4} parent=0 // loop_header
    %s12 = sphi 0, %s16
    %p13 = scmp.ge.s32.totalorder %s12, 6
    %s19 = sphi 0, %s31
    %s20 = sphi 0, %s27
    %s21 = sphi 0, %s19
    %s22 = sphi 0, %s20
    %s23 = sphi 0, %s21
    %s24 = sphi 0, %s22
    %s36 = sphi 0, %s38
    %s39 = sphi 0, %s36
    %s40 = sphi 0, %s39
    %s56 = sphi 0, %s40
    %s60 = sphi 0, %s60
    %s62 = sphi 0, %s60
    %s63 = sphi 0, %s62
    %s77 = sphi 0, %s63
    %s81 = sphi 0, %s81
    %s83 = sphi 0, %s81
    %s84 = sphi 0, %s83
    %s98 = sphi 0, %s84
    %s102 = sphi 0, %s102
    %s104 = sphi 0, %s102
    %s105 = sphi 0, %s104
    %s119 = sphi 0, %s105
    %s127 = sphi 0, %s129
    %s130 = sphi 0, %s127
    %s131 = sphi 0, %s130
    %s147 = sphi 0, %s131
    %s155 = sphi 0, %s157
    %s158 = sphi 0, %s155
    %s159 = sphi 0, %s158
    %s175 = sphi 0, %s159
  $region4: #{double_conv_forward.4} parent=0 // loop_header_branch
    %15 = sbr.rel (%p13) target = $region8
  $region5: #{double_conv_forward.4} parent=0 // loop_body
    %s17 = ssub.s32 %s12, 1
    %s18 = ssub.s32 %s12, 2
    %s25 = sadd.s32 1, %s20
    %p26 = scmp.ge.s32.totalorder %s25, 2
    %s27 = scalar_select %p26, 0, %s25
    %s28 = sadd.s32 1, %s19
    %s29 = scalar_select %p26, %s28, %s19
    %p30 = scmp.ge.s32.totalorder %s29, 2
    %s31 = scalar_select %p30, 0, %s29
    %s32 = ssub.s32 %s19, %s31
    %s33 = ssub.s32 %s20, %s27
    %s34 = sor.u32 %s32, %s33
    %p35 = scmp.eq.s32.totalorder %s34, 0
    %s37 = sadd.s32 %s36, 1
    %s38 = scalar_select %p35, %s36, %s37
    %p41 = pneg %p35
    %p42 = scmp.eq.s32.totalorder %s12, 3
    %p43 = por %p41, %p42
    %p44 = scmp.ne.s32.totalorder %s36, %s39
    %p45 = scmp.eq.s32.totalorder %s12, 0
    %p46 = por %p44, %p45
    %p47 = scmp.ne.s32.totalorder %s36, %s39
    %p48 = scmp.eq.s32.totalorder %s17, 3
    %p49 = por %p47, %p48
    %p50 = scmp.ne.s32.totalorder %s39, %s40
    %p51 = scmp.eq.s32.totalorder %s17, 0
    %p52 = por %p50, %p51
    %p53 = scmp.ne.s32.totalorder %s39, %s40
    %p54 = scmp.eq.s32.totalorder %s18, 3
    %p55 = por %p53, %p54
    %p57 = scmp.ne.s32.totalorder %s40, %s56
    %p58 = scmp.eq.s32.totalorder %s18, 0
    %p59 = por %p57, %p58
    %s61 = sadd.s32 %s60, 1
    %p64 = scmp.eq.s32.totalorder %s12, 3
    %p65 = scmp.ne.s32.totalorder %s60, %s62
    %p66 = scmp.eq.s32.totalorder %s12, 0
    %p67 = por %p65, %p66
    %p68 = scmp.ne.s32.totalorder %s60, %s62
    %p69 = scmp.eq.s32.totalorder %s17, 3
    %p70 = por %p68, %p69
    %p71 = scmp.ne.s32.totalorder %s62, %s63
    %p72 = scmp.eq.s32.totalorder %s17, 0
    %p73 = por %p71, %p72
    %p74 = scmp.ne.s32.totalorder %s62, %s63
    %p75 = scmp.eq.s32.totalorder %s18, 3
    %p76 = por %p74, %p75
    %p78 = scmp.ne.s32.totalorder %s63, %s77
    %p79 = scmp.eq.s32.totalorder %s18, 0
    %p80 = por %p78, %p79
    %s82 = sadd.s32 %s81, 1
    %p85 = scmp.eq.s32.totalorder %s12, 3
    %p86 = scmp.ne.s32.totalorder %s81, %s83
    %p87 = scmp.eq.s32.totalorder %s12, 0
    %p88 = por %p86, %p87
    %p89 = scmp.ne.s32.totalorder %s81, %s83
    %p90 = scmp.eq.s32.totalorder %s17, 3
    %p91 = por %p89, %p90
    %p92 = scmp.ne.s32.totalorder %s83, %s84
    %p93 = scmp.eq.s32.totalorder %s17, 0
    %p94 = por %p92, %p93
    %p95 = scmp.ne.s32.totalorder %s83, %s84
    %p96 = scmp.eq.s32.totalorder %s18, 3
    %p97 = por %p95, %p96
    %p99 = scmp.ne.s32.totalorder %s84, %s98
    %p100 = scmp.eq.s32.totalorder %s18, 0
    %p101 = por %p99, %p100
    %s103 = sadd.s32 %s102, 1
    %p106 = scmp.eq.s32.totalorder %s12, 3
    %p107 = scmp.ne.s32.totalorder %s102, %s104
    %p108 = scmp.eq.s32.totalorder %s12, 0
    %p109 = por %p107, %p108
    %p110 = scmp.ne.s32.totalorder %s102, %s104
    %p111 = scmp.eq.s32.totalorder %s17, 3
    %p112 = por %p110, %p111
    %p113 = scmp.ne.s32.totalorder %s104, %s105
    %p114 = scmp.eq.s32.totalorder %s17, 0
    %p115 = por %p113, %p114
    %p116 = scmp.ne.s32.totalorder %s104, %s105
    %p117 = scmp.eq.s32.totalorder %s18, 3
    %p118 = por %p116, %p117
    %p120 = scmp.ne.s32.totalorder %s105, %s119
    %p121 = scmp.eq.s32.totalorder %s18, 0
    %p122 = por %p120, %p121
    %s123 = ssub.s32 %s19, %s31
    %s124 = ssub.s32 %s20, %s27
    %s125 = sor.u32 %s123, %s124
    %p126 = scmp.eq.s32.totalorder %s125, 0
    %s128 = sadd.s32 %s127, 1
    %s129 = scalar_select %p126, %s127, %s128
    %p132 = pneg %p126
    %p133 = scmp.eq.s32.totalorder %s12, 3
    %p134 = por %p132, %p133
    %p135 = scmp.ne.s32.totalorder %s127, %s130
    %p136 = scmp.eq.s32.totalorder %s12, 0
    %p137 = por %p135, %p136
    %p138 = scmp.ne.s32.totalorder %s127, %s130
    %p139 = scmp.eq.s32.totalorder %s17, 3
    %p140 = por %p138, %p139
    %p141 = scmp.ne.s32.totalorder %s130, %s131
    %p142 = scmp.eq.s32.totalorder %s17, 0
    %p143 = por %p141, %p142
    %p144 = scmp.ne.s32.totalorder %s130, %s131
    %p145 = scmp.eq.s32.totalorder %s18, 3
    %p146 = por %p144, %p145
    %p148 = scmp.ne.s32.totalorder %s131, %s147
    %p149 = scmp.eq.s32.totalorder %s18, 0
    %p150 = por %p148, %p149
    %s151 = ssub.s32 %s19, %s31
    %s152 = ssub.s32 %s20, %s27
    %s153 = sor.u32 %s151, %s152
    %p154 = scmp.eq.s32.totalorder %s153, 0
    %s156 = sadd.s32 %s155, 1
    %s157 = scalar_select %p154, %s155, %s156
    %p160 = pneg %p154
    %p161 = scmp.eq.s32.totalorder %s12, 3
    %p162 = por %p160, %p161
    %p163 = scmp.ne.s32.totalorder %s155, %s158
    %p164 = scmp.eq.s32.totalorder %s12, 0
    %p165 = por %p163, %p164
    %p166 = scmp.ne.s32.totalorder %s155, %s158
    %p167 = scmp.eq.s32.totalorder %s17, 3
    %p168 = por %p166, %p167
    %p169 = scmp.ne.s32.totalorder %s158, %s159
    %p170 = scmp.eq.s32.totalorder %s17, 0
    %p171 = por %p169, %p170
    %p172 = scmp.ne.s32.totalorder %s158, %s159
    %p173 = scmp.eq.s32.totalorder %s18, 3
    %p174 = por %p172, %p173
    %p176 = scmp.ne.s32.totalorder %s159, %s175
    %p177 = scmp.eq.s32.totalorder %s18, 0
    %p178 = por %p176, %p177
    %p179 = scmp.le.s32.totalorder 1, %s12
    %p180 = scmp.lt.s32.totalorder %s12, 5
    %p181 = pnand %p179, %p180
    %p182 = pneg %p181
    // Predicated region
    $region9: #{double_conv_forward.4} parent=5 // pred_check
      _
    $region10: #{double_conv_forward.4} parent=5 // pred_check_branch
      %184 = sbr.rel (%p181) target = $region12
    $region11: #{double_conv_forward.4} parent=5 // pred_region
      %s185 = ssub.s32 %s12, 1
      // Predicated region
      $region13: #{double_conv_forward.4} parent=11 // pred_check
        %p186 = pneg %p73
      $region14: #{double_conv_forward.4} parent=11 // pred_check_branch
        %188 = sbr.rel (%p186) target = $region16
      $region15: #{double_conv_forward.4} parent=11 // pred_region
        _
      $region16: #{double_conv_forward.4} parent=11 // pred_fallthru
        _
      // Predicated region
      $region17: #{double_conv_forward.4} parent=11 // pred_check
        %p189 = pneg %p94
      $region18: #{double_conv_forward.4} parent=11 // pred_check_branch
        %191 = sbr.rel (%p189) target = $region20
      $region19: #{double_conv_forward.4} parent=11 // pred_region
        _
      $region20: #{double_conv_forward.4} parent=11 // pred_fallthru
        _
      // Predicated region
      $region21: #{double_conv_forward.4} parent=11 // pred_check
        %p192 = pneg %p115
      $region22: #{double_conv_forward.4} parent=11 // pred_check_branch
        %194 = sbr.rel (%p192) target = $region24
      $region23: #{double_conv_forward.4} parent=11 // pred_region
        _
      $region24: #{double_conv_forward.4} parent=11 // pred_fallthru
        _
    $region12: #{double_conv_forward.4} parent=5 // pred_fallthru
      _
    %p195 = scmp.lt.s32.totalorder %s12, 4
    // Predicated region
    $region25: #{double_conv_forward.4} parent=5 // pred_check
      %p196 = pneg %p195
    $region26: #{double_conv_forward.4} parent=5 // pred_check_branch
      %198 = sbr.rel (%p196) target = $region28
    $region27: #{double_conv_forward.4} parent=5 // pred_region
      // Predicated region
      $region29: #{double_conv_forward.4} parent=27 // pred_check
        %p199 = pneg %p46
      $region30: #{double_conv_forward.4} parent=27 // pred_check_branch
        %201 = sbr.rel (%p199) target = $region32
      $region31: #{double_conv_forward.4} parent=27 // pred_region
        %p202 = scmp.lt.s32.totalorder %s19, 1
        %s203 = scalar_select %p202, %s19, 1
        %p204 = scmp.lt.s32.totalorder %s20, 1
        %s205 = scalar_select %p204, %s20, 1
        %s206 = smul.addr %s205, 30
        %s207 = smul.addr %s203, 60
        %s208 = sadd.s32 %s206, %s207
        %s209 = smul.addr %s208, 4
        %s210 = scalar_lea.vmem %s0, %s209
      $region32: #{double_conv_forward.4} parent=27 // pred_fallthru
        _
    $region28: #{double_conv_forward.4} parent=5 // pred_fallthru
      _
    %p211 = scmp.le.s32.totalorder 1, %s12
    %p212 = scmp.lt.s32.totalorder %s12, 5
    %p213 = pnand %p211, %p212
    %p214 = pneg %p213
    // Predicated region
    $region33: #{double_conv_forward.4} parent=5 // pred_check
      _
    $region34: #{double_conv_forward.4} parent=5 // pred_check_branch
      %216 = sbr.rel (%p213) target = $region36
    $region35: #{double_conv_forward.4} parent=5 // pred_region
      %s217 = ssub.s32 %s12, 1
      %p218 = scmp.lt.s32.totalorder %s21, 1
      %s219 = scalar_select %p218, %s21, 1
      %p220 = scmp.lt.s32.totalorder %s22, 1
      %s221 = scalar_select %p220, %s22, 1
      %s222 = smul.addr %s221, 30
      %s223 = smul.addr %s219, 60
      %s224 = sadd.s32 %s222, %s223
      %s225 = smul.addr %s224, 4
      %s226 = scalar_lea.vmem %s0, %s225
      %p227 = pneg %p52
      %p228 = pneg %p49
      %p229 = pneg %p73
      %p230 = pneg %p70
      %p231 = pneg %p94
      %p232 = pneg %p91
      %p233 = pneg %p115
      %p234 = pneg %p112
      %p235 = pneg %p143
      %p236 = pneg %p140
      %s237 = smul.u32 8, %s22
      %p238 = scmp.lt.s32.totalorder %s21, 1
      %s239 = scalar_select %p238, %s21, 1
      %p240 = scmp.lt.s32.totalorder %s237, 15
      %s241 = scalar_select %p240, %s237, 15
      %s242 = smul.addr %s241, 2
      %s243 = smul.addr %s239, 32
      %s244 = sadd.s32 %s242, %s243
      %s245 = smul.addr %s244, 4
      %s246 = scalar_lea.vmem %s4, %s245
      %p247 = pneg %p171
      %p248 = pneg %p168
      %p249 = scmp.lt.s32.totalorder %s21, 1
      %s250 = scalar_select %p249, %s21, 1
      %p251 = scmp.lt.s32.totalorder %s22, 1
      %s252 = scalar_select %p251, %s22, 1
      %s253 = smul.addr %s250, 2
      %s254 = sadd.s32 %s252, %s253
      %s255 = smul.addr %s254, 2
      %s256 = scalar_lea.vmem %s5, %s255
      %p257 = scmp.lt.s32.totalorder %s21, 1
      %s258 = scalar_select %p257, %s21, 1
      %p259 = scmp.lt.s32.totalorder %s22, 1
      %s260 = scalar_select %p259, %s22, 1
      %s261 = smul.addr %s260, 30
      %s262 = smul.addr %s258, 60
      %s263 = sadd.s32 %s261, %s262
      %s264 = smul.addr %s263, 4
      %s265 = scalar_lea.vmem %s0, %s264
      %s266 = smul.u32 8, %s22
      %p267 = scmp.lt.s32.totalorder %s21, 1
      %s268 = scalar_select %p267, %s21, 1
      %p269 = scmp.lt.s32.totalorder %s266, 15
      %s270 = scalar_select %p269, %s266, 15
      %s271 = smul.addr %s270, 2
      %s272 = smul.addr %s268, 32
      %s273 = sadd.s32 %s271, %s272
      %s274 = smul.addr %s273, 4
      %s275 = scalar_lea.vmem %s4, %s274
      %s276 = smul.u32 8, %s22
      %p277 = scmp.lt.s32.totalorder %s21, 1
      %s278 = scalar_select %p277, %s21, 1
      %p279 = scmp.lt.s32.totalorder %s22, 1
      %s280 = scalar_select %p279, %s22, 1
      %s281 = smul.addr %s278, 2
      %s282 = sadd.s32 %s280, %s281
      %s283 = smul.addr %s282, 2
      %s284 = scalar_lea.vmem %s5, %s283
      %v286 = vld [vmem:[%s265] sm:$0xf]
      %v287 = vld [vmem:[%s265 + $0x4] sm:$0xf]
      %v288 = vld [vmem:[%s265 + $0x8] sm:$0x1]
      %v289 = vld [vmem:[%s265 + $0xc] sm:$0xf]
      %v290 = vld [vmem:[%s265 + $0x10] sm:$0xf]
      %v291 = vld [vmem:[%s265 + $0x14] sm:$0x1]
      %v292 = vld [vmem:[%s265 + $0x18] sm:$0xf]
      %v293 = vld [vmem:[%s265 + $0x1c] sm:$0xf]
      %v294 = vld [vmem:[%s265 + $0x20] sm:$0x1]
      %v295 = vld [vmem:[%s265 + $0x24] sm:$0xf]
      %v296 = vld [vmem:[%s265 + $0x28] sm:$0xf]
      %v297 = vld [vmem:[%s265 + $0x2c] sm:$0x1]
      %v298 = vld [vmem:[%s265 + $0x30] sm:$0xf]
      %v299 = vld [vmem:[%s265 + $0x34] sm:$0xf]
      %v300 = vld [vmem:[%s265 + $0x38] sm:$0x1]
      %v301 = vld [vmem:[%s265 + $0x3c] sm:$0xf]
      %v302 = vld [vmem:[%s265 + $0x40] sm:$0xf]
      %v303 = vld [vmem:[%s265 + $0x44] sm:$0x1]
      %v304 = vld [vmem:[%s265 + $0x48] sm:$0xf]
      %v305 = vld [vmem:[%s265 + $0x4c] sm:$0xf]
      %v306 = vld [vmem:[%s265 + $0x50] sm:$0x1]
      %v307 = vld [vmem:[%s265 + $0x54] sm:$0xf]
      %v308 = vld [vmem:[%s265 + $0x58] sm:$0xf]
      %v309 = vld [vmem:[%s265 + $0x5c] sm:$0x1]
      %v310 = vld [vmem:[%s265 + $0x60] sm:$0xf]
      %v311 = vld [vmem:[%s265 + $0x64] sm:$0xf]
      %v312 = vld [vmem:[%s265 + $0x68] sm:$0x1]
      %v313 = vld [vmem:[%s265 + $0x6c] sm:$0xf]
      %v314 = vld [vmem:[%s265 + $0x70] sm:$0xf]
      %v315 = vld [vmem:[%s265 + $0x74] sm:$0x1]
      %v316 = vunpack.c.l.bf16 %v286
      %v317 = vunpack.c.l.bf16 %v287
      %v318 = vunpack.c.l.bf16 %v288
      %v319 = vunpack.c.l.bf16 %v289
      %v320 = vunpack.c.l.bf16 %v290
      %v321 = vunpack.c.l.bf16 %v291
      %v322 = vunpack.c.l.bf16 %v292
      %v323 = vunpack.c.l.bf16 %v293
      %v324 = vunpack.c.l.bf16 %v294
      %v325 = vunpack.c.l.bf16 %v295
      %v326 = vunpack.c.l.bf16 %v296
      %v327 = vunpack.c.l.bf16 %v297
      %v328 = vunpack.c.l.bf16 %v298
      %v329 = vunpack.c.l.bf16 %v299
      %v330 = vunpack.c.l.bf16 %v300
      %v331 = vunpack.c.l.bf16 %v301
      %v332 = vunpack.c.l.bf16 %v302
      %v333 = vunpack.c.l.bf16 %v303
      %v334 = vunpack.c.l.bf16 %v304
      %v335 = vunpack.c.l.bf16 %v305
      %v336 = vunpack.c.l.bf16 %v306
      %v337 = vunpack.c.l.bf16 %v307
      %v338 = vunpack.c.l.bf16 %v308
      %v339 = vunpack.c.l.bf16 %v309
      %v340 = vunpack.c.l.bf16 %v310
      %v341 = vunpack.c.l.bf16 %v311
      %v342 = vunpack.c.l.bf16 %v312
      %v343 = vunpack.c.l.bf16 %v313
      %v344 = vunpack.c.l.bf16 %v314
      %v345 = vunpack.c.l.bf16 %v315
      %v346 = vld [vmem:[%s1] sm:$0x1]
      %v348 = vlaneseq
      %v349 = vshrl.u32 %v348, 7
      %v350 = vsub.s32 0, %v349
      %v351 = vrot.slane %v346, %v350
      %v353 = vmul.f32 %v316, %v351
      %v354 = vmul.f32 %v317, %v351
      %v355 = vmul.f32 %v318, %v351
      %v356 = vmul.f32 %v319, %v351
      %v357 = vmul.f32 %v320, %v351
      %v358 = vmul.f32 %v321, %v351
      %v359 = vmul.f32 %v322, %v351
      %v360 = vmul.f32 %v323, %v351
      %v361 = vmul.f32 %v324, %v351
      %v362 = vmul.f32 %v325, %v351
      %v363 = vmul.f32 %v326, %v351
      %v364 = vmul.f32 %v327, %v351
      %v365 = vmul.f32 %v328, %v351
      %v366 = vmul.f32 %v329, %v351
      %v367 = vmul.f32 %v330, %v351
      %v368 = vmul.f32 %v331, %v351
      %v369 = vmul.f32 %v332, %v351
      %v370 = vmul.f32 %v333, %v351
      %v371 = vmul.f32 %v334, %v351
      %v372 = vmul.f32 %v335, %v351
      %v373 = vmul.f32 %v336, %v351
      %v374 = vmul.f32 %v337, %v351
      %v375 = vmul.f32 %v338, %v351
      %v376 = vmul.f32 %v339, %v351
      %v377 = vmul.f32 %v340, %v351
      %v378 = vmul.f32 %v341, %v351
      %v379 = vmul.f32 %v342, %v351
      %v380 = vmul.f32 %v343, %v351
      %v381 = vmul.f32 %v344, %v351
      %v382 = vmul.f32 %v345, %v351
      %v383 = vld [vmem:[%s2] sm:$0x1]
      %v385 = vlaneseq
      %v386 = vshrl.u32 %v385, 7
      %v387 = vsub.s32 0, %v386
      %v388 = vrot.slane %v383, %v387
      %v390 = vadd.f32 %v353, %v388
      %v391 = vadd.f32 %v354, %v388
      %v392 = vadd.f32 %v355, %v388
      %v393 = vadd.f32 %v356, %v388
      %v394 = vadd.f32 %v357, %v388
      %v395 = vadd.f32 %v358, %v388
      %v396 = vadd.f32 %v359, %v388
      %v397 = vadd.f32 %v360, %v388
      %v398 = vadd.f32 %v361, %v388
      %v399 = vadd.f32 %v362, %v388
      %v400 = vadd.f32 %v363, %v388
      %v401 = vadd.f32 %v364, %v388
      %v402 = vadd.f32 %v365, %v388
      %v403 = vadd.f32 %v366, %v388
      %v404 = vadd.f32 %v367, %v388
      %v405 = vadd.f32 %v368, %v388
      %v406 = vadd.f32 %v369, %v388
      %v407 = vadd.f32 %v370, %v388
      %v408 = vadd.f32 %v371, %v388
      %v409 = vadd.f32 %v372, %v388
      %v410 = vadd.f32 %v373, %v388
      %v411 = vadd.f32 %v374, %v388
      %v412 = vadd.f32 %v375, %v388
      %v413 = vadd.f32 %v376, %v388
      %v414 = vadd.f32 %v377, %v388
      %v415 = vadd.f32 %v378, %v388
      %v416 = vadd.f32 %v379, %v388
      %v417 = vadd.f32 %v380, %v388
      %v418 = vadd.f32 %v381, %v388
      %v419 = vadd.f32 %v382, %v388
      %v420 = vmax.f32 %v390, 0.0
      %v421 = vmax.f32 %v391, 0.0
      %v422 = vmax.f32 %v392, 0.0
      %v423 = vmax.f32 %v393, 0.0
      %v424 = vmax.f32 %v394, 0.0
      %v425 = vmax.f32 %v395, 0.0
      %v426 = vmax.f32 %v396, 0.0
      %v427 = vmax.f32 %v397, 0.0
      %v428 = vmax.f32 %v398, 0.0
      %v429 = vmax.f32 %v399, 0.0
      %v430 = vmax.f32 %v400, 0.0
      %v431 = vmax.f32 %v401, 0.0
      %v432 = vmax.f32 %v402, 0.0
      %v433 = vmax.f32 %v403, 0.0
      %v434 = vmax.f32 %v404, 0.0
      %v435 = vmax.f32 %v405, 0.0
      %v436 = vmax.f32 %v406, 0.0
      %v437 = vmax.f32 %v407, 0.0
      %v438 = vmax.f32 %v408, 0.0
      %v439 = vmax.f32 %v409, 0.0
      %v440 = vmax.f32 %v410, 0.0
      %v441 = vmax.f32 %v411, 0.0
      %v442 = vmax.f32 %v412, 0.0
      %v443 = vmax.f32 %v413, 0.0
      %v444 = vmax.f32 %v414, 0.0
      %v445 = vmax.f32 %v415, 0.0
      %v446 = vmax.f32 %v416, 0.0
      %v447 = vmax.f32 %v417, 0.0
      %v448 = vmax.f32 %v418, 0.0
      %v449 = vmax.f32 %v419, 0.0
      %s450 = smul.u32 %s22, 8
      %v451 = vstv %s450
      %v452 = vadd.s32 %v451, 1
      %v453 = vadd.s32 %v451, 2
      %v454 = vadd.s32 %v451, 3
      %v455 = vadd.s32 %v451, 4
      %v456 = vadd.s32 %v451, 5
      %v457 = vadd.s32 %v451, 6
      %v458 = vadd.s32 %v451, 7
      %v459 = vadd.s32 %v451, 8
      %v460 = vadd.s32 %v451, 9
      %v461 = vlaneseq
      %v462 = vshrl.u32 %v461, 7
      %v463 = vadd.s32 %v462, 8
      %v464 = vadd.s32 %v462, 16
      %vm465 = vcmp.ge.s32.totalorder %v451, 1
      %vm466 = vcmp.ge.s32.totalorder %v452, 1
      %vm467 = vcmp.ge.s32.totalorder %v453, 1
      %vm468 = vcmp.ge.s32.totalorder %v454, 1
      %vm469 = vcmp.ge.s32.totalorder %v455, 1
      %vm470 = vcmp.ge.s32.totalorder %v456, 1
      %vm471 = vcmp.ge.s32.totalorder %v457, 1
      %vm472 = vcmp.ge.s32.totalorder %v458, 1
      %vm473 = vcmp.ge.s32.totalorder %v459, 1
      %vm474 = vcmp.ge.s32.totalorder %v460, 1
      %vm475 = vcmp.le.s32.totalorder %v451, 16
      %vm476 = vcmp.le.s32.totalorder %v452, 16
      %vm477 = vcmp.le.s32.totalorder %v453, 16
      %vm478 = vcmp.le.s32.totalorder %v454, 16
      %vm479 = vcmp.le.s32.totalorder %v455, 16
      %vm480 = vcmp.le.s32.totalorder %v456, 16
      %vm481 = vcmp.le.s32.totalorder %v457, 16
      %vm482 = vcmp.le.s32.totalorder %v458, 16
      %vm483 = vcmp.le.s32.totalorder %v459, 16
      %vm484 = vcmp.le.s32.totalorder %v460, 16
      %vm485 = vmand %vm465, %vm475
      %vm486 = vmand %vm466, %vm476
      %vm487 = vmand %vm467, %vm477
      %vm488 = vmand %vm468, %vm478
      %vm489 = vmand %vm469, %vm479
      %vm490 = vmand %vm470, %vm480
      %vm491 = vmand %vm471, %vm481
      %vm492 = vmand %vm472, %vm482
      %vm493 = vmand %vm473, %vm483
      %vm494 = vmand %vm474, %vm484
      %vm495 = vcmp.ge.s32.totalorder %v462, 1
      %vm496 = vcmp.ge.s32.totalorder %v463, 1
      %vm497 = vcmp.ge.s32.totalorder %v464, 1
      %vm498 = vmand %vm485, %vm495
      %vm499 = vmand %vm485, %vm496
      %vm500 = vmand %vm485, %vm497
      %vm501 = vmand %vm486, %vm495
      %vm502 = vmand %vm486, %vm496
      %vm503 = vmand %vm486, %vm497
      %vm504 = vmand %vm487, %vm495
      %vm505 = vmand %vm487, %vm496
      %vm506 = vmand %vm487, %vm497
      %vm507 = vmand %vm488, %vm495
      %vm508 = vmand %vm488, %vm496
      %vm509 = vmand %vm488, %vm497
      %vm510 = vmand %vm489, %vm495
      %vm511 = vmand %vm489, %vm496
      %vm512 = vmand %vm489, %vm497
      %vm513 = vmand %vm490, %vm495
      %vm514 = vmand %vm490, %vm496
      %vm515 = vmand %vm490, %vm497
      %vm516 = vmand %vm491, %vm495
      %vm517 = vmand %vm491, %vm496
      %vm518 = vmand %vm491, %vm497
      %vm519 = vmand %vm492, %vm495
      %vm520 = vmand %vm492, %vm496
      %vm521 = vmand %vm492, %vm497
      %vm522 = vmand %vm493, %vm495
      %vm523 = vmand %vm493, %vm496
      %vm524 = vmand %vm493, %vm497
      %vm525 = vmand %vm494, %vm495
      %vm526 = vmand %vm494, %vm496
      %vm527 = vmand %vm494, %vm497
      %vm528 = vcmp.le.s32.totalorder %v462, 16
      %vm529 = vcmp.le.s32.totalorder %v463, 16
      %vm530 = vcmp.le.s32.totalorder %v464, 16
      %vm531 = vmand %vm498, %vm528
      %vm532 = vmand %vm499, %vm529
      %vm533 = vmand %vm500, %vm530
      %vm534 = vmand %vm501, %vm528
      %vm535 = vmand %vm502, %vm529
      %vm536 = vmand %vm503, %vm530
      %vm537 = vmand %vm504, %vm528
      %vm538 = vmand %vm505, %vm529
      %vm539 = vmand %vm506, %vm530
      %vm540 = vmand %vm507, %vm528
      %vm541 = vmand %vm508, %vm529
      %vm542 = vmand %vm509, %vm530
      %vm543 = vmand %vm510, %vm528
      %vm544 = vmand %vm511, %vm529
      %vm545 = vmand %vm512, %vm530
      %vm546 = vmand %vm513, %vm528
      %vm547 = vmand %vm514, %vm529
      %vm548 = vmand %vm515, %vm530
      %vm549 = vmand %vm516, %vm528
      %vm550 = vmand %vm517, %vm529
      %vm551 = vmand %vm518, %vm530
      %vm552 = vmand %vm519, %vm528
      %vm553 = vmand %vm520, %vm529
      %vm554 = vmand %vm521, %vm530
      %vm555 = vmand %vm522, %vm528
      %vm556 = vmand %vm523, %vm529
      %vm557 = vmand %vm524, %vm530
      %vm558 = vmand %vm525, %vm528
      %vm559 = vmand %vm526, %vm529
      %vm560 = vmand %vm527, %vm530
      %v561 = vsel %vm531, 1, 0
      %v562 = vsel %vm532, 1, 0
      %v563 = vsel %vm533, 1, 0
      %v564 = vsel %vm534, 1, 0
      %v565 = vsel %vm535, 1, 0
      %v566 = vsel %vm536, 1, 0
      %v567 = vsel %vm537, 1, 0
      %v568 = vsel %vm538, 1, 0
      %v569 = vsel %vm539, 1, 0
      %v570 = vsel %vm540, 1, 0
      %v571 = vsel %vm541, 1, 0
      %v572 = vsel %vm542, 1, 0
      %v573 = vsel %vm543, 1, 0
      %v574 = vsel %vm544, 1, 0
      %v575 = vsel %vm545, 1, 0
      %v576 = vsel %vm546, 1, 0
      %v577 = vsel %vm547, 1, 0
      %v578 = vsel %vm548, 1, 0
      %v579 = vsel %vm549, 1, 0
      %v580 = vsel %vm550, 1, 0
      %v581 = vsel %vm551, 1, 0
      %v582 = vsel %vm552, 1, 0
      %v583 = vsel %vm553, 1, 0
      %v584 = vsel %vm554, 1, 0
      %v585 = vsel %vm555, 1, 0
      %v586 = vsel %vm556, 1, 0
      %v587 = vsel %vm557, 1, 0
      %v588 = vsel %vm558, 1, 0
      %v589 = vsel %vm559, 1, 0
      %v590 = vsel %vm560, 1, 0
      %v591 = vcvt.s32.f32 %v561
      %v592 = vcvt.s32.f32 %v562
      %v593 = vcvt.s32.f32 %v563
      %v594 = vcvt.s32.f32 %v564
      %v595 = vcvt.s32.f32 %v565
      %v596 = vcvt.s32.f32 %v566
      %v597 = vcvt.s32.f32 %v567
      %v598 = vcvt.s32.f32 %v568
      %v599 = vcvt.s32.f32 %v569
      %v600 = vcvt.s32.f32 %v570
      %v601 = vcvt.s32.f32 %v571
      %v602 = vcvt.s32.f32 %v572
      %v603 = vcvt.s32.f32 %v573
      %v604 = vcvt.s32.f32 %v574
      %v605 = vcvt.s32.f32 %v575
      %v606 = vcvt.s32.f32 %v576
      %v607 = vcvt.s32.f32 %v577
      %v608 = vcvt.s32.f32 %v578
      %v609 = vcvt.s32.f32 %v579
      %v610 = vcvt.s32.f32 %v580
      %v611 = vcvt.s32.f32 %v581
      %v612 = vcvt.s32.f32 %v582
      %v613 = vcvt.s32.f32 %v583
      %v614 = vcvt.s32.f32 %v584
      %v615 = vcvt.s32.f32 %v585
      %v616 = vcvt.s32.f32 %v586
      %v617 = vcvt.s32.f32 %v587
      %v618 = vcvt.s32.f32 %v588
      %v619 = vcvt.s32.f32 %v589
      %v620 = vcvt.s32.f32 %v590
      %v621 = vmul.f32 %v420, %v591
      %v622 = vmul.f32 %v421, %v592
      %v623 = vmul.f32 %v422, %v593
      %v624 = vmul.f32 %v423, %v594
      %v625 = vmul.f32 %v424, %v595
      %v626 = vmul.f32 %v425, %v596
      %v627 = vmul.f32 %v426, %v597
      %v628 = vmul.f32 %v427, %v598
      %v629 = vmul.f32 %v428, %v599
      %v630 = vmul.f32 %v429, %v600
      %v631 = vmul.f32 %v430, %v601
      %v632 = vmul.f32 %v431, %v602
      %v633 = vmul.f32 %v432, %v603
      %v634 = vmul.f32 %v433, %v604
      %v635 = vmul.f32 %v434, %v605
      %v636 = vmul.f32 %v435, %v606
      %v637 = vmul.f32 %v436, %v607
      %v638 = vmul.f32 %v437, %v608
      %v639 = vmul.f32 %v438, %v609
      %v640 = vmul.f32 %v439, %v610
      %v641 = vmul.f32 %v440, %v611
      %v642 = vmul.f32 %v441, %v612
      %v643 = vmul.f32 %v442, %v613
      %v644 = vmul.f32 %v443, %v614
      %v645 = vmul.f32 %v444, %v615
      %v646 = vmul.f32 %v445, %v616
      %v647 = vmul.f32 %v446, %v617
      %v648 = vmul.f32 %v447, %v618
      %v649 = vmul.f32 %v448, %v619
      %v650 = vmul.f32 %v449, %v620
      %v651 = vpack.c.bf16 %v622, %v621
      %v652 = vpack.c.bf16 %v623, %v623
      %v653 = vpack.c.bf16 %v625, %v624
      %v654 = vpack.c.bf16 %v626, %v626
      %v655 = vpack.c.bf16 %v628, %v627
      %v656 = vpack.c.bf16 %v629, %v629
      %v657 = vpack.c.bf16 %v631, %v630
      %v658 = vpack.c.bf16 %v632, %v632
      %v659 = vpack.c.bf16 %v634, %v633
      %v660 = vpack.c.bf16 %v635, %v635
      %v661 = vpack.c.bf16 %v637, %v636
      %v662 = vpack.c.bf16 %v638, %v638
      %v663 = vpack.c.bf16 %v640, %v639
      %v664 = vpack.c.bf16 %v641, %v641
      %v665 = vpack.c.bf16 %v643, %v642
      %v666 = vpack.c.bf16 %v644, %v644
      %v667 = vpack.c.bf16 %v646, %v645
      %v668 = vpack.c.bf16 %v647, %v647
      %v669 = vpack.c.bf16 %v649, %v648
      %v670 = vpack.c.bf16 %v650, %v650
      %v671 = vld [vmem:[%s3] sm:$0xf]
      %v672 = vld [vmem:[%s3 + $0x4] sm:$0xf]
      %v673 = vld [vmem:[%s3 + $0x8] sm:$0xf]
      %v674 = vld [vmem:[%s3 + $0xc] sm:$0xf]
      %v675 = vld [vmem:[%s3 + $0x10] sm:$0xf]
      %v676 = vld [vmem:[%s3 + $0x14] sm:$0xf]
      %v677 = vld [vmem:[%s3 + $0x18] sm:$0xf]
      %v678 = vld [vmem:[%s3 + $0x1c] sm:$0xf]
      %v679 = vld [vmem:[%s3 + $0x20] sm:$0xf]
      %v680 = vld [vmem:[%s3 + $0x24] sm:$0xf]
      %v681 = vld [vmem:[%s3 + $0x28] sm:$0xf]
      %v682 = vld [vmem:[%s3 + $0x2c] sm:$0xf]
      %v683 = vld [vmem:[%s3 + $0x30] sm:$0xf]
      %v684 = vld [vmem:[%s3 + $0x34] sm:$0xf]
      %v685 = vld [vmem:[%s3 + $0x38] sm:$0xf]
      %v686 = vld [vmem:[%s3 + $0x3c] sm:$0xf]
      %s687 = scalar_lea.vmem %s3, 192
      %v688 = vld [vmem:[%s687] sm:$0xf]
      %v689 = vld [vmem:[%s687 + $0x4] sm:$0xf]
      %v690 = vld [vmem:[%s687 + $0x8] sm:$0xf]
      %v691 = vld [vmem:[%s687 + $0xc] sm:$0xf]
      %v692 = vld [vmem:[%s687 + $0x10] sm:$0xf]
      %v693 = vld [vmem:[%s687 + $0x14] sm:$0xf]
      %v694 = vld [vmem:[%s687 + $0x18] sm:$0xf]
      %v695 = vld [vmem:[%s687 + $0x1c] sm:$0xf]
      %v696 = vld [vmem:[%s687 + $0x20] sm:$0xf]
      %v697 = vld [vmem:[%s687 + $0x24] sm:$0xf]
      %v698 = vld [vmem:[%s687 + $0x28] sm:$0xf]
      %v699 = vld [vmem:[%s687 + $0x2c] sm:$0xf]
      %v700 = vld [vmem:[%s687 + $0x30] sm:$0xf]
      %v701 = vld [vmem:[%s687 + $0x34] sm:$0xf]
      %v702 = vld [vmem:[%s687 + $0x38] sm:$0xf]
      %v703 = vld [vmem:[%s687 + $0x3c] sm:$0xf]
      %v720 = vunpack.c.l.b16 %v688
      %v721 = vunpack.c.l.b16 %v689
      %v722 = vunpack.c.l.b16 %v690
      %v723 = vunpack.c.l.b16 %v691
      %v724 = vunpack.c.l.b16 %v692
      %v725 = vunpack.c.l.b16 %v693
      %v726 = vunpack.c.l.b16 %v694
      %v727 = vunpack.c.l.b16 %v695
      %v728 = vunpack.c.l.b16 %v696
      %v729 = vunpack.c.l.b16 %v697
      %v730 = vunpack.c.l.b16 %v698
      %v731 = vunpack.c.l.b16 %v699
      %v732 = vunpack.c.l.b16 %v700
      %v733 = vunpack.c.l.b16 %v701
      %v734 = vunpack.c.l.b16 %v702
      %v735 = vunpack.c.l.b16 %v703
      %v736 = vpack.c.b16 %v721, %v720
      %v737 = vpack.c.b16 %v723, %v722
      %v738 = vpack.c.b16 %v725, %v724
      %v739 = vpack.c.b16 %v727, %v726
      %v740 = vpack.c.b16 %v729, %v728
      %v741 = vpack.c.b16 %v731, %v730
      %v742 = vpack.c.b16 %v733, %v732
      %v743 = vpack.c.b16 %v735, %v734
      %752 = vmatprep.subr.bf16.mxu0 0
      %753 = vmatpush1.bf16.msra.mxu0 %v743
      %754 = vmatprep.subr.bf16.mxu0 0
      %755 = vmatpush1.bf16.msra.mxu0 %v742
      %756 = vmatprep.subr.bf16.mxu0 0
      %757 = vmatpush1.bf16.msra.mxu0 %v741
      %758 = vmatprep.subr.bf16.mxu0 0
      %759 = vmatpush1.bf16.msra.mxu0 %v740
      %760 = vmatprep.subr.bf16.mxu0 0
      %761 = vmatpush1.bf16.msra.mxu0 %v739
      %762 = vmatprep.subr.bf16.mxu0 0
      %763 = vmatpush1.bf16.msra.mxu0 %v738
      %764 = vmatprep.subr.bf16.mxu0 0
      %765 = vmatpush1.bf16.msra.mxu0 %v737
      %766 = vmatprep.subr.bf16.mxu0 0
      %767 = vmatpush1.bf16.msra.mxu0 %v736
      %768 = vmatprep.subr.bf16.mxu0 0
      %769 = vmatpush2.bf16.msra.mxu0 0
      %770 = vmatprep.subr.bf16.mxu0 0
      %771 = vmatpush2.bf16.msra.mxu0 0
      %772 = vmatprep.subr.bf16.mxu0 0
      %773 = vmatpush2.bf16.msra.mxu0 0
      %774 = vmatprep.subr.bf16.mxu0 0
      %775 = vmatpush2.bf16.msra.mxu0 0
      %776 = vmatprep.subr.bf16.mxu0 0
      %777 = vmatpush2.bf16.msra.mxu0 0
      %778 = vmatprep.subr.bf16.mxu0 0
      %779 = vmatpush2.bf16.msra.mxu0 0
      %780 = vmatprep.subr.bf16.mxu0 0
      %781 = vmatpush2.bf16.msra.mxu0 0
      %782 = vmatprep.subr.bf16.mxu0 0
      %783 = vmatpush2.bf16.msra.mxu0 0
      %784 = vmatprep.mubr.bf16.mxu0 0
      %785 = vmatmul.mubr.bf16.gmra.mxu0 %v653
      %v786 = vpop.f32.mrf.mxu0
      %v787 = vadd.f32 0.0, %v786
      %v788 = vpop.f32.mrf.mxu0
      %v789 = vpop.f32.mrf.mxu0
      %v790 = vadd.f32 0.0, %v789
      %v791 = vpop.f32.mrf.mxu0
      %792 = vmatprep.mubr.bf16.mxu0 0
      %793 = vmatmul.mubr.bf16.gmra.mxu0 %v655
      %v794 = vpop.f32.mrf.mxu0
      %v795 = vadd.f32 0.0, %v794
      %v796 = vpop.f32.mrf.mxu0
      %v797 = vpop.f32.mrf.mxu0
      %v798 = vadd.f32 0.0, %v797
      %v799 = vpop.f32.mrf.mxu0
      %800 = vmatprep.mubr.bf16.mxu0 0
      %801 = vmatmul.mubr.bf16.gmra.mxu0 %v657
      %v802 = vpop.f32.mrf.mxu0
      %v803 = vadd.f32 0.0, %v802
      %v804 = vpop.f32.mrf.mxu0
      %v805 = vpop.f32.mrf.mxu0
      %v806 = vadd.f32 0.0, %v805
      %v807 = vpop.f32.mrf.mxu0
      %808 = vmatprep.mubr.bf16.mxu0 0
      %809 = vmatmul.mubr.bf16.gmra.mxu0 %v659
      %v810 = vpop.f32.mrf.mxu0
      %v811 = vadd.f32 0.0, %v810
      %v812 = vpop.f32.mrf.mxu0
      %v813 = vpop.f32.mrf.mxu0
      %v814 = vadd.f32 0.0, %v813
      %v815 = vpop.f32.mrf.mxu0
      %816 = vmatprep.mubr.bf16.mxu0 0
      %817 = vmatmul.mubr.bf16.gmra.mxu0 %v661
      %v818 = vpop.f32.mrf.mxu0
      %v819 = vadd.f32 0.0, %v818
      %v820 = vpop.f32.mrf.mxu0
      %v821 = vpop.f32.mrf.mxu0
      %v822 = vadd.f32 0.0, %v821
      %v823 = vpop.f32.mrf.mxu0
      %824 = vmatprep.mubr.bf16.mxu0 0
      %825 = vmatmul.mubr.bf16.gmra.mxu0 %v663
      %v826 = vpop.f32.mrf.mxu0
      %v827 = vadd.f32 0.0, %v826
      %v828 = vpop.f32.mrf.mxu0
      %v829 = vpop.f32.mrf.mxu0
      %v830 = vadd.f32 0.0, %v829
      %v831 = vpop.f32.mrf.mxu0
      %832 = vmatprep.mubr.bf16.mxu0 0
      %833 = vmatmul.mubr.bf16.gmra.mxu0 %v665
      %v834 = vpop.f32.mrf.mxu0
      %v835 = vadd.f32 0.0, %v834
      %v836 = vpop.f32.mrf.mxu0
      %v837 = vpop.f32.mrf.mxu0
      %v838 = vadd.f32 0.0, %v837
      %v839 = vpop.f32.mrf.mxu0
      %840 = vmatprep.mubr.bf16.mxu0 0
      %841 = vmatmul.mubr.bf16.gmra.mxu0 %v667
      %v842 = vpop.f32.mrf.mxu0
      %v843 = vadd.f32 0.0, %v842
      %v844 = vpop.f32.mrf.mxu0
      %v845 = vpop.f32.mrf.mxu0
      %v846 = vadd.f32 0.0, %v845
      %v847 = vpop.f32.mrf.mxu0
      %848 = vdwg.mxu0
      %v865 = vunpack.c.l.b16 %v671
      %v866 = vunpack.c.l.b16 %v672
      %v867 = vunpack.c.l.b16 %v673
      %v868 = vunpack.c.l.b16 %v674
      %v869 = vunpack.c.l.b16 %v675
      %v870 = vunpack.c.l.b16 %v676
      %v871 = vunpack.c.l.b16 %v677
      %v872 = vunpack.c.l.b16 %v678
      %v873 = vunpack.c.l.b16 %v679
      %v874 = vunpack.c.l.b16 %v680
      %v875 = vunpack.c.l.b16 %v681
      %v876 = vunpack.c.l.b16 %v682
      %v877 = vunpack.c.l.b16 %v683
      %v878 = vunpack.c.l.b16 %v684
      %v879 = vunpack.c.l.b16 %v685
      %v880 = vunpack.c.l.b16 %v686
      %v881 = vpack.c.b16 %v866, %v865
      %v882 = vpack.c.b16 %v868, %v867
      %v883 = vpack.c.b16 %v870, %v869
      %v884 = vpack.c.b16 %v872, %v871
      %v885 = vpack.c.b16 %v874, %v873
      %v886 = vpack.c.b16 %v876, %v875
      %v887 = vpack.c.b16 %v878, %v877
      %v888 = vpack.c.b16 %v880, %v879
      %897 = vmatprep.subr.bf16.mxu0 0
      %898 = vmatpush1.bf16.msra.mxu0 %v888
      %899 = vmatprep.subr.bf16.mxu0 0
      %900 = vmatpush1.bf16.msra.mxu0 %v887
      %901 = vmatprep.subr.bf16.mxu0 0
      %902 = vmatpush1.bf16.msra.mxu0 %v886
      %903 = vmatprep.subr.bf16.mxu0 0
      %904 = vmatpush1.bf16.msra.mxu0 %v885
      %905 = vmatprep.subr.bf16.mxu0 0
      %906 = vmatpush1.bf16.msra.mxu0 %v884
      %907 = vmatprep.subr.bf16.mxu0 0
      %908 = vmatpush1.bf16.msra.mxu0 %v883
      %909 = vmatprep.subr.bf16.mxu0 0
      %910 = vmatpush1.bf16.msra.mxu0 %v882
      %911 = vmatprep.subr.bf16.mxu0 0
      %912 = vmatpush1.bf16.msra.mxu0 %v881
      %913 = vmatprep.subr.bf16.mxu0 0
      %914 = vmatpush2.bf16.msra.mxu0 0
      %915 = vmatprep.subr.bf16.mxu0 0
      %916 = vmatpush2.bf16.msra.mxu0 0
      %917 = vmatprep.subr.bf16.mxu0 0
      %918 = vmatpush2.bf16.msra.mxu0 0
      %919 = vmatprep.subr.bf16.mxu0 0
      %920 = vmatpush2.bf16.msra.mxu0 0
      %921 = vmatprep.subr.bf16.mxu0 0
      %922 = vmatpush2.bf16.msra.mxu0 0
      %923 = vmatprep.subr.bf16.mxu0 0
      %924 = vmatpush2.bf16.msra.mxu0 0
      %925 = vmatprep.subr.bf16.mxu0 0
      %926 = vmatpush2.bf16.msra.mxu0 0
      %927 = vmatprep.subr.bf16.mxu0 0
      %928 = vmatpush2.bf16.msra.mxu0 0
      %929 = vmatprep.mubr.bf16.mxu0 0
      %930 = vmatmul.mubr.bf16.gmra.mxu0 %v651
      %v931 = vpop.f32.mrf.mxu0
      %v932 = vadd.f32 %v787, %v931
      %v933 = vpop.f32.mrf.mxu0
      %v934 = vpop.f32.mrf.mxu0
      %v935 = vadd.f32 %v790, %v934
      %v936 = vpop.f32.mrf.mxu0
      %937 = vmatprep.mubr.bf16.mxu0 0
      %938 = vmatmul.mubr.bf16.gmra.mxu0 %v653
      %v939 = vpop.f32.mrf.mxu0
      %v940 = vadd.f32 %v795, %v939
      %v941 = vpop.f32.mrf.mxu0
      %v942 = vpop.f32.mrf.mxu0
      %v943 = vadd.f32 %v798, %v942
      %v944 = vpop.f32.mrf.mxu0
      %945 = vmatprep.mubr.bf16.mxu0 0
      %946 = vmatmul.mubr.bf16.gmra.mxu0 %v655
      %v947 = vpop.f32.mrf.mxu0
      %v948 = vadd.f32 %v803, %v947
      %v949 = vpop.f32.mrf.mxu0
      %v950 = vpop.f32.mrf.mxu0
      %v951 = vadd.f32 %v806, %v950
      %v952 = vpop.f32.mrf.mxu0
      %953 = vmatprep.mubr.bf16.mxu0 0
      %954 = vmatmul.mubr.bf16.gmra.mxu0 %v657
      %v955 = vpop.f32.mrf.mxu0
      %v956 = vadd.f32 %v811, %v955
      %v957 = vpop.f32.mrf.mxu0
      %v958 = vpop.f32.mrf.mxu0
      %v959 = vadd.f32 %v814, %v958
      %v960 = vpop.f32.mrf.mxu0
      %961 = vmatprep.mubr.bf16.mxu0 0
      %962 = vmatmul.mubr.bf16.gmra.mxu0 %v659
      %v963 = vpop.f32.mrf.mxu0
      %v964 = vadd.f32 %v819, %v963
      %v965 = vpop.f32.mrf.mxu0
      %v966 = vpop.f32.mrf.mxu0
      %v967 = vadd.f32 %v822, %v966
      %v968 = vpop.f32.mrf.mxu0
      %969 = vmatprep.mubr.bf16.mxu0 0
      %970 = vmatmul.mubr.bf16.gmra.mxu0 %v661
      %v971 = vpop.f32.mrf.mxu0
      %v972 = vadd.f32 %v827, %v971
      %v973 = vpop.f32.mrf.mxu0
      %v974 = vpop.f32.mrf.mxu0
      %v975 = vadd.f32 %v830, %v974
      %v976 = vpop.f32.mrf.mxu0
      %977 = vmatprep.mubr.bf16.mxu0 0
      %978 = vmatmul.mubr.bf16.gmra.mxu0 %v663
      %v979 = vpop.f32.mrf.mxu0
      %v980 = vadd.f32 %v835, %v979
      %v981 = vpop.f32.mrf.mxu0
      %v982 = vpop.f32.mrf.mxu0
      %v983 = vadd.f32 %v838, %v982
      %v984 = vpop.f32.mrf.mxu0
      %985 = vmatprep.mubr.bf16.mxu0 0
      %986 = vmatmul.mubr.bf16.gmra.mxu0 %v665
      %v987 = vpop.f32.mrf.mxu0
      %v988 = vadd.f32 %v843, %v987
      %v989 = vpop.f32.mrf.mxu0
      %v990 = vpop.f32.mrf.mxu0
      %v991 = vadd.f32 %v846, %v990
      %v992 = vpop.f32.mrf.mxu0
      %993 = vdwg.mxu0
      %s994 = scalar_lea.vmem %s3, 384
      %v995 = vld [vmem:[%s994] sm:$0xf]
      %v996 = vld [vmem:[%s994 + $0x4] sm:$0xf]
      %v997 = vld [vmem:[%s994 + $0x8] sm:$0xf]
      %v998 = vld [vmem:[%s994 + $0xc] sm:$0xf]
      %v999 = vld [vmem:[%s994 + $0x10] sm:$0xf]
      %v1000 = vld [vmem:[%s994 + $0x14] sm:$0xf]
      %v1001 = vld [vmem:[%s994 + $0x18] sm:$0xf]
      %v1002 = vld [vmem:[%s994 + $0x1c] sm:$0xf]
      %v1003 = vld [vmem:[%s994 + $0x20] sm:$0xf]
      %v1004 = vld [vmem:[%s994 + $0x24] sm:$0xf]
      %v1005 = vld [vmem:[%s994 + $0x28] sm:$0xf]
      %v1006 = vld [vmem:[%s994 + $0x2c] sm:$0xf]
      %v1007 = vld [vmem:[%s994 + $0x30] sm:$0xf]
      %v1008 = vld [vmem:[%s994 + $0x34] sm:$0xf]
      %v1009 = vld [vmem:[%s994 + $0x38] sm:$0xf]
      %v1010 = vld [vmem:[%s994 + $0x3c] sm:$0xf]
      %v1027 = vunpack.c.l.b16 %v995
      %v1028 = vunpack.c.l.b16 %v996
      %v1029 = vunpack.c.l.b16 %v997
      %v1030 = vunpack.c.l.b16 %v998
      %v1031 = vunpack.c.l.b16 %v999
      %v1032 = vunpack.c.l.b16 %v1000
      %v1033 = vunpack.c.l.b16 %v1001
      %v1034 = vunpack.c.l.b16 %v1002
      %v1035 = vunpack.c.l.b16 %v1003
      %v1036 = vunpack.c.l.b16 %v1004
      %v1037 = vunpack.c.l.b16 %v1005
      %v1038 = vunpack.c.l.b16 %v1006
      %v1039 = vunpack.c.l.b16 %v1007
      %v1040 = vunpack.c.l.b16 %v1008
      %v1041 = vunpack.c.l.b16 %v1009
      %v1042 = vunpack.c.l.b16 %v1010
      %v1043 = vpack.c.b16 %v1028, %v1027
      %v1044 = vpack.c.b16 %v1030, %v1029
      %v1045 = vpack.c.b16 %v1032, %v1031
      %v1046 = vpack.c.b16 %v1034, %v1033
      %v1047 = vpack.c.b16 %v1036, %v1035
      %v1048 = vpack.c.b16 %v1038, %v1037
      %v1049 = vpack.c.b16 %v1040, %v1039
      %v1050 = vpack.c.b16 %v1042, %v1041
      %1059 = vmatprep.subr.bf16.mxu0 0
      %1060 = vmatpush1.bf16.msra.mxu0 %v1050
      %1061 = vmatprep.subr.bf16.mxu0 0
      %1062 = vmatpush1.bf16.msra.mxu0 %v1049
      %1063 = vmatprep.subr.bf16.mxu0 0
      %1064 = vmatpush1.bf16.msra.mxu0 %v1048
      %1065 = vmatprep.subr.bf16.mxu0 0
      %1066 = vmatpush1.bf16.msra.mxu0 %v1047
      %1067 = vmatprep.subr.bf16.mxu0 0
      %1068 = vmatpush1.bf16.msra.mxu0 %v1046
      %1069 = vmatprep.subr.bf16.mxu0 0
      %1070 = vmatpush1.bf16.msra.mxu0 %v1045
      %1071 = vmatprep.subr.bf16.mxu0 0
      %1072 = vmatpush1.bf16.msra.mxu0 %v1044
      %1073 = vmatprep.subr.bf16.mxu0 0
      %1074 = vmatpush1.bf16.msra.mxu0 %v1043
      %1075 = vmatprep.subr.bf16.mxu0 0
      %1076 = vmatpush2.bf16.msra.mxu0 0
      %1077 = vmatprep.subr.bf16.mxu0 0
      %1078 = vmatpush2.bf16.msra.mxu0 0
      %1079 = vmatprep.subr.bf16.mxu0 0
      %1080 = vmatpush2.bf16.msra.mxu0 0
      %1081 = vmatprep.subr.bf16.mxu0 0
      %1082 = vmatpush2.bf16.msra.mxu0 0
      %1083 = vmatprep.subr.bf16.mxu0 0
      %1084 = vmatpush2.bf16.msra.mxu0 0
      %1085 = vmatprep.subr.bf16.mxu0 0
      %1086 = vmatpush2.bf16.msra.mxu0 0
      %1087 = vmatprep.subr.bf16.mxu0 0
      %1088 = vmatpush2.bf16.msra.mxu0 0
      %1089 = vmatprep.subr.bf16.mxu0 0
      %1090 = vmatpush2.bf16.msra.mxu0 0
      %1091 = vmatprep.mubr.bf16.mxu0 0
      %1092 = vmatmul.mubr.bf16.gmra.mxu0 %v655
      %v1093 = vpop.f32.mrf.mxu0
      %v1094 = vadd.f32 0.0, %v1093
      %v1095 = vpop.f32.mrf.mxu0
      %v1096 = vpop.f32.mrf.mxu0
      %v1097 = vadd.f32 0.0, %v1096
      %v1098 = vpop.f32.mrf.mxu0
      %1099 = vmatprep.mubr.bf16.mxu0 0
      %1100 = vmatmul.mubr.bf16.gmra.mxu0 %v657
      %v1101 = vpop.f32.mrf.mxu0
      %v1102 = vadd.f32 0.0, %v1101
      %v1103 = vpop.f32.mrf.mxu0
      %v1104 = vpop.f32.mrf.mxu0
      %v1105 = vadd.f32 0.0, %v1104
      %v1106 = vpop.f32.mrf.mxu0
      %1107 = vmatprep.mubr.bf16.mxu0 0
      %1108 = vmatmul.mubr.bf16.gmra.mxu0 %v659
      %v1109 = vpop.f32.mrf.mxu0
      %v1110 = vadd.f32 0.0, %v1109
      %v1111 = vpop.f32.mrf.mxu0
      %v1112 = vpop.f32.mrf.mxu0
      %v1113 = vadd.f32 0.0, %v1112
      %v1114 = vpop.f32.mrf.mxu0
      %1115 = vmatprep.mubr.bf16.mxu0 0
      %1116 = vmatmul.mubr.bf16.gmra.mxu0 %v661
      %v1117 = vpop.f32.mrf.mxu0
      %v1118 = vadd.f32 0.0, %v1117
      %v1119 = vpop.f32.mrf.mxu0
      %v1120 = vpop.f32.mrf.mxu0
      %v1121 = vadd.f32 0.0, %v1120
      %v1122 = vpop.f32.mrf.mxu0
      %1123 = vmatprep.mubr.bf16.mxu0 0
      %1124 = vmatmul.mubr.bf16.gmra.mxu0 %v663
      %v1125 = vpop.f32.mrf.mxu0
      %v1126 = vadd.f32 0.0, %v1125
      %v1127 = vpop.f32.mrf.mxu0
      %v1128 = vpop.f32.mrf.mxu0
      %v1129 = vadd.f32 0.0, %v1128
      %v1130 = vpop.f32.mrf.mxu0
      %1131 = vmatprep.mubr.bf16.mxu0 0
      %1132 = vmatmul.mubr.bf16.gmra.mxu0 %v665
      %v1133 = vpop.f32.mrf.mxu0
      %v1134 = vadd.f32 0.0, %v1133
      %v1135 = vpop.f32.mrf.mxu0
      %v1136 = vpop.f32.mrf.mxu0
      %v1137 = vadd.f32 0.0, %v1136
      %v1138 = vpop.f32.mrf.mxu0
      %1139 = vmatprep.mubr.bf16.mxu0 0
      %1140 = vmatmul.mubr.bf16.gmra.mxu0 %v667
      %v1141 = vpop.f32.mrf.mxu0
      %v1142 = vadd.f32 0.0, %v1141
      %v1143 = vpop.f32.mrf.mxu0
      %v1144 = vpop.f32.mrf.mxu0
      %v1145 = vadd.f32 0.0, %v1144
      %v1146 = vpop.f32.mrf.mxu0
      %1147 = vmatprep.mubr.bf16.mxu0 0
      %1148 = vmatmul.mubr.bf16.gmra.mxu0 %v669
      %v1149 = vpop.f32.mrf.mxu0
      %v1150 = vadd.f32 0.0, %v1149
      %v1151 = vpop.f32.mrf.mxu0
      %v1152 = vpop.f32.mrf.mxu0
      %v1153 = vadd.f32 0.0, %v1152
      %v1154 = vpop.f32.mrf.mxu0
      %1155 = vdwg.mxu0
      %v1156 = vadd.f32 %v932, %v1094
      %v1157 = vadd.f32 %v935, %v1097
      %v1158 = vadd.f32 %v940, %v1102
      %v1159 = vadd.f32 %v943, %v1105
      %v1160 = vadd.f32 %v948, %v1110
      %v1161 = vadd.f32 %v951, %v1113
      %v1162 = vadd.f32 %v956, %v1118
      %v1163 = vadd.f32 %v959, %v1121
      %v1164 = vadd.f32 %v964, %v1126
      %v1165 = vadd.f32 %v967, %v1129
      %v1166 = vadd.f32 %v972, %v1134
      %v1167 = vadd.f32 %v975, %v1137
      %v1168 = vadd.f32 %v980, %v1142
      %v1169 = vadd.f32 %v983, %v1145
      %v1170 = vadd.f32 %v988, %v1150
      %v1171 = vadd.f32 %v991, %v1153
      %vm1172 = vsmask.f32 7424
      %v1174 = vshrl.u32 %v651, 16
      %v1176 = vshll.u32 %v651, 16
      %v1178 = vrot.slane %v1176, 1
      %v1179 = vor.u32 %v1174, %v1178
      %v1181 = vshll.u32 %v652, 16
      %v1183 = vrot.slane %v1181, 1
      %v1184 = vsel %vm1172, %v1179, %v1183
      %v1186 = vshrl.u32 %v653, 16
      %v1188 = vshll.u32 %v653, 16
      %v1190 = vrot.slane %v1188, 1
      %v1191 = vor.u32 %v1186, %v1190
      %v1193 = vshll.u32 %v654, 16
      %v1195 = vrot.slane %v1193, 1
      %v1196 = vsel %vm1172, %v1191, %v1195
      %v1198 = vshrl.u32 %v655, 16
      %v1200 = vshll.u32 %v655, 16
      %v1202 = vrot.slane %v1200, 1
      %v1203 = vor.u32 %v1198, %v1202
      %v1205 = vshll.u32 %v656, 16
      %v1207 = vrot.slane %v1205, 1
      %v1208 = vsel %vm1172, %v1203, %v1207
      %v1210 = vshrl.u32 %v657, 16
      %v1212 = vshll.u32 %v657, 16
      %v1214 = vrot.slane %v1212, 1
      %v1215 = vor.u32 %v1210, %v1214
      %v1217 = vshll.u32 %v658, 16
      %v1219 = vrot.slane %v1217, 1
      %v1220 = vsel %vm1172, %v1215, %v1219
      %v1222 = vshrl.u32 %v659, 16
      %v1224 = vshll.u32 %v659, 16
      %v1226 = vrot.slane %v1224, 1
      %v1227 = vor.u32 %v1222, %v1226
      %v1229 = vshll.u32 %v660, 16
      %v1231 = vrot.slane %v1229, 1
      %v1232 = vsel %vm1172, %v1227, %v1231
      %v1234 = vshrl.u32 %v661, 16
      %v1236 = vshll.u32 %v661, 16
      %v1238 = vrot.slane %v1236, 1
      %v1239 = vor.u32 %v1234, %v1238
      %v1241 = vshll.u32 %v662, 16
      %v1243 = vrot.slane %v1241, 1
      %v1244 = vsel %vm1172, %v1239, %v1243
      %v1246 = vshrl.u32 %v663, 16
      %v1248 = vshll.u32 %v663, 16
      %v1250 = vrot.slane %v1248, 1
      %v1251 = vor.u32 %v1246, %v1250
      %v1253 = vshll.u32 %v664, 16
      %v1255 = vrot.slane %v1253, 1
      %v1256 = vsel %vm1172, %v1251, %v1255
      %v1258 = vshrl.u32 %v665, 16
      %v1260 = vshll.u32 %v665, 16
      %v1262 = vrot.slane %v1260, 1
      %v1263 = vor.u32 %v1258, %v1262
      %v1265 = vshll.u32 %v666, 16
      %v1267 = vrot.slane %v1265, 1
      %v1268 = vsel %vm1172, %v1263, %v1267
      %s1277 = scalar_lea.vmem %s3, 64
      %v1278 = vld [vmem:[%s1277] sm:$0xf]
      %v1279 = vld [vmem:[%s1277 + $0x4] sm:$0xf]
      %v1280 = vld [vmem:[%s1277 + $0x8] sm:$0xf]
      %v1281 = vld [vmem:[%s1277 + $0xc] sm:$0xf]
      %v1282 = vld [vmem:[%s1277 + $0x10] sm:$0xf]
      %v1283 = vld [vmem:[%s1277 + $0x14] sm:$0xf]
      %v1284 = vld [vmem:[%s1277 + $0x18] sm:$0xf]
      %v1285 = vld [vmem:[%s1277 + $0x1c] sm:$0xf]
      %v1286 = vld [vmem:[%s1277 + $0x20] sm:$0xf]
      %v1287 = vld [vmem:[%s1277 + $0x24] sm:$0xf]
      %v1288 = vld [vmem:[%s1277 + $0x28] sm:$0xf]
      %v1289 = vld [vmem:[%s1277 + $0x2c] sm:$0xf]
      %v1290 = vld [vmem:[%s1277 + $0x30] sm:$0xf]
      %v1291 = vld [vmem:[%s1277 + $0x34] sm:$0xf]
      %v1292 = vld [vmem:[%s1277 + $0x38] sm:$0xf]
      %v1293 = vld [vmem:[%s1277 + $0x3c] sm:$0xf]
      %v1310 = vunpack.c.l.b16 %v1278
      %v1311 = vunpack.c.l.b16 %v1279
      %v1312 = vunpack.c.l.b16 %v1280
      %v1313 = vunpack.c.l.b16 %v1281
      %v1314 = vunpack.c.l.b16 %v1282
      %v1315 = vunpack.c.l.b16 %v1283
      %v1316 = vunpack.c.l.b16 %v1284
      %v1317 = vunpack.c.l.b16 %v1285
      %v1318 = vunpack.c.l.b16 %v1286
      %v1319 = vunpack.c.l.b16 %v1287
      %v1320 = vunpack.c.l.b16 %v1288
      %v1321 = vunpack.c.l.b16 %v1289
      %v1322 = vunpack.c.l.b16 %v1290
      %v1323 = vunpack.c.l.b16 %v1291
      %v1324 = vunpack.c.l.b16 %v1292
      %v1325 = vunpack.c.l.b16 %v1293
      %v1326 = vpack.c.b16 %v1311, %v1310
      %v1327 = vpack.c.b16 %v1313, %v1312
      %v1328 = vpack.c.b16 %v1315, %v1314
      %v1329 = vpack.c.b16 %v1317, %v1316
      %v1330 = vpack.c.b16 %v1319, %v1318
      %v1331 = vpack.c.b16 %v1321, %v1320
      %v1332 = vpack.c.b16 %v1323, %v1322
      %v1333 = vpack.c.b16 %v1325, %v1324
      %1342 = vmatprep.subr.bf16.mxu0 0
      %1343 = vmatpush1.bf16.msra.mxu0 %v1333
      %1344 = vmatprep.subr.bf16.mxu0 0
      %1345 = vmatpush1.bf16.msra.mxu0 %v1332
      %1346 = vmatprep.subr.bf16.mxu0 0
      %1347 = vmatpush1.bf16.msra.mxu0 %v1331
      %1348 = vmatprep.subr.bf16.mxu0 0
      %1349 = vmatpush1.bf16.msra.mxu0 %v1330
      %1350 = vmatprep.subr.bf16.mxu0 0
      %1351 = vmatpush1.bf16.msra.mxu0 %v1329
      %1352 = vmatprep.subr.bf16.mxu0 0
      %1353 = vmatpush1.bf16.msra.mxu0 %v1328
      %1354 = vmatprep.subr.bf16.mxu0 0
      %1355 = vmatpush1.bf16.msra.mxu0 %v1327
      %1356 = vmatprep.subr.bf16.mxu0 0
      %1357 = vmatpush1.bf16.msra.mxu0 %v1326
      %1358 = vmatprep.subr.bf16.mxu0 0
      %1359 = vmatpush2.bf16.msra.mxu0 0
      %1360 = vmatprep.subr.bf16.mxu0 0
      %1361 = vmatpush2.bf16.msra.mxu0 0
      %1362 = vmatprep.subr.bf16.mxu0 0
      %1363 = vmatpush2.bf16.msra.mxu0 0
      %1364 = vmatprep.subr.bf16.mxu0 0
      %1365 = vmatpush2.bf16.msra.mxu0 0
      %1366 = vmatprep.subr.bf16.mxu0 0
      %1367 = vmatpush2.bf16.msra.mxu0 0
      %1368 = vmatprep.subr.bf16.mxu0 0
      %1369 = vmatpush2.bf16.msra.mxu0 0
      %1370 = vmatprep.subr.bf16.mxu0 0
      %1371 = vmatpush2.bf16.msra.mxu0 0
      %1372 = vmatprep.subr.bf16.mxu0 0
      %1373 = vmatpush2.bf16.msra.mxu0 0
      %1374 = vmatprep.mubr.bf16.mxu0 0
      %1375 = vmatmul.mubr.bf16.gmra.mxu0 %v1184
      %v1376 = vpop.f32.mrf.mxu0
      %v1377 = vadd.f32 0.0, %v1376
      %v1378 = vpop.f32.mrf.mxu0
      %v1379 = vpop.f32.mrf.mxu0
      %v1380 = vadd.f32 0.0, %v1379
      %v1381 = vpop.f32.mrf.mxu0
      %1382 = vmatprep.mubr.bf16.mxu0 0
      %1383 = vmatmul.mubr.bf16.gmra.mxu0 %v1196
      %v1384 = vpop.f32.mrf.mxu0
      %v1385 = vadd.f32 0.0, %v1384
      %v1386 = vpop.f32.mrf.mxu0
      %v1387 = vpop.f32.mrf.mxu0
      %v1388 = vadd.f32 0.0, %v1387
      %v1389 = vpop.f32.mrf.mxu0
      %1390 = vmatprep.mubr.bf16.mxu0 0
      %1391 = vmatmul.mubr.bf16.gmra.mxu0 %v1208
      %v1392 = vpop.f32.mrf.mxu0
      %v1393 = vadd.f32 0.0, %v1392
      %v1394 = vpop.f32.mrf.mxu0
      %v1395 = vpop.f32.mrf.mxu0
      %v1396 = vadd.f32 0.0, %v1395
      %v1397 = vpop.f32.mrf.mxu0
      %1398 = vmatprep.mubr.bf16.mxu0 0
      %1399 = vmatmul.mubr.bf16.gmra.mxu0 %v1220
      %v1400 = vpop.f32.mrf.mxu0
      %v1401 = vadd.f32 0.0, %v1400
      %v1402 = vpop.f32.mrf.mxu0
      %v1403 = vpop.f32.mrf.mxu0
      %v1404 = vadd.f32 0.0, %v1403
      %v1405 = vpop.f32.mrf.mxu0
      %1406 = vmatprep.mubr.bf16.mxu0 0
      %1407 = vmatmul.mubr.bf16.gmra.mxu0 %v1232
      %v1408 = vpop.f32.mrf.mxu0
      %v1409 = vadd.f32 0.0, %v1408
      %v1410 = vpop.f32.mrf.mxu0
      %v1411 = vpop.f32.mrf.mxu0
      %v1412 = vadd.f32 0.0, %v1411
      %v1413 = vpop.f32.mrf.mxu0
      %1414 = vmatprep.mubr.bf16.mxu0 0
      %1415 = vmatmul.mubr.bf16.gmra.mxu0 %v1244
      %v1416 = vpop.f32.mrf.mxu0
      %v1417 = vadd.f32 0.0, %v1416
      %v1418 = vpop.f32.mrf.mxu0
      %v1419 = vpop.f32.mrf.mxu0
      %v1420 = vadd.f32 0.0, %v1419
      %v1421 = vpop.f32.mrf.mxu0
      %1422 = vmatprep.mubr.bf16.mxu0 0
      %1423 = vmatmul.mubr.bf16.gmra.mxu0 %v1256
      %v1424 = vpop.f32.mrf.mxu0
      %v1425 = vadd.f32 0.0, %v1424
      %v1426 = vpop.f32.mrf.mxu0
      %v1427 = vpop.f32.mrf.mxu0
      %v1428 = vadd.f32 0.0, %v1427
      %v1429 = vpop.f32.mrf.mxu0
      %1430 = vmatprep.mubr.bf16.mxu0 0
      %1431 = vmatmul.mubr.bf16.gmra.mxu0 %v1268
      %v1432 = vpop.f32.mrf.mxu0
      %v1433 = vadd.f32 0.0, %v1432
      %v1434 = vpop.f32.mrf.mxu0
      %v1435 = vpop.f32.mrf.mxu0
      %v1436 = vadd.f32 0.0, %v1435
      %v1437 = vpop.f32.mrf.mxu0
      %1438 = vdwg.mxu0
      %v1439 = vadd.f32 %v1156, %v1377
      %v1440 = vadd.f32 %v1157, %v1380
      %v1441 = vadd.f32 %v1158, %v1385
      %v1442 = vadd.f32 %v1159, %v1388
      %v1443 = vadd.f32 %v1160, %v1393
      %v1444 = vadd.f32 %v1161, %v1396
      %v1445 = vadd.f32 %v1162, %v1401
      %v1446 = vadd.f32 %v1163, %v1404
      %v1447 = vadd.f32 %v1164, %v1409
      %v1448 = vadd.f32 %v1165, %v1412
      %v1449 = vadd.f32 %v1166, %v1417
      %v1450 = vadd.f32 %v1167, %v1420
      %v1451 = vadd.f32 %v1168, %v1425
      %v1452 = vadd.f32 %v1169, %v1428
      %v1453 = vadd.f32 %v1170, %v1433
      %v1454 = vadd.f32 %v1171, %v1436
      %v1456 = vshrl.u32 %v667, 16
      %v1458 = vshll.u32 %v667, 16
      %v1460 = vrot.slane %v1458, 1
      %v1461 = vor.u32 %v1456, %v1460
      %v1463 = vshll.u32 %v668, 16
      %v1465 = vrot.slane %v1463, 1
      %v1466 = vsel %vm1172, %v1461, %v1465
      %s1468 = scalar_lea.vmem %s3, 256
      %v1469 = vld [vmem:[%s1468] sm:$0xf]
      %v1470 = vld [vmem:[%s1468 + $0x4] sm:$0xf]
      %v1471 = vld [vmem:[%s1468 + $0x8] sm:$0xf]
      %v1472 = vld [vmem:[%s1468 + $0xc] sm:$0xf]
      %v1473 = vld [vmem:[%s1468 + $0x10] sm:$0xf]
      %v1474 = vld [vmem:[%s1468 + $0x14] sm:$0xf]
      %v1475 = vld [vmem:[%s1468 + $0x18] sm:$0xf]
      %v1476 = vld [vmem:[%s1468 + $0x1c] sm:$0xf]
      %v1477 = vld [vmem:[%s1468 + $0x20] sm:$0xf]
      %v1478 = vld [vmem:[%s1468 + $0x24] sm:$0xf]
      %v1479 = vld [vmem:[%s1468 + $0x28] sm:$0xf]
      %v1480 = vld [vmem:[%s1468 + $0x2c] sm:$0xf]
      %v1481 = vld [vmem:[%s1468 + $0x30] sm:$0xf]
      %v1482 = vld [vmem:[%s1468 + $0x34] sm:$0xf]
      %v1483 = vld [vmem:[%s1468 + $0x38] sm:$0xf]
      %v1484 = vld [vmem:[%s1468 + $0x3c] sm:$0xf]
      %v1501 = vunpack.c.l.b16 %v1469
      %v1502 = vunpack.c.l.b16 %v1470
      %v1503 = vunpack.c.l.b16 %v1471
      %v1504 = vunpack.c.l.b16 %v1472
      %v1505 = vunpack.c.l.b16 %v1473
      %v1506 = vunpack.c.l.b16 %v1474
      %v1507 = vunpack.c.l.b16 %v1475
      %v1508 = vunpack.c.l.b16 %v1476
      %v1509 = vunpack.c.l.b16 %v1477
      %v1510 = vunpack.c.l.b16 %v1478
      %v1511 = vunpack.c.l.b16 %v1479
      %v1512 = vunpack.c.l.b16 %v1480
      %v1513 = vunpack.c.l.b16 %v1481
      %v1514 = vunpack.c.l.b16 %v1482
      %v1515 = vunpack.c.l.b16 %v1483
      %v1516 = vunpack.c.l.b16 %v1484
      %v1517 = vpack.c.b16 %v1502, %v1501
      %v1518 = vpack.c.b16 %v1504, %v1503
      %v1519 = vpack.c.b16 %v1506, %v1505
      %v1520 = vpack.c.b16 %v1508, %v1507
      %v1521 = vpack.c.b16 %v1510, %v1509
      %v1522 = vpack.c.b16 %v1512, %v1511
      %v1523 = vpack.c.b16 %v1514, %v1513
      %v1524 = vpack.c.b16 %v1516, %v1515
      %1533 = vmatprep.subr.bf16.mxu0 0
      %1534 = vmatpush1.bf16.msra.mxu0 %v1524
      %1535 = vmatprep.subr.bf16.mxu0 0
      %1536 = vmatpush1.bf16.msra.mxu0 %v1523
      %1537 = vmatprep.subr.bf16.mxu0 0
      %1538 = vmatpush1.bf16.msra.mxu0 %v1522
      %1539 = vmatprep.subr.bf16.mxu0 0
      %1540 = vmatpush1.bf16.msra.mxu0 %v1521
      %1541 = vmatprep.subr.bf16.mxu0 0
      %1542 = vmatpush1.bf16.msra.mxu0 %v1520
      %1543 = vmatprep.subr.bf16.mxu0 0
      %1544 = vmatpush1.bf16.msra.mxu0 %v1519
      %1545 = vmatprep.subr.bf16.mxu0 0
      %1546 = vmatpush1.bf16.msra.mxu0 %v1518
      %1547 = vmatprep.subr.bf16.mxu0 0
      %1548 = vmatpush1.bf16.msra.mxu0 %v1517
      %1549 = vmatprep.subr.bf16.mxu0 0
      %1550 = vmatpush2.bf16.msra.mxu0 0
      %1551 = vmatprep.subr.bf16.mxu0 0
      %1552 = vmatpush2.bf16.msra.mxu0 0
      %1553 = vmatprep.subr.bf16.mxu0 0
      %1554 = vmatpush2.bf16.msra.mxu0 0
      %1555 = vmatprep.subr.bf16.mxu0 0
      %1556 = vmatpush2.bf16.msra.mxu0 0
      %1557 = vmatprep.subr.bf16.mxu0 0
      %1558 = vmatpush2.bf16.msra.mxu0 0
      %1559 = vmatprep.subr.bf16.mxu0 0
      %1560 = vmatpush2.bf16.msra.mxu0 0
      %1561 = vmatprep.subr.bf16.mxu0 0
      %1562 = vmatpush2.bf16.msra.mxu0 0
      %1563 = vmatprep.subr.bf16.mxu0 0
      %1564 = vmatpush2.bf16.msra.mxu0 0
      %1565 = vmatprep.mubr.bf16.mxu0 0
      %1566 = vmatmul.mubr.bf16.gmra.mxu0 %v1196
      %v1567 = vpop.f32.mrf.mxu0
      %v1568 = vadd.f32 0.0, %v1567
      %v1569 = vpop.f32.mrf.mxu0
      %v1570 = vpop.f32.mrf.mxu0
      %v1571 = vadd.f32 0.0, %v1570
      %v1572 = vpop.f32.mrf.mxu0
      %1573 = vmatprep.mubr.bf16.mxu0 0
      %1574 = vmatmul.mubr.bf16.gmra.mxu0 %v1208
      %v1575 = vpop.f32.mrf.mxu0
      %v1576 = vadd.f32 0.0, %v1575
      %v1577 = vpop.f32.mrf.mxu0
      %v1578 = vpop.f32.mrf.mxu0
      %v1579 = vadd.f32 0.0, %v1578
      %v1580 = vpop.f32.mrf.mxu0
      %1581 = vmatprep.mubr.bf16.mxu0 0
      %1582 = vmatmul.mubr.bf16.gmra.mxu0 %v1220
      %v1583 = vpop.f32.mrf.mxu0
      %v1584 = vadd.f32 0.0, %v1583
      %v1585 = vpop.f32.mrf.mxu0
      %v1586 = vpop.f32.mrf.mxu0
      %v1587 = vadd.f32 0.0, %v1586
      %v1588 = vpop.f32.mrf.mxu0
      %1589 = vmatprep.mubr.bf16.mxu0 0
      %1590 = vmatmul.mubr.bf16.gmra.mxu0 %v1232
      %v1591 = vpop.f32.mrf.mxu0
      %v1592 = vadd.f32 0.0, %v1591
      %v1593 = vpop.f32.mrf.mxu0
      %v1594 = vpop.f32.mrf.mxu0
      %v1595 = vadd.f32 0.0, %v1594
      %v1596 = vpop.f32.mrf.mxu0
      %1597 = vmatprep.mubr.bf16.mxu0 0
      %1598 = vmatmul.mubr.bf16.gmra.mxu0 %v1244
      %v1599 = vpop.f32.mrf.mxu0
      %v1600 = vadd.f32 0.0, %v1599
      %v1601 = vpop.f32.mrf.mxu0
      %v1602 = vpop.f32.mrf.mxu0
      %v1603 = vadd.f32 0.0, %v1602
      %v1604 = vpop.f32.mrf.mxu0
      %1605 = vmatprep.mubr.bf16.mxu0 0
      %1606 = vmatmul.mubr.bf16.gmra.mxu0 %v1256
      %v1607 = vpop.f32.mrf.mxu0
      %v1608 = vadd.f32 0.0, %v1607
      %v1609 = vpop.f32.mrf.mxu0
      %v1610 = vpop.f32.mrf.mxu0
      %v1611 = vadd.f32 0.0, %v1610
      %v1612 = vpop.f32.mrf.mxu0
      %1613 = vmatprep.mubr.bf16.mxu0 0
      %1614 = vmatmul.mubr.bf16.gmra.mxu0 %v1268
      %v1615 = vpop.f32.mrf.mxu0
      %v1616 = vadd.f32 0.0, %v1615
      %v1617 = vpop.f32.mrf.mxu0
      %v1618 = vpop.f32.mrf.mxu0
      %v1619 = vadd.f32 0.0, %v1618
      %v1620 = vpop.f32.mrf.mxu0
      %1621 = vmatprep.mubr.bf16.mxu0 0
      %1622 = vmatmul.mubr.bf16.gmra.mxu0 %v1466
      %v1623 = vpop.f32.mrf.mxu0
      %v1624 = vadd.f32 0.0, %v1623
      %v1625 = vpop.f32.mrf.mxu0
      %v1626 = vpop.f32.mrf.mxu0
      %v1627 = vadd.f32 0.0, %v1626
      %v1628 = vpop.f32.mrf.mxu0
      %1629 = vdwg.mxu0
      %v1630 = vadd.f32 %v1439, %v1568
      %v1631 = vadd.f32 %v1440, %v1571
      %v1632 = vadd.f32 %v1441, %v1576
      %v1633 = vadd.f32 %v1442, %v1579
      %v1634 = vadd.f32 %v1443, %v1584
      %v1635 = vadd.f32 %v1444, %v1587
      %v1636 = vadd.f32 %v1445, %v1592
      %v1637 = vadd.f32 %v1446, %v1595
      %v1638 = vadd.f32 %v1447, %v1600
      %v1639 = vadd.f32 %v1448, %v1603
      %v1640 = vadd.f32 %v1449, %v1608
      %v1641 = vadd.f32 %v1450, %v1611
      %v1642 = vadd.f32 %v1451, %v1616
      %v1643 = vadd.f32 %v1452, %v1619
      %v1644 = vadd.f32 %v1453, %v1624
      %v1645 = vadd.f32 %v1454, %v1627
      %v1647 = vshrl.u32 %v669, 16
      %v1649 = vshll.u32 %v669, 16
      %v1651 = vrot.slane %v1649, 1
      %v1652 = vor.u32 %v1647, %v1651
      %v1654 = vshll.u32 %v670, 16
      %v1656 = vrot.slane %v1654, 1
      %v1657 = vsel %vm1172, %v1652, %v1656
      %s1659 = scalar_lea.vmem %s3, 448
      %v1660 = vld [vmem:[%s1659] sm:$0xf]
      %v1661 = vld [vmem:[%s1659 + $0x4] sm:$0xf]
      %v1662 = vld [vmem:[%s1659 + $0x8] sm:$0xf]
      %v1663 = vld [vmem:[%s1659 + $0xc] sm:$0xf]
      %v1664 = vld [vmem:[%s1659 + $0x10] sm:$0xf]
      %v1665 = vld [vmem:[%s1659 + $0x14] sm:$0xf]
      %v1666 = vld [vmem:[%s1659 + $0x18] sm:$0xf]
      %v1667 = vld [vmem:[%s1659 + $0x1c] sm:$0xf]
      %v1668 = vld [vmem:[%s1659 + $0x20] sm:$0xf]
      %v1669 = vld [vmem:[%s1659 + $0x24] sm:$0xf]
      %v1670 = vld [vmem:[%s1659 + $0x28] sm:$0xf]
      %v1671 = vld [vmem:[%s1659 + $0x2c] sm:$0xf]
      %v1672 = vld [vmem:[%s1659 + $0x30] sm:$0xf]
      %v1673 = vld [vmem:[%s1659 + $0x34] sm:$0xf]
      %v1674 = vld [vmem:[%s1659 + $0x38] sm:$0xf]
      %v1675 = vld [vmem:[%s1659 + $0x3c] sm:$0xf]
      %v1692 = vunpack.c.l.b16 %v1660
      %v1693 = vunpack.c.l.b16 %v1661
      %v1694 = vunpack.c.l.b16 %v1662
      %v1695 = vunpack.c.l.b16 %v1663
      %v1696 = vunpack.c.l.b16 %v1664
      %v1697 = vunpack.c.l.b16 %v1665
      %v1698 = vunpack.c.l.b16 %v1666
      %v1699 = vunpack.c.l.b16 %v1667
      %v1700 = vunpack.c.l.b16 %v1668
      %v1701 = vunpack.c.l.b16 %v1669
      %v1702 = vunpack.c.l.b16 %v1670
      %v1703 = vunpack.c.l.b16 %v1671
      %v1704 = vunpack.c.l.b16 %v1672
      %v1705 = vunpack.c.l.b16 %v1673
      %v1706 = vunpack.c.l.b16 %v1674
      %v1707 = vunpack.c.l.b16 %v1675
      %v1708 = vpack.c.b16 %v1693, %v1692
      %v1709 = vpack.c.b16 %v1695, %v1694
      %v1710 = vpack.c.b16 %v1697, %v1696
      %v1711 = vpack.c.b16 %v1699, %v1698
      %v1712 = vpack.c.b16 %v1701, %v1700
      %v1713 = vpack.c.b16 %v1703, %v1702
      %v1714 = vpack.c.b16 %v1705, %v1704
      %v1715 = vpack.c.b16 %v1707, %v1706
      %1724 = vmatprep.subr.bf16.mxu0 0
      %1725 = vmatpush1.bf16.msra.mxu0 %v1715
      %1726 = vmatprep.subr.bf16.mxu0 0
      %1727 = vmatpush1.bf16.msra.mxu0 %v1714
      %1728 = vmatprep.subr.bf16.mxu0 0
      %1729 = vmatpush1.bf16.msra.mxu0 %v1713
      %1730 = vmatprep.subr.bf16.mxu0 0
      %1731 = vmatpush1.bf16.msra.mxu0 %v1712
      %1732 = vmatprep.subr.bf16.mxu0 0
      %1733 = vmatpush1.bf16.msra.mxu0 %v1711
      %1734 = vmatprep.subr.bf16.mxu0 0
      %1735 = vmatpush1.bf16.msra.mxu0 %v1710
      %1736 = vmatprep.subr.bf16.mxu0 0
      %1737 = vmatpush1.bf16.msra.mxu0 %v1709
      %1738 = vmatprep.subr.bf16.mxu0 0
      %1739 = vmatpush1.bf16.msra.mxu0 %v1708
      %1740 = vmatprep.subr.bf16.mxu0 0
      %1741 = vmatpush2.bf16.msra.mxu0 0
      %1742 = vmatprep.subr.bf16.mxu0 0
      %1743 = vmatpush2.bf16.msra.mxu0 0
      %1744 = vmatprep.subr.bf16.mxu0 0
      %1745 = vmatpush2.bf16.msra.mxu0 0
      %1746 = vmatprep.subr.bf16.mxu0 0
      %1747 = vmatpush2.bf16.msra.mxu0 0
      %1748 = vmatprep.subr.bf16.mxu0 0
      %1749 = vmatpush2.bf16.msra.mxu0 0
      %1750 = vmatprep.subr.bf16.mxu0 0
      %1751 = vmatpush2.bf16.msra.mxu0 0
      %1752 = vmatprep.subr.bf16.mxu0 0
      %1753 = vmatpush2.bf16.msra.mxu0 0
      %1754 = vmatprep.subr.bf16.mxu0 0
      %1755 = vmatpush2.bf16.msra.mxu0 0
      %1756 = vmatprep.mubr.bf16.mxu0 0
      %1757 = vmatmul.mubr.bf16.gmra.mxu0 %v1208
      %v1758 = vpop.f32.mrf.mxu0
      %v1759 = vadd.f32 0.0, %v1758
      %v1760 = vpop.f32.mrf.mxu0
      %v1761 = vpop.f32.mrf.mxu0
      %v1762 = vadd.f32 0.0, %v1761
      %v1763 = vpop.f32.mrf.mxu0
      %1764 = vmatprep.mubr.bf16.mxu0 0
      %1765 = vmatmul.mubr.bf16.gmra.mxu0 %v1220
      %v1766 = vpop.f32.mrf.mxu0
      %v1767 = vadd.f32 0.0, %v1766
      %v1768 = vpop.f32.mrf.mxu0
      %v1769 = vpop.f32.mrf.mxu0
      %v1770 = vadd.f32 0.0, %v1769
      %v1771 = vpop.f32.mrf.mxu0
      %1772 = vmatprep.mubr.bf16.mxu0 0
      %1773 = vmatmul.mubr.bf16.gmra.mxu0 %v1232
      %v1774 = vpop.f32.mrf.mxu0
      %v1775 = vadd.f32 0.0, %v1774
      %v1776 = vpop.f32.mrf.mxu0
      %v1777 = vpop.f32.mrf.mxu0
      %v1778 = vadd.f32 0.0, %v1777
      %v1779 = vpop.f32.mrf.mxu0
      %1780 = vmatprep.mubr.bf16.mxu0 0
      %1781 = vmatmul.mubr.bf16.gmra.mxu0 %v1244
      %v1782 = vpop.f32.mrf.mxu0
      %v1783 = vadd.f32 0.0, %v1782
      %v1784 = vpop.f32.mrf.mxu0
      %v1785 = vpop.f32.mrf.mxu0
      %v1786 = vadd.f32 0.0, %v1785
      %v1787 = vpop.f32.mrf.mxu0
      %1788 = vmatprep.mubr.bf16.mxu0 0
      %1789 = vmatmul.mubr.bf16.gmra.mxu0 %v1256
      %v1790 = vpop.f32.mrf.mxu0
      %v1791 = vadd.f32 0.0, %v1790
      %v1792 = vpop.f32.mrf.mxu0
      %v1793 = vpop.f32.mrf.mxu0
      %v1794 = vadd.f32 0.0, %v1793
      %v1795 = vpop.f32.mrf.mxu0
      %1796 = vmatprep.mubr.bf16.mxu0 0
      %1797 = vmatmul.mubr.bf16.gmra.mxu0 %v1268
      %v1798 = vpop.f32.mrf.mxu0
      %v1799 = vadd.f32 0.0, %v1798
      %v1800 = vpop.f32.mrf.mxu0
      %v1801 = vpop.f32.mrf.mxu0
      %v1802 = vadd.f32 0.0, %v1801
      %v1803 = vpop.f32.mrf.mxu0
      %1804 = vmatprep.mubr.bf16.mxu0 0
      %1805 = vmatmul.mubr.bf16.gmra.mxu0 %v1466
      %v1806 = vpop.f32.mrf.mxu0
      %v1807 = vadd.f32 0.0, %v1806
      %v1808 = vpop.f32.mrf.mxu0
      %v1809 = vpop.f32.mrf.mxu0
      %v1810 = vadd.f32 0.0, %v1809
      %v1811 = vpop.f32.mrf.mxu0
      %1812 = vmatprep.mubr.bf16.mxu0 0
      %1813 = vmatmul.mubr.bf16.gmra.mxu0 %v1657
      %v1814 = vpop.f32.mrf.mxu0
      %v1815 = vadd.f32 0.0, %v1814
      %v1816 = vpop.f32.mrf.mxu0
      %v1817 = vpop.f32.mrf.mxu0
      %v1818 = vadd.f32 0.0, %v1817
      %v1819 = vpop.f32.mrf.mxu0
      %1820 = vdwg.mxu0
      %v1821 = vadd.f32 %v1630, %v1759
      %v1822 = vadd.f32 %v1631, %v1762
      %v1823 = vadd.f32 %v1632, %v1767
      %v1824 = vadd.f32 %v1633, %v1770
      %v1825 = vadd.f32 %v1634, %v1775
      %v1826 = vadd.f32 %v1635, %v1778
      %v1827 = vadd.f32 %v1636, %v1783
      %v1828 = vadd.f32 %v1637, %v1786
      %v1829 = vadd.f32 %v1638, %v1791
      %v1830 = vadd.f32 %v1639, %v1794
      %v1831 = vadd.f32 %v1640, %v1799
      %v1832 = vadd.f32 %v1641, %v1802
      %v1833 = vadd.f32 %v1642, %v1807
      %v1834 = vadd.f32 %v1643, %v1810
      %v1835 = vadd.f32 %v1644, %v1815
      %v1836 = vadd.f32 %v1645, %v1818
      %vm1853 = vcmask 1046528
      %v1854 = vrot.slane %v651, 1
      %v1855 = vrot.slane %v652, 1
      %v1856 = vsel %vm1853, %v1854, %v1855
      %v1857 = vrot.slane %v653, 1
      %v1858 = vrot.slane %v654, 1
      %v1859 = vsel %vm1853, %v1857, %v1858
      %v1860 = vrot.slane %v655, 1
      %v1861 = vrot.slane %v656, 1
      %v1862 = vsel %vm1853, %v1860, %v1861
      %v1863 = vrot.slane %v657, 1
      %v1864 = vrot.slane %v658, 1
      %v1865 = vsel %vm1853, %v1863, %v1864
      %v1866 = vrot.slane %v659, 1
      %v1867 = vrot.slane %v660, 1
      %v1868 = vsel %vm1853, %v1866, %v1867
      %v1869 = vrot.slane %v661, 1
      %v1870 = vrot.slane %v662, 1
      %v1871 = vsel %vm1853, %v1869, %v1870
      %v1872 = vrot.slane %v663, 1
      %v1873 = vrot.slane %v664, 1
      %v1874 = vsel %vm1853, %v1872, %v1873
      %v1875 = vrot.slane %v665, 1
      %v1876 = vrot.slane %v666, 1
      %v1877 = vsel %vm1853, %v1875, %v1876
      %s1886 = scalar_lea.vmem %s3, 128
      %v1887 = vld [vmem:[%s1886] sm:$0xf]
      %v1888 = vld [vmem:[%s1886 + $0x4] sm:$0xf]
      %v1889 = vld [vmem:[%s1886 + $0x8] sm:$0xf]
      %v1890 = vld [vmem:[%s1886 + $0xc] sm:$0xf]
      %v1891 = vld [vmem:[%s1886 + $0x10] sm:$0xf]
      %v1892 = vld [vmem:[%s1886 + $0x14] sm:$0xf]
      %v1893 = vld [vmem:[%s1886 + $0x18] sm:$0xf]
      %v1894 = vld [vmem:[%s1886 + $0x1c] sm:$0xf]
      %v1895 = vld [vmem:[%s1886 + $0x20] sm:$0xf]
      %v1896 = vld [vmem:[%s1886 + $0x24] sm:$0xf]
      %v1897 = vld [vmem:[%s1886 + $0x28] sm:$0xf]
      %v1898 = vld [vmem:[%s1886 + $0x2c] sm:$0xf]
      %v1899 = vld [vmem:[%s1886 + $0x30] sm:$0xf]
      %v1900 = vld [vmem:[%s1886 + $0x34] sm:$0xf]
      %v1901 = vld [vmem:[%s1886 + $0x38] sm:$0xf]
      %v1902 = vld [vmem:[%s1886 + $0x3c] sm:$0xf]
      %v1919 = vunpack.c.l.b16 %v1887
      %v1920 = vunpack.c.l.b16 %v1888
      %v1921 = vunpack.c.l.b16 %v1889
      %v1922 = vunpack.c.l.b16 %v1890
      %v1923 = vunpack.c.l.b16 %v1891
      %v1924 = vunpack.c.l.b16 %v1892
      %v1925 = vunpack.c.l.b16 %v1893
      %v1926 = vunpack.c.l.b16 %v1894
      %v1927 = vunpack.c.l.b16 %v1895
      %v1928 = vunpack.c.l.b16 %v1896
      %v1929 = vunpack.c.l.b16 %v1897
      %v1930 = vunpack.c.l.b16 %v1898
      %v1931 = vunpack.c.l.b16 %v1899
      %v1932 = vunpack.c.l.b16 %v1900
      %v1933 = vunpack.c.l.b16 %v1901
      %v1934 = vunpack.c.l.b16 %v1902
      %v1935 = vpack.c.b16 %v1920, %v1919
      %v1936 = vpack.c.b16 %v1922, %v1921
      %v1937 = vpack.c.b16 %v1924, %v1923
      %v1938 = vpack.c.b16 %v1926, %v1925
      %v1939 = vpack.c.b16 %v1928, %v1927
      %v1940 = vpack.c.b16 %v1930, %v1929
      %v1941 = vpack.c.b16 %v1932, %v1931
      %v1942 = vpack.c.b16 %v1934, %v1933
      %1951 = vmatprep.subr.bf16.mxu0 0
      %1952 = vmatpush1.bf16.msra.mxu0 %v1942
      %1953 = vmatprep.subr.bf16.mxu0 0
      %1954 = vmatpush1.bf16.msra.mxu0 %v1941
      %1955 = vmatprep.subr.bf16.mxu0 0
      %1956 = vmatpush1.bf16.msra.mxu0 %v1940
      %1957 = vmatprep.subr.bf16.mxu0 0
      %1958 = vmatpush1.bf16.msra.mxu0 %v1939
      %1959 = vmatprep.subr.bf16.mxu0 0
      %1960 = vmatpush1.bf16.msra.mxu0 %v1938
      %1961 = vmatprep.subr.bf16.mxu0 0
      %1962 = vmatpush1.bf16.msra.mxu0 %v1937
      %1963 = vmatprep.subr.bf16.mxu0 0
      %1964 = vmatpush1.bf16.msra.mxu0 %v1936
      %1965 = vmatprep.subr.bf16.mxu0 0
      %1966 = vmatpush1.bf16.msra.mxu0 %v1935
      %1967 = vmatprep.subr.bf16.mxu0 0
      %1968 = vmatpush2.bf16.msra.mxu0 0
      %1969 = vmatprep.subr.bf16.mxu0 0
      %1970 = vmatpush2.bf16.msra.mxu0 0
      %1971 = vmatprep.subr.bf16.mxu0 0
      %1972 = vmatpush2.bf16.msra.mxu0 0
      %1973 = vmatprep.subr.bf16.mxu0 0
      %1974 = vmatpush2.bf16.msra.mxu0 0
      %1975 = vmatprep.subr.bf16.mxu0 0
      %1976 = vmatpush2.bf16.msra.mxu0 0
      %1977 = vmatprep.subr.bf16.mxu0 0
      %1978 = vmatpush2.bf16.msra.mxu0 0
      %1979 = vmatprep.subr.bf16.mxu0 0
      %1980 = vmatpush2.bf16.msra.mxu0 0
      %1981 = vmatprep.subr.bf16.mxu0 0
      %1982 = vmatpush2.bf16.msra.mxu0 0
      %1983 = vmatprep.mubr.bf16.mxu0 0
      %1984 = vmatmul.mubr.bf16.gmra.mxu0 %v1856
      %v1985 = vpop.f32.mrf.mxu0
      %v1986 = vadd.f32 0.0, %v1985
      %v1987 = vpop.f32.mrf.mxu0
      %v1988 = vpop.f32.mrf.mxu0
      %v1989 = vadd.f32 0.0, %v1988
      %v1990 = vpop.f32.mrf.mxu0
      %1991 = vmatprep.mubr.bf16.mxu0 0
      %1992 = vmatmul.mubr.bf16.gmra.mxu0 %v1859
      %v1993 = vpop.f32.mrf.mxu0
      %v1994 = vadd.f32 0.0, %v1993
      %v1995 = vpop.f32.mrf.mxu0
      %v1996 = vpop.f32.mrf.mxu0
      %v1997 = vadd.f32 0.0, %v1996
      %v1998 = vpop.f32.mrf.mxu0
      %1999 = vmatprep.mubr.bf16.mxu0 0
      %2000 = vmatmul.mubr.bf16.gmra.mxu0 %v1862
      %v2001 = vpop.f32.mrf.mxu0
      %v2002 = vadd.f32 0.0, %v2001
      %v2003 = vpop.f32.mrf.mxu0
      %v2004 = vpop.f32.mrf.mxu0
      %v2005 = vadd.f32 0.0, %v2004
      %v2006 = vpop.f32.mrf.mxu0
      %2007 = vmatprep.mubr.bf16.mxu0 0
      %2008 = vmatmul.mubr.bf16.gmra.mxu0 %v1865
      %v2009 = vpop.f32.mrf.mxu0
      %v2010 = vadd.f32 0.0, %v2009
      %v2011 = vpop.f32.mrf.mxu0
      %v2012 = vpop.f32.mrf.mxu0
      %v2013 = vadd.f32 0.0, %v2012
      %v2014 = vpop.f32.mrf.mxu0
      %2015 = vmatprep.mubr.bf16.mxu0 0
      %2016 = vmatmul.mubr.bf16.gmra.mxu0 %v1868
      %v2017 = vpop.f32.mrf.mxu0
      %v2018 = vadd.f32 0.0, %v2017
      %v2019 = vpop.f32.mrf.mxu0
      %v2020 = vpop.f32.mrf.mxu0
      %v2021 = vadd.f32 0.0, %v2020
      %v2022 = vpop.f32.mrf.mxu0
      %2023 = vmatprep.mubr.bf16.mxu0 0
      %2024 = vmatmul.mubr.bf16.gmra.mxu0 %v1871
      %v2025 = vpop.f32.mrf.mxu0
      %v2026 = vadd.f32 0.0, %v2025
      %v2027 = vpop.f32.mrf.mxu0
      %v2028 = vpop.f32.mrf.mxu0
      %v2029 = vadd.f32 0.0, %v2028
      %v2030 = vpop.f32.mrf.mxu0
      %2031 = vmatprep.mubr.bf16.mxu0 0
      %2032 = vmatmul.mubr.bf16.gmra.mxu0 %v1874
      %v2033 = vpop.f32.mrf.mxu0
      %v2034 = vadd.f32 0.0, %v2033
      %v2035 = vpop.f32.mrf.mxu0
      %v2036 = vpop.f32.mrf.mxu0
      %v2037 = vadd.f32 0.0, %v2036
      %v2038 = vpop.f32.mrf.mxu0
      %2039 = vmatprep.mubr.bf16.mxu0 0
      %2040 = vmatmul.mubr.bf16.gmra.mxu0 %v1877
      %v2041 = vpop.f32.mrf.mxu0
      %v2042 = vadd.f32 0.0, %v2041
      %v2043 = vpop.f32.mrf.mxu0
      %v2044 = vpop.f32.mrf.mxu0
      %v2045 = vadd.f32 0.0, %v2044
      %v2046 = vpop.f32.mrf.mxu0
      %2047 = vdwg.mxu0
      %v2048 = vadd.f32 %v1821, %v1986
      %v2049 = vadd.f32 %v1822, %v1989
      %v2050 = vadd.f32 %v1823, %v1994
      %v2051 = vadd.f32 %v1824, %v1997
      %v2052 = vadd.f32 %v1825, %v2002
      %v2053 = vadd.f32 %v1826, %v2005
      %v2054 = vadd.f32 %v1827, %v2010
      %v2055 = vadd.f32 %v1828, %v2013
      %v2056 = vadd.f32 %v1829, %v2018
      %v2057 = vadd.f32 %v1830, %v2021
      %v2058 = vadd.f32 %v1831, %v2026
      %v2059 = vadd.f32 %v1832, %v2029
      %v2060 = vadd.f32 %v1833, %v2034
      %v2061 = vadd.f32 %v1834, %v2037
      %v2062 = vadd.f32 %v1835, %v2042
      %v2063 = vadd.f32 %v1836, %v2045
      %v2066 = vrot.slane %v667, 1
      %v2067 = vrot.slane %v668, 1
      %v2068 = vsel %vm1853, %v2066, %v2067
      %s2070 = scalar_lea.vmem %s3, 320
      %v2071 = vld [vmem:[%s2070] sm:$0xf]
      %v2072 = vld [vmem:[%s2070 + $0x4] sm:$0xf]
      %v2073 = vld [vmem:[%s2070 + $0x8] sm:$0xf]
      %v2074 = vld [vmem:[%s2070 + $0xc] sm:$0xf]
      %v2075 = vld [vmem:[%s2070 + $0x10] sm:$0xf]
      %v2076 = vld [vmem:[%s2070 + $0x14] sm:$0xf]
      %v2077 = vld [vmem:[%s2070 + $0x18] sm:$0xf]
      %v2078 = vld [vmem:[%s2070 + $0x1c] sm:$0xf]
      %v2079 = vld [vmem:[%s2070 + $0x20] sm:$0xf]
      %v2080 = vld [vmem:[%s2070 + $0x24] sm:$0xf]
      %v2081 = vld [vmem:[%s2070 + $0x28] sm:$0xf]
      %v2082 = vld [vmem:[%s2070 + $0x2c] sm:$0xf]
      %v2083 = vld [vmem:[%s2070 + $0x30] sm:$0xf]
      %v2084 = vld [vmem:[%s2070 + $0x34] sm:$0xf]
      %v2085 = vld [vmem:[%s2070 + $0x38] sm:$0xf]
      %v2086 = vld [vmem:[%s2070 + $0x3c] sm:$0xf]
      %v2103 = vunpack.c.l.b16 %v2071
      %v2104 = vunpack.c.l.b16 %v2072
      %v2105 = vunpack.c.l.b16 %v2073
      %v2106 = vunpack.c.l.b16 %v2074
      %v2107 = vunpack.c.l.b16 %v2075
      %v2108 = vunpack.c.l.b16 %v2076
      %v2109 = vunpack.c.l.b16 %v2077
      %v2110 = vunpack.c.l.b16 %v2078
      %v2111 = vunpack.c.l.b16 %v2079
      %v2112 = vunpack.c.l.b16 %v2080
      %v2113 = vunpack.c.l.b16 %v2081
      %v2114 = vunpack.c.l.b16 %v2082
      %v2115 = vunpack.c.l.b16 %v2083
      %v2116 = vunpack.c.l.b16 %v2084
      %v2117 = vunpack.c.l.b16 %v2085
      %v2118 = vunpack.c.l.b16 %v2086
      %v2119 = vpack.c.b16 %v2104, %v2103
      %v2120 = vpack.c.b16 %v2106, %v2105
      %v2121 = vpack.c.b16 %v2108, %v2107
      %v2122 = vpack.c.b16 %v2110, %v2109
      %v2123 = vpack.c.b16 %v2112, %v2111
      %v2124 = vpack.c.b16 %v2114, %v2113
      %v2125 = vpack.c.b16 %v2116, %v2115
      %v2126 = vpack.c.b16 %v2118, %v2117
      %2135 = vmatprep.subr.bf16.mxu0 0
      %2136 = vmatpush1.bf16.msra.mxu0 %v2126
      %2137 = vmatprep.subr.bf16.mxu0 0
      %2138 = vmatpush1.bf16.msra.mxu0 %v2125
      %2139 = vmatprep.subr.bf16.mxu0 0
      %2140 = vmatpush1.bf16.msra.mxu0 %v2124
      %2141 = vmatprep.subr.bf16.mxu0 0
      %2142 = vmatpush1.bf16.msra.mxu0 %v2123
      %2143 = vmatprep.subr.bf16.mxu0 0
      %2144 = vmatpush1.bf16.msra.mxu0 %v2122
      %2145 = vmatprep.subr.bf16.mxu0 0
      %2146 = vmatpush1.bf16.msra.mxu0 %v2121
      %2147 = vmatprep.subr.bf16.mxu0 0
      %2148 = vmatpush1.bf16.msra.mxu0 %v2120
      %2149 = vmatprep.subr.bf16.mxu0 0
      %2150 = vmatpush1.bf16.msra.mxu0 %v2119
      %2151 = vmatprep.subr.bf16.mxu0 0
      %2152 = vmatpush2.bf16.msra.mxu0 0
      %2153 = vmatprep.subr.bf16.mxu0 0
      %2154 = vmatpush2.bf16.msra.mxu0 0
      %2155 = vmatprep.subr.bf16.mxu0 0
      %2156 = vmatpush2.bf16.msra.mxu0 0
      %2157 = vmatprep.subr.bf16.mxu0 0
      %2158 = vmatpush2.bf16.msra.mxu0 0
      %2159 = vmatprep.subr.bf16.mxu0 0
      %2160 = vmatpush2.bf16.msra.mxu0 0
      %2161 = vmatprep.subr.bf16.mxu0 0
      %2162 = vmatpush2.bf16.msra.mxu0 0
      %2163 = vmatprep.subr.bf16.mxu0 0
      %2164 = vmatpush2.bf16.msra.mxu0 0
      %2165 = vmatprep.subr.bf16.mxu0 0
      %2166 = vmatpush2.bf16.msra.mxu0 0
      %2167 = vmatprep.mubr.bf16.mxu0 0
      %2168 = vmatmul.mubr.bf16.gmra.mxu0 %v1859
      %v2169 = vpop.f32.mrf.mxu0
      %v2170 = vadd.f32 0.0, %v2169
      %v2171 = vpop.f32.mrf.mxu0
      %v2172 = vpop.f32.mrf.mxu0
      %v2173 = vadd.f32 0.0, %v2172
      %v2174 = vpop.f32.mrf.mxu0
      %2175 = vmatprep.mubr.bf16.mxu0 0
      %2176 = vmatmul.mubr.bf16.gmra.mxu0 %v1862
      %v2177 = vpop.f32.mrf.mxu0
      %v2178 = vadd.f32 0.0, %v2177
      %v2179 = vpop.f32.mrf.mxu0
      %v2180 = vpop.f32.mrf.mxu0
      %v2181 = vadd.f32 0.0, %v2180
      %v2182 = vpop.f32.mrf.mxu0
      %2183 = vmatprep.mubr.bf16.mxu0 0
      %2184 = vmatmul.mubr.bf16.gmra.mxu0 %v1865
      %v2185 = vpop.f32.mrf.mxu0
      %v2186 = vadd.f32 0.0, %v2185
      %v2187 = vpop.f32.mrf.mxu0
      %v2188 = vpop.f32.mrf.mxu0
      %v2189 = vadd.f32 0.0, %v2188
      %v2190 = vpop.f32.mrf.mxu0
      %2191 = vmatprep.mubr.bf16.mxu0 0
      %2192 = vmatmul.mubr.bf16.gmra.mxu0 %v1868
      %v2193 = vpop.f32.mrf.mxu0
      %v2194 = vadd.f32 0.0, %v2193
      %v2195 = vpop.f32.mrf.mxu0
      %v2196 = vpop.f32.mrf.mxu0
      %v2197 = vadd.f32 0.0, %v2196
      %v2198 = vpop.f32.mrf.mxu0
      %2199 = vmatprep.mubr.bf16.mxu0 0
      %2200 = vmatmul.mubr.bf16.gmra.mxu0 %v1871
      %v2201 = vpop.f32.mrf.mxu0
      %v2202 = vadd.f32 0.0, %v2201
      %v2203 = vpop.f32.mrf.mxu0
      %v2204 = vpop.f32.mrf.mxu0
      %v2205 = vadd.f32 0.0, %v2204
      %v2206 = vpop.f32.mrf.mxu0
      %2207 = vmatprep.mubr.bf16.mxu0 0
      %2208 = vmatmul.mubr.bf16.gmra.mxu0 %v1874
      %v2209 = vpop.f32.mrf.mxu0
      %v2210 = vadd.f32 0.0, %v2209
      %v2211 = vpop.f32.mrf.mxu0
      %v2212 = vpop.f32.mrf.mxu0
      %v2213 = vadd.f32 0.0, %v2212
      %v2214 = vpop.f32.mrf.mxu0
      %2215 = vmatprep.mubr.bf16.mxu0 0
      %2216 = vmatmul.mubr.bf16.gmra.mxu0 %v1877
      %v2217 = vpop.f32.mrf.mxu0
      %v2218 = vadd.f32 0.0, %v2217
      %v2219 = vpop.f32.mrf.mxu0
      %v2220 = vpop.f32.mrf.mxu0
      %v2221 = vadd.f32 0.0, %v2220
      %v2222 = vpop.f32.mrf.mxu0
      %2223 = vmatprep.mubr.bf16.mxu0 0
      %2224 = vmatmul.mubr.bf16.gmra.mxu0 %v2068
      %v2225 = vpop.f32.mrf.mxu0
      %v2226 = vadd.f32 0.0, %v2225
      %v2227 = vpop.f32.mrf.mxu0
      %v2228 = vpop.f32.mrf.mxu0
      %v2229 = vadd.f32 0.0, %v2228
      %v2230 = vpop.f32.mrf.mxu0
      %2231 = vdwg.mxu0
      %v2232 = vadd.f32 %v2048, %v2170
      %v2233 = vadd.f32 %v2049, %v2173
      %v2234 = vadd.f32 %v2050, %v2178
      %v2235 = vadd.f32 %v2051, %v2181
      %v2236 = vadd.f32 %v2052, %v2186
      %v2237 = vadd.f32 %v2053, %v2189
      %v2238 = vadd.f32 %v2054, %v2194
      %v2239 = vadd.f32 %v2055, %v2197
      %v2240 = vadd.f32 %v2056, %v2202
      %v2241 = vadd.f32 %v2057, %v2205
      %v2242 = vadd.f32 %v2058, %v2210
      %v2243 = vadd.f32 %v2059, %v2213
      %v2244 = vadd.f32 %v2060, %v2218
      %v2245 = vadd.f32 %v2061, %v2221
      %v2246 = vadd.f32 %v2062, %v2226
      %v2247 = vadd.f32 %v2063, %v2229
      %v2250 = vrot.slane %v669, 1
      %v2251 = vrot.slane %v670, 1
      %v2252 = vsel %vm1853, %v2250, %v2251
      %s2254 = scalar_lea.vmem %s3, 512
      %v2255 = vld [vmem:[%s2254] sm:$0xf]
      %v2256 = vld [vmem:[%s2254 + $0x4] sm:$0xf]
      %v2257 = vld [vmem:[%s2254 + $0x8] sm:$0xf]
      %v2258 = vld [vmem:[%s2254 + $0xc] sm:$0xf]
      %v2259 = vld [vmem:[%s2254 + $0x10] sm:$0xf]
      %v2260 = vld [vmem:[%s2254 + $0x14] sm:$0xf]
      %v2261 = vld [vmem:[%s2254 + $0x18] sm:$0xf]
      %v2262 = vld [vmem:[%s2254 + $0x1c] sm:$0xf]
      %v2263 = vld [vmem:[%s2254 + $0x20] sm:$0xf]
      %v2264 = vld [vmem:[%s2254 + $0x24] sm:$0xf]
      %v2265 = vld [vmem:[%s2254 + $0x28] sm:$0xf]
      %v2266 = vld [vmem:[%s2254 + $0x2c] sm:$0xf]
      %v2267 = vld [vmem:[%s2254 + $0x30] sm:$0xf]
      %v2268 = vld [vmem:[%s2254 + $0x34] sm:$0xf]
      %v2269 = vld [vmem:[%s2254 + $0x38] sm:$0xf]
      %v2270 = vld [vmem:[%s2254 + $0x3c] sm:$0xf]
      %v2287 = vunpack.c.l.b16 %v2255
      %v2288 = vunpack.c.l.b16 %v2256
      %v2289 = vunpack.c.l.b16 %v2257
      %v2290 = vunpack.c.l.b16 %v2258
      %v2291 = vunpack.c.l.b16 %v2259
      %v2292 = vunpack.c.l.b16 %v2260
      %v2293 = vunpack.c.l.b16 %v2261
      %v2294 = vunpack.c.l.b16 %v2262
      %v2295 = vunpack.c.l.b16 %v2263
      %v2296 = vunpack.c.l.b16 %v2264
      %v2297 = vunpack.c.l.b16 %v2265
      %v2298 = vunpack.c.l.b16 %v2266
      %v2299 = vunpack.c.l.b16 %v2267
      %v2300 = vunpack.c.l.b16 %v2268
      %v2301 = vunpack.c.l.b16 %v2269
      %v2302 = vunpack.c.l.b16 %v2270
      %v2303 = vpack.c.b16 %v2288, %v2287
      %v2304 = vpack.c.b16 %v2290, %v2289
      %v2305 = vpack.c.b16 %v2292, %v2291
      %v2306 = vpack.c.b16 %v2294, %v2293
      %v2307 = vpack.c.b16 %v2296, %v2295
      %v2308 = vpack.c.b16 %v2298, %v2297
      %v2309 = vpack.c.b16 %v2300, %v2299
      %v2310 = vpack.c.b16 %v2302, %v2301
      %2319 = vmatprep.subr.bf16.mxu0 0
      %2320 = vmatpush1.bf16.msra.mxu0 %v2310
      %2321 = vmatprep.subr.bf16.mxu0 0
      %2322 = vmatpush1.bf16.msra.mxu0 %v2309
      %2323 = vmatprep.subr.bf16.mxu0 0
      %2324 = vmatpush1.bf16.msra.mxu0 %v2308
      %2325 = vmatprep.subr.bf16.mxu0 0
      %2326 = vmatpush1.bf16.msra.mxu0 %v2307
      %2327 = vmatprep.subr.bf16.mxu0 0
      %2328 = vmatpush1.bf16.msra.mxu0 %v2306
      %2329 = vmatprep.subr.bf16.mxu0 0
      %2330 = vmatpush1.bf16.msra.mxu0 %v2305
      %2331 = vmatprep.subr.bf16.mxu0 0
      %2332 = vmatpush1.bf16.msra.mxu0 %v2304
      %2333 = vmatprep.subr.bf16.mxu0 0
      %2334 = vmatpush1.bf16.msra.mxu0 %v2303
      %2335 = vmatprep.subr.bf16.mxu0 0
      %2336 = vmatpush2.bf16.msra.mxu0 0
      %2337 = vmatprep.subr.bf16.mxu0 0
      %2338 = vmatpush2.bf16.msra.mxu0 0
      %2339 = vmatprep.subr.bf16.mxu0 0
      %2340 = vmatpush2.bf16.msra.mxu0 0
      %2341 = vmatprep.subr.bf16.mxu0 0
      %2342 = vmatpush2.bf16.msra.mxu0 0
      %2343 = vmatprep.subr.bf16.mxu0 0
      %2344 = vmatpush2.bf16.msra.mxu0 0
      %2345 = vmatprep.subr.bf16.mxu0 0
      %2346 = vmatpush2.bf16.msra.mxu0 0
      %2347 = vmatprep.subr.bf16.mxu0 0
      %2348 = vmatpush2.bf16.msra.mxu0 0
      %2349 = vmatprep.subr.bf16.mxu0 0
      %2350 = vmatpush2.bf16.msra.mxu0 0
      %2351 = vmatprep.mubr.bf16.mxu0 0
      %2352 = vmatmul.mubr.bf16.gmra.mxu0 %v1862
      %v2353 = vpop.f32.mrf.mxu0
      %v2354 = vadd.f32 0.0, %v2353
      %v2355 = vpop.f32.mrf.mxu0
      %v2356 = vpop.f32.mrf.mxu0
      %v2357 = vadd.f32 0.0, %v2356
      %v2358 = vpop.f32.mrf.mxu0
      %2359 = vmatprep.mubr.bf16.mxu0 0
      %2360 = vmatmul.mubr.bf16.gmra.mxu0 %v1865
      %v2361 = vpop.f32.mrf.mxu0
      %v2362 = vadd.f32 0.0, %v2361
      %v2363 = vpop.f32.mrf.mxu0
      %v2364 = vpop.f32.mrf.mxu0
      %v2365 = vadd.f32 0.0, %v2364
      %v2366 = vpop.f32.mrf.mxu0
      %2367 = vmatprep.mubr.bf16.mxu0 0
      %2368 = vmatmul.mubr.bf16.gmra.mxu0 %v1868
      %v2369 = vpop.f32.mrf.mxu0
      %v2370 = vadd.f32 0.0, %v2369
      %v2371 = vpop.f32.mrf.mxu0
      %v2372 = vpop.f32.mrf.mxu0
      %v2373 = vadd.f32 0.0, %v2372
      %v2374 = vpop.f32.mrf.mxu0
      %2375 = vmatprep.mubr.bf16.mxu0 0
      %2376 = vmatmul.mubr.bf16.gmra.mxu0 %v1871
      %v2377 = vpop.f32.mrf.mxu0
      %v2378 = vadd.f32 0.0, %v2377
      %v2379 = vpop.f32.mrf.mxu0
      %v2380 = vpop.f32.mrf.mxu0
      %v2381 = vadd.f32 0.0, %v2380
      %v2382 = vpop.f32.mrf.mxu0
      %2383 = vmatprep.mubr.bf16.mxu0 0
      %2384 = vmatmul.mubr.bf16.gmra.mxu0 %v1874
      %v2385 = vpop.f32.mrf.mxu0
      %v2386 = vadd.f32 0.0, %v2385
      %v2387 = vpop.f32.mrf.mxu0
      %v2388 = vpop.f32.mrf.mxu0
      %v2389 = vadd.f32 0.0, %v2388
      %v2390 = vpop.f32.mrf.mxu0
      %2391 = vmatprep.mubr.bf16.mxu0 0
      %2392 = vmatmul.mubr.bf16.gmra.mxu0 %v1877
      %v2393 = vpop.f32.mrf.mxu0
      %v2394 = vadd.f32 0.0, %v2393
      %v2395 = vpop.f32.mrf.mxu0
      %v2396 = vpop.f32.mrf.mxu0
      %v2397 = vadd.f32 0.0, %v2396
      %v2398 = vpop.f32.mrf.mxu0
      %2399 = vmatprep.mubr.bf16.mxu0 0
      %2400 = vmatmul.mubr.bf16.gmra.mxu0 %v2068
      %v2401 = vpop.f32.mrf.mxu0
      %v2402 = vadd.f32 0.0, %v2401
      %v2403 = vpop.f32.mrf.mxu0
      %v2404 = vpop.f32.mrf.mxu0
      %v2405 = vadd.f32 0.0, %v2404
      %v2406 = vpop.f32.mrf.mxu0
      %2407 = vmatprep.mubr.bf16.mxu0 0
      %2408 = vmatmul.mubr.bf16.gmra.mxu0 %v2252
      %v2409 = vpop.f32.mrf.mxu0
      %v2410 = vadd.f32 0.0, %v2409
      %v2411 = vpop.f32.mrf.mxu0
      %v2412 = vpop.f32.mrf.mxu0
      %v2413 = vadd.f32 0.0, %v2412
      %v2414 = vpop.f32.mrf.mxu0
      %2415 = vdwg.mxu0
      %v2416 = vadd.f32 %v2232, %v2354
      %v2417 = vadd.f32 %v2233, %v2357
      %v2418 = vadd.f32 %v2234, %v2362
      %v2419 = vadd.f32 %v2235, %v2365
      %v2420 = vadd.f32 %v2236, %v2370
      %v2421 = vadd.f32 %v2237, %v2373
      %v2422 = vadd.f32 %v2238, %v2378
      %v2423 = vadd.f32 %v2239, %v2381
      %v2424 = vadd.f32 %v2240, %v2386
      %v2425 = vadd.f32 %v2241, %v2389
      %v2426 = vadd.f32 %v2242, %v2394
      %v2427 = vadd.f32 %v2243, %v2397
      %v2428 = vadd.f32 %v2244, %v2402
      %v2429 = vadd.f32 %v2245, %v2405
      %v2430 = vadd.f32 %v2246, %v2410
      %v2431 = vadd.f32 %v2247, %v2413
      %v2432 = vpack.c.bf16 %v2417, %v2416
      %v2433 = vpack.c.bf16 %v2419, %v2418
      %v2434 = vpack.c.bf16 %v2421, %v2420
      %v2435 = vpack.c.bf16 %v2423, %v2422
      %v2436 = vpack.c.bf16 %v2425, %v2424
      %v2437 = vpack.c.bf16 %v2427, %v2426
      %v2438 = vpack.c.bf16 %v2429, %v2428
      %v2439 = vpack.c.bf16 %v2431, %v2430
      %v2448 = vunpack.c.l.b16 %v2432
      %v2449 = vunpack.c.h.b16 %v2432
      %v2450 = vunpack.c.l.b16 %v2433
      %v2451 = vunpack.c.h.b16 %v2433
      %v2452 = vunpack.c.l.b16 %v2434
      %v2453 = vunpack.c.h.b16 %v2434
      %v2454 = vunpack.c.l.b16 %v2435
      %v2455 = vunpack.c.h.b16 %v2435
      %v2456 = vunpack.c.l.b16 %v2436
      %v2457 = vunpack.c.h.b16 %v2436
      %v2458 = vunpack.c.l.b16 %v2437
      %v2459 = vunpack.c.h.b16 %v2437
      %v2460 = vunpack.c.l.b16 %v2438
      %v2461 = vunpack.c.h.b16 %v2438
      %v2462 = vunpack.c.l.b16 %v2439
      %v2463 = vunpack.c.h.b16 %v2439
      %v2464 = vpack.c.b16 %v2448, %v2448
      %v2465 = vpack.c.b16 %v2449, %v2449
      %v2466 = vpack.c.b16 %v2450, %v2450
      %v2467 = vpack.c.b16 %v2451, %v2451
      %v2468 = vpack.c.b16 %v2452, %v2452
      %v2469 = vpack.c.b16 %v2453, %v2453
      %v2470 = vpack.c.b16 %v2454, %v2454
      %v2471 = vpack.c.b16 %v2455, %v2455
      %v2472 = vpack.c.b16 %v2456, %v2456
      %v2473 = vpack.c.b16 %v2457, %v2457
      %v2474 = vpack.c.b16 %v2458, %v2458
      %v2475 = vpack.c.b16 %v2459, %v2459
      %v2476 = vpack.c.b16 %v2460, %v2460
      %v2477 = vpack.c.b16 %v2461, %v2461
      %v2478 = vpack.c.b16 %v2462, %v2462
      %v2479 = vpack.c.b16 %v2463, %v2463
      %2496 = vst [vmem:[%s275] sm:$0xf] %v2464
      %2497 = vst [vmem:[%s275 + $0x4] sm:$0xf] %v2465
      %2498 = vst [vmem:[%s275 + $0x8] sm:$0xf] %v2466
      %2499 = vst [vmem:[%s275 + $0xc] sm:$0xf] %v2467
      %2500 = vst [vmem:[%s275 + $0x10] sm:$0xf] %v2468
      %2501 = vst [vmem:[%s275 + $0x14] sm:$0xf] %v2469
      %2502 = vst [vmem:[%s275 + $0x18] sm:$0xf] %v2470
      %2503 = vst [vmem:[%s275 + $0x1c] sm:$0xf] %v2471
      %2504 = vst [vmem:[%s275 + $0x20] sm:$0xf] %v2472
      %2505 = vst [vmem:[%s275 + $0x24] sm:$0xf] %v2473
      %2506 = vst [vmem:[%s275 + $0x28] sm:$0xf] %v2474
      %2507 = vst [vmem:[%s275 + $0x2c] sm:$0xf] %v2475
      %2508 = vst [vmem:[%s275 + $0x30] sm:$0xf] %v2476
      %2509 = vst [vmem:[%s275 + $0x34] sm:$0xf] %v2477
      %2510 = vst [vmem:[%s275 + $0x38] sm:$0xf] %v2478
      %2511 = vst [vmem:[%s275 + $0x3c] sm:$0xf] %v2479
      %v2512 = vadd.f32 %v2416, %v2417
      %v2513 = vadd.f32 %v2512, %v2418
      %v2514 = vadd.f32 %v2513, %v2419
      %v2515 = vadd.f32 %v2514, %v2420
      %v2516 = vadd.f32 %v2515, %v2421
      %v2517 = vadd.f32 %v2516, %v2422
      %v2518 = vadd.f32 %v2517, %v2423
      %v2519 = vadd.f32 %v2518, %v2424
      %v2520 = vadd.f32 %v2519, %v2425
      %v2521 = vadd.f32 %v2520, %v2426
      %v2522 = vadd.f32 %v2521, %v2427
      %v2523 = vadd.f32 %v2522, %v2428
      %v2524 = vadd.f32 %v2523, %v2429
      %v2525 = vadd.f32 %v2524, %v2430
      %v2526 = vadd.f32 %v2525, %v2431
      %v2527 = vrot.slane %v2526, 4
      %v2528 = vadd.f32 %v2526, %v2527
      %v2529 = vrot.slane %v2528, 2
      %v2530 = vadd.f32 %v2528, %v2529
      %v2531 = vrot.slane %v2530, 1
      %v2532 = vadd.f32 %v2530, %v2531
      %v2533 = vmul.f32 %v2416, %v2416
      %v2534 = vmul.f32 %v2417, %v2417
      %v2535 = vmul.f32 %v2418, %v2418
      %v2536 = vmul.f32 %v2419, %v2419
      %v2537 = vmul.f32 %v2420, %v2420
      %v2538 = vmul.f32 %v2421, %v2421
      %v2539 = vmul.f32 %v2422, %v2422
      %v2540 = vmul.f32 %v2423, %v2423
      %v2541 = vmul.f32 %v2424, %v2424
      %v2542 = vmul.f32 %v2425, %v2425
      %v2543 = vmul.f32 %v2426, %v2426
      %v2544 = vmul.f32 %v2427, %v2427
      %v2545 = vmul.f32 %v2428, %v2428
      %v2546 = vmul.f32 %v2429, %v2429
      %v2547 = vmul.f32 %v2430, %v2430
      %v2548 = vmul.f32 %v2431, %v2431
      %v2549 = vadd.f32 %v2533, %v2534
      %v2550 = vadd.f32 %v2549, %v2535
      %v2551 = vadd.f32 %v2550, %v2536
      %v2552 = vadd.f32 %v2551, %v2537
      %v2553 = vadd.f32 %v2552, %v2538
      %v2554 = vadd.f32 %v2553, %v2539
      %v2555 = vadd.f32 %v2554, %v2540
      %v2556 = vadd.f32 %v2555, %v2541
      %v2557 = vadd.f32 %v2556, %v2542
      %v2558 = vadd.f32 %v2557, %v2543
      %v2559 = vadd.f32 %v2558, %v2544
      %v2560 = vadd.f32 %v2559, %v2545
      %v2561 = vadd.f32 %v2560, %v2546
      %v2562 = vadd.f32 %v2561, %v2547
      %v2563 = vadd.f32 %v2562, %v2548
      %v2564 = vrot.slane %v2563, 4
      %v2565 = vadd.f32 %v2563, %v2564
      %v2566 = vrot.slane %v2565, 2
      %v2567 = vadd.f32 %v2565, %v2566
      %v2568 = vrot.slane %v2567, 1
      %v2569 = vadd.f32 %v2567, %v2568
      %vm2570 = vcmask 1040384
      %v2571 = vsel %vm2570, %v2532, %v2569
      %2572 = vst [vmem:[%s284] sm:$0x3] %v2571
      %s2573 = smul.u32 8, %s22
      %p2574 = scmp.lt.s32.totalorder %s21, 1
      %s2575 = scalar_select %p2574, %s21, 1
      %p2576 = scmp.lt.s32.totalorder %s2573, 15
      %s2577 = scalar_select %p2576, %s2573, 15
      %s2578 = smul.addr %s2577, 2
      %s2579 = smul.addr %s2575, 32
      %s2580 = sadd.s32 %s2578, %s2579
      %s2581 = smul.addr %s2580, 4
      %s2582 = scalar_lea.vmem %s4, %s2581
      %p2583 = scmp.lt.s32.totalorder %s21, 1
      %s2584 = scalar_select %p2583, %s21, 1
      %p2585 = scmp.lt.s32.totalorder %s22, 1
      %s2586 = scalar_select %p2585, %s22, 1
      %s2587 = smul.addr %s2584, 2
      %s2588 = sadd.s32 %s2586, %s2587
      %s2589 = smul.addr %s2588, 2
      %s2590 = scalar_lea.vmem %s5, %s2589
      // Predicated region
      $region37: #{double_conv_forward.4} parent=35 // pred_check
        %p2591 = pneg %p140
      $region38: #{double_conv_forward.4} parent=35 // pred_check_branch
        %2593 = sbr.rel (%p2591) target = $region40
      $region39: #{double_conv_forward.4} parent=35 // pred_region
        %s2594 = smul.u32 8, %s22
      $region40: #{double_conv_forward.4} parent=35 // pred_fallthru
        _
      // Predicated region
      $region41: #{double_conv_forward.4} parent=35 // pred_check
        %p2595 = pneg %p168
      $region42: #{double_conv_forward.4} parent=35 // pred_check_branch
        %2597 = sbr.rel (%p2595) target = $region44
      $region43: #{double_conv_forward.4} parent=35 // pred_region
        _
      $region44: #{double_conv_forward.4} parent=35 // pred_fallthru
        _
    $region36: #{double_conv_forward.4} parent=5 // pred_fallthru
      _
    %p2598 = scmp.le.s32.totalorder 2, %s12
    // Predicated region
    $region45: #{double_conv_forward.4} parent=5 // pred_check
      %p2599 = pneg %p2598
    $region46: #{double_conv_forward.4} parent=5 // pred_check_branch
      %2601 = sbr.rel (%p2599) target = $region48
    $region47: #{double_conv_forward.4} parent=5 // pred_region
      %s2602 = ssub.s32 %s12, 2
      // Predicated region
      $region49: #{double_conv_forward.4} parent=47 // pred_check
        %p2603 = pneg %p146
      $region50: #{double_conv_forward.4} parent=47 // pred_check_branch
        %2605 = sbr.rel (%p2603) target = $region52
      $region51: #{double_conv_forward.4} parent=47 // pred_region
        %s2606 = smul.u32 8, %s24
        %p2607 = scmp.lt.s32.totalorder %s23, 1
        %s2608 = scalar_select %p2607, %s23, 1
        %p2609 = scmp.lt.s32.totalorder %s2606, 15
        %s2610 = scalar_select %p2609, %s2606, 15
        %s2611 = smul.addr %s2610, 2
        %s2612 = smul.addr %s2608, 32
        %s2613 = sadd.s32 %s2611, %s2612
        %s2614 = smul.addr %s2613, 4
        %s2615 = scalar_lea.vmem %s4, %s2614
      $region52: #{double_conv_forward.4} parent=47 // pred_fallthru
        _
      // Predicated region
      $region53: #{double_conv_forward.4} parent=47 // pred_check
        %p2616 = pneg %p174
      $region54: #{double_conv_forward.4} parent=47 // pred_check_branch
        %2618 = sbr.rel (%p2616) target = $region56
      $region55: #{double_conv_forward.4} parent=47 // pred_region
        %p2619 = scmp.lt.s32.totalorder %s23, 1
        %s2620 = scalar_select %p2619, %s23, 1
        %p2621 = scmp.lt.s32.totalorder %s24, 1
        %s2622 = scalar_select %p2621, %s24, 1
        %s2623 = smul.addr %s2620, 2
        %s2624 = sadd.s32 %s2622, %s2623
        %s2625 = smul.addr %s2624, 2
        %s2626 = scalar_lea.vmem %s5, %s2625
      $region56: #{double_conv_forward.4} parent=47 // pred_fallthru
        _
    $region48: #{double_conv_forward.4} parent=5 // pred_fallthru
      _
  $region6: #{double_conv_forward.4} parent=0 // loop_footer
    %s16 = sadd.s32 1, %s12
  $region7: #{double_conv_forward.4} parent=0 // loop_footer_branch
    %11 = sbr.rel target = $region3
  $region8: #{double_conv_forward.4} parent=0 // loop_exit
    _

</llo_original>
